<compile_context>
chip_gen: v7x
topology: tpu7x:2x2x1
jax: 0.10.0
libtpu: 0.0.40
codegen_flags: <defaults>
</compile_context>

<pallas_src>
import functools

import numpy as np
import jax
import jax.numpy as jnp
from jax.experimental import pallas as pl
from jax.experimental.pallas import tpu as pltpu

H = 6            # LSTM hidden size
H8 = 8           # hidden padded to a sublane multiple
G = 4 * H8       # 32 gate sublanes: (i, f, o, g) each padded to 8
NUM_LAYERS = 3
FC_OUT = 1
BL = 128         # batch lanes per block (lane width)


def lstm_fc_kernel(x_ref, wih_ref, whh_ref, b_ref, fcw_ref, fcb_ref,
                   out_ref, seq, gx, *, T):
    # x_ref   : (8, T*BL)   layer-0 input; row 0 = x, rows 1..7 = 0; col = t*BL+b
    # wih_ref : (L, 32, 8)  input->gate weights, gate-major sublane layout
    # whh_ref : (L, 32, 8)  hidden->gate weights
    # b_ref   : (L, 32, 1)  b_ih + b_hh combined
    #                       (i/f/o rows of all three are pre-scaled by 0.5)
    # fcw_ref : (8, 8)      final linear weight, row 0 cols 0..5 valid
    # fcb_ref : (1, 1)      final linear bias
    # out_ref : (8, BL)     row 0 = fc output per batch lane (lane-dense store)
    # seq     : (8, T*BL)   VMEM scratch: running layer output
    # gx      : (32, T*BL)  VMEM scratch: hoisted input projection (+ bias)
    h = jnp.zeros((H8, BL), jnp.float32)
    for layer in range(NUM_LAYERS):
        src = x_ref if layer == 0 else seq
        # ---- hoisted input projection: ONE matmul per layer (off the chain).
        gx[...] = (jnp.dot(wih_ref[layer], src[...],
                           preferred_element_type=jnp.float32)
                   + b_ref[layer])                            # (32, T*BL)

        # Hoist the Whh column lane-broadcasts out of the timestep loop
        # (JAX does not CSE broadcast_in_dim).
        whh = whh_ref[layer]                                  # (32, 8)
        whh_b = [jnp.broadcast_to(whh[:, k:k + 1], (G, BL)) for k in range(H)]

        h = jnp.zeros((H8, BL), jnp.float32)
        c = jnp.zeros((H8, BL), jnp.float32)
        for t in range(T):
            gx_t = gx[:, t * BL:(t + 1) * BL]                 # lane-128 aligned
            if t == 0:
                gates = gx_t                                  # h == 0
            else:
                # Recurrent h @ Whh^T as a VPU MAC: only cheap SUBLANE
                # broadcasts of h remain on the serial chain; balanced tree.
                def mac(k):
                    return whh_b[k] * jnp.broadcast_to(h[k:k + 1, :], (G, BL))
                rec = ((mac(0) + mac(1)) + (mac(2) + mac(3))) + (mac(4) + mac(5))
                gates = gx_t + rec                            # (32, BL)

            # One EUP chain for ALL gates; sigmoid = 0.5*tanh(x/2)+0.5 with the
            # /2 folded into the i/f/o parameter rows at init time.
            th = jnp.tanh(gates)
            i_g = th[0:H8] * 0.5 + 0.5
            f_g = th[H8:2 * H8] * 0.5 + 0.5
            o_g = th[2 * H8:3 * H8] * 0.5 + 0.5
            g_g = th[3 * H8:4 * H8]

            c = f_g * c + i_g * g_g
            h = o_g * jnp.tanh(c)
            if layer < NUM_LAYERS - 1:        # last layer only needs final h
                seq[:, t * BL:(t + 1) * BL] = h

    # Last timestep of last layer -> Linear(H, 1); lane-dense (8, BL) store.
    out = jnp.dot(fcw_ref[...], h, preferred_element_type=jnp.float32) \
        + fcb_ref[...]
    out_ref[...] = out


def net_forward(x, kernel_params):
    """x: (B, T, 1) float32  ->  (B, 1, 1) float32 (matches Net.forward)."""
    wih, whh, b, fcw, fcb = kernel_params
    B, T, Fin = x.shape
    assert Fin == 1
    nb = pl.cdiv(B, BL)                 # batch-lane blocks (grid, parallel)
    Bp = nb * BL
    x_p = jnp.pad(x.astype(jnp.float32),
                  ((0, Bp - B), (0, 0), (0, H8 - Fin)))       # (Bp, T, 8)
    # layout: x_k[j, h, t*BL + b] = x_p[j*BL + b, t, h]
    x_k = x_p.reshape(nb, BL, T, H8).transpose(0, 3, 2, 1).reshape(nb, H8, T * BL)

    out = pl.pallas_call(
        functools.partial(lstm_fc_kernel, T=T),
        out_shape=jax.ShapeDtypeStruct((nb, H8, BL), jnp.float32),
        grid=(nb,),
        in_specs=[
            pl.BlockSpec((None, H8, T * BL), lambda j: (j, 0, 0)),
            pl.BlockSpec((NUM_LAYERS, G, H8), lambda j: (0, 0, 0)),
            pl.BlockSpec((NUM_LAYERS, G, H8), lambda j: (0, 0, 0)),
            pl.BlockSpec((NUM_LAYERS, G, 1), lambda j: (0, 0, 0)),
            pl.BlockSpec((H8, H8), lambda j: (0, 0)),
            pl.BlockSpec((1, 1), lambda j: (0, 0)),
        ],
        out_specs=pl.BlockSpec((None, H8, BL), lambda j: (j, 0, 0)),
        scratch_shapes=[pltpu.VMEM((H8, T * BL), jnp.float32),
                        pltpu.VMEM((G, T * BL), jnp.float32)],
        compiler_params=pltpu.CompilerParams(
            dimension_semantics=("parallel",)),
    )(x_k, wih, whh, b, fcw, fcb)
    # out[j, 0, b] = fc result for batch element j*BL + b
    return out[:, 0, :].reshape(Bp)[:B].reshape(B, 1, 1)


def init_params(key):
    """Random params mirroring nn.LSTM / nn.Linear shapes.

    Returns (kernel_params, raw_params):
      kernel_params: gate-reordered (i,f,g,o)->(i,f,o,g), laid out gate-major on
                     sublanes (each gate padded 6->8 rows, inputs padded to 8
                     cols), b_ih+b_hh combined, and the i/f/o rows of
                     Wih/Whh/b pre-scaled by 0.5 (tanh-based sigmoid).
      raw_params:    PyTorch-layout (i, f, g, o) tensors for the reference.
    """
    ks = jax.random.split(key, 4 * NUM_LAYERS + 2)
    stdv = 1.0 / np.sqrt(H)
    pt_gate_of_kernel = (0, 1, 3, 2)    # kernel (i,f,o,g) <- PyTorch (i,f,g,o)

    raw_layers = []
    wih_layers, whh_layers, b_layers = [], [], []
    k_idx = 0
    for layer in range(NUM_LAYERS):
        in_size = 1 if layer == 0 else H
        w_ih = jax.random.uniform(ks[k_idx], (4 * H, in_size),
                                  minval=-stdv, maxval=stdv,
                                  dtype=jnp.float32); k_idx += 1
        w_hh = jax.random.uniform(ks[k_idx], (4 * H, H),
                                  minval=-stdv, maxval=stdv,
                                  dtype=jnp.float32); k_idx += 1
        b_ih = jax.random.uniform(ks[k_idx], (4 * H,),
                                  minval=-stdv, maxval=stdv,
                                  dtype=jnp.float32); k_idx += 1
        b_hh = jax.random.uniform(ks[k_idx], (4 * H,),
                                  minval=-stdv, maxval=stdv,
                                  dtype=jnp.float32); k_idx += 1
        raw_layers.append((w_ih, w_hh, b_ih, b_hh))

        w_ih_np = np.asarray(w_ih)
        w_hh_np = np.asarray(w_hh)
        b_np = np.asarray(b_ih + b_hh)
        wih_k = np.zeros((G, H8), np.float32)
        whh_k = np.zeros((G, H8), np.float32)
        b_k = np.zeros((G, 1), np.float32)
        for gk, gp in enumerate(pt_gate_of_kernel):
            scale = 0.5 if gk < 3 else 1.0      # fold sigmoid's x/2 into params
            rows = slice(gp * H, (gp + 1) * H)
            wih_k[gk * H8:gk * H8 + H, :in_size] = scale * w_ih_np[rows, :]
            whh_k[gk * H8:gk * H8 + H, :H] = scale * w_hh_np[rows, :]
            b_k[gk * H8:gk * H8 + H, 0] = scale * b_np[rows]
        wih_layers.append(wih_k)
        whh_layers.append(whh_k)
        b_layers.append(b_k)

    fc_stdv = 1.0 / np.sqrt(H)
    fc_w = jax.random.uniform(ks[k_idx], (FC_OUT, H),
                              minval=-fc_stdv, maxval=fc_stdv,
                              dtype=jnp.float32); k_idx += 1
    fc_b = jax.random.uniform(ks[k_idx], (FC_OUT,),
                              minval=-fc_stdv, maxval=fc_stdv,
                              dtype=jnp.float32)
    fcw_k = np.zeros((H8, H8), np.float32)
    fcw_k[0, :H] = np.asarray(fc_w)[0, :]
    fcb_k = np.asarray(fc_b).reshape(1, 1)

    kernel_params = (jnp.asarray(np.stack(wih_layers)),
                     jnp.asarray(np.stack(whh_layers)),
                     jnp.asarray(np.stack(b_layers)),
                     jnp.asarray(fcw_k),
                     jnp.asarray(fcb_k))
    raw_params = (raw_layers, (fc_w, fc_b))
    return kernel_params, raw_params


def ref_forward(x, raw_params):
    """Pure-JAX reference using PyTorch gate layout (i, f, g, o)."""
    lstm_layers, (fc_w, fc_b) = raw_params
    B, T, _ = x.shape
    seq = x.astype(jnp.float32)
    for (w_ih, w_hh, b_ih, b_hh) in lstm_layers:
        h = jnp.zeros((B, H), jnp.float32)
        c = jnp.zeros((B, H), jnp.float32)
        outs = []
        for t in range(T):
            gates = seq[:, t, :] @ w_ih.T + h @ w_hh.T + b_ih + b_hh
            i = jax.nn.sigmoid(gates[:, 0:H])
            f = jax.nn.sigmoid(gates[:, H:2 * H])
            g = jnp.tanh(gates[:, 2 * H:3 * H])
            o = jax.nn.sigmoid(gates[:, 3 * H:4 * H])
            c = f * c + i * g
            h = o * jnp.tanh(c)
            outs.append(h)
        seq = jnp.stack(outs, axis=1)
    out = seq[:, -1, :] @ fc_w.T + fc_b
    return out.reshape(-1, 1, 1)


if __name__ == "__main__":
    key = jax.random.PRNGKey(0)
    pkey, xkey = jax.random.split(key)
    kernel_params, raw_params = init_params(pkey)

    B, T = 2, 8
    x = jax.random.normal(xkey, (B, T, 1), dtype=jnp.float32)

    out = jax.block_until_ready(net_forward(x, kernel_params))

    ref = ref_forward(x, raw_params)
    np.testing.assert_allclose(np.asarray(out), np.asarray(ref),
                               rtol=1e-3, atol=1e-3)
    assert out.shape == (B, 1, 1)
    print("KERNEL_OK")
</pallas_src>

<mosaic_0001>
module attributes {stable_mosaic.version = 11 : i64} {
  func.func @lstm_fc_kernel(%arg0: i32, %arg1: memref<1x8x1024xf32, #tpu.memory_space<vmem>>, %arg2: memref<3x32x8xf32, #tpu.memory_space<vmem>>, %arg3: memref<3x32x8xf32, #tpu.memory_space<vmem>>, %arg4: memref<3x32x1xf32, #tpu.memory_space<vmem>>, %arg5: memref<8x8xf32, #tpu.memory_space<vmem>>, %arg6: memref<1x1xf32, #tpu.memory_space<vmem>>, %arg7: memref<1x8x128xf32, #tpu.memory_space<vmem>>, %arg8: memref<8x1024xf32, #tpu.memory_space<vmem>>, %arg9: memref<32x1024xf32, #tpu.memory_space<vmem>>) attributes {dimension_semantics = [#tpu.dimension_semantics<parallel>], iteration_bounds = array<i64: 1>, scalar_prefetch = 0 : i64, scratch_operands = 2 : i64, tpu.core_type = #tpu.core_type<tc>, window_params = [{transform_indices = @transform_0, window_bounds = array<i64: 1, 8, 1024>}, {pipeline_mode = #tpu.pipeline_mode<synchronous>, transform_indices = @transform_1, window_bounds = array<i64: 3, 32, 8>}, {pipeline_mode = #tpu.pipeline_mode<synchronous>, transform_indices = @transform_2, window_bounds = array<i64: 3, 32, 8>}, {pipeline_mode = #tpu.pipeline_mode<synchronous>, transform_indices = @transform_3, window_bounds = array<i64: 3, 32, 1>}, {pipeline_mode = #tpu.pipeline_mode<synchronous>, transform_indices = @transform_4, window_bounds = array<i64: 8, 8>}, {pipeline_mode = #tpu.pipeline_mode<synchronous>, transform_indices = @transform_5, window_bounds = array<i64: 1, 1>}, {transform_indices = @transform_6, window_bounds = array<i64: 1, 8, 128>}]} {
    %c0 = arith.constant 0 : index
    %c0_0 = arith.constant 0 : index
    %c0_1 = arith.constant 0 : index
    %0 = vector.load %arg2[%c0, %c0_0, %c0_1] : memref<3x32x8xf32, #tpu.memory_space<vmem>>, vector<1x32x8xf32>
    %1 = vector.shape_cast %0 : vector<1x32x8xf32> to vector<32x8xf32>
    %c0_2 = arith.constant 0 : index
    %c0_3 = arith.constant 0 : index
    %c0_4 = arith.constant 0 : index
    %2 = vector.load %arg1[%c0_2, %c0_3, %c0_4] : memref<1x8x1024xf32, #tpu.memory_space<vmem>>, vector<1x8x1024xf32>
    %3 = vector.shape_cast %2 : vector<1x8x1024xf32> to vector<8x1024xf32>
    %cst = arith.constant dense<0.000000e+00> : vector<32x1024xf32>
    %4 = tpu.matmul %1, %3, %cst {dimension_numbers = #tpu.dot_dimension_numbers<[1], [0], [0], [1], [0, 0, 1, 1], [], []>} : vector<32x8xf32>, vector<8x1024xf32>, vector<32x1024xf32> -> vector<32x1024xf32>
    %c0_5 = arith.constant 0 : index
    %c0_6 = arith.constant 0 : index
    %c0_7 = arith.constant 0 : index
    %5 = vector.load %arg4[%c0_5, %c0_6, %c0_7] : memref<3x32x1xf32, #tpu.memory_space<vmem>>, vector<1x32x1xf32>
    %6 = vector.shape_cast %5 : vector<1x32x1xf32> to vector<32x1xf32>
    %7 = vector.broadcast %6 : vector<32x1xf32> to vector<32x1024xf32>
    %8 = arith.addf %4, %7 : vector<32x1024xf32>
    %c0_8 = arith.constant 0 : index
    %c0_9 = arith.constant 0 : index
    %9 = vector.load %arg9[%c0_8, %c0_9] : memref<32x1024xf32, #tpu.memory_space<vmem>>, vector<32x1024xf32>
    tpu.vector_store %arg9[%c0_8, %c0_9], %8 {strides = array<i32>} : memref<32x1024xf32, #tpu.memory_space<vmem>>, vector<32x1024xf32>,
    %c0_10 = arith.constant 0 : index
    %c0_11 = arith.constant 0 : index
    %c0_12 = arith.constant 0 : index
    %10 = vector.load %arg3[%c0_10, %c0_11, %c0_12] : memref<3x32x8xf32, #tpu.memory_space<vmem>>, vector<1x32x8xf32>
    %11 = vector.shape_cast %10 : vector<1x32x8xf32> to vector<32x8xf32>
    %12 = vector.extract_strided_slice %11 {offsets = [0, 0], sizes = [32, 1], strides = [1, 1]} : vector<32x8xf32> to vector<32x1xf32>
    %13 = vector.shape_cast %12 : vector<32x1xf32> to vector<32x1xf32>
    %14 = vector.broadcast %13 : vector<32x1xf32> to vector<32x128xf32>
    %15 = vector.extract_strided_slice %11 {offsets = [0, 1], sizes = [32, 1], strides = [1, 1]} : vector<32x8xf32> to vector<32x1xf32>
    %16 = vector.shape_cast %15 : vector<32x1xf32> to vector<32x1xf32>
    %17 = vector.broadcast %16 : vector<32x1xf32> to vector<32x128xf32>
    %18 = vector.extract_strided_slice %11 {offsets = [0, 2], sizes = [32, 1], strides = [1, 1]} : vector<32x8xf32> to vector<32x1xf32>
    %19 = vector.shape_cast %18 : vector<32x1xf32> to vector<32x1xf32>
    %20 = vector.broadcast %19 : vector<32x1xf32> to vector<32x128xf32>
    %21 = vector.extract_strided_slice %11 {offsets = [0, 3], sizes = [32, 1], strides = [1, 1]} : vector<32x8xf32> to vector<32x1xf32>
    %22 = vector.shape_cast %21 : vector<32x1xf32> to vector<32x1xf32>
    %23 = vector.broadcast %22 : vector<32x1xf32> to vector<32x128xf32>
    %24 = vector.extract_strided_slice %11 {offsets = [0, 4], sizes = [32, 1], strides = [1, 1]} : vector<32x8xf32> to vector<32x1xf32>
    %25 = vector.shape_cast %24 : vector<32x1xf32> to vector<32x1xf32>
    %26 = vector.broadcast %25 : vector<32x1xf32> to vector<32x128xf32>
    %27 = vector.extract_strided_slice %11 {offsets = [0, 5], sizes = [32, 1], strides = [1, 1]} : vector<32x8xf32> to vector<32x1xf32>
    %28 = vector.shape_cast %27 : vector<32x1xf32> to vector<32x1xf32>
    %29 = vector.broadcast %28 : vector<32x1xf32> to vector<32x128xf32>
    %cst_13 = arith.constant 0.000000e+00 : f32
    %30 = vector.broadcast %cst_13 : f32 to vector<8x128xf32>
    %c0_14 = arith.constant 0 : index
    %c0_15 = arith.constant 0 : index
    %31 = vector.load %arg9[%c0_14, %c0_15] : memref<32x1024xf32, #tpu.memory_space<vmem>>, vector<32x128xf32>
    %32 = math.tanh %31 : vector<32x128xf32>
    %33 = vector.extract_strided_slice %32 {offsets = [0, 0], sizes = [8, 128], strides = [1, 1]} : vector<32x128xf32> to vector<8x128xf32>
    %cst_16 = arith.constant 5.000000e-01 : f32
    %34 = vector.broadcast %cst_16 : f32 to vector<8x128xf32>
    %35 = arith.mulf %33, %34 : vector<8x128xf32>
    %cst_17 = arith.constant 5.000000e-01 : f32
    %36 = vector.broadcast %cst_17 : f32 to vector<8x128xf32>
    %37 = arith.addf %35, %36 : vector<8x128xf32>
    %38 = vector.extract_strided_slice %32 {offsets = [8, 0], sizes = [8, 128], strides = [1, 1]} : vector<32x128xf32> to vector<8x128xf32>
    %cst_18 = arith.constant 5.000000e-01 : f32
    %39 = vector.broadcast %cst_18 : f32 to vector<8x128xf32>
    %40 = arith.mulf %38, %39 : vector<8x128xf32>
    %cst_19 = arith.constant 5.000000e-01 : f32
    %41 = vector.broadcast %cst_19 : f32 to vector<8x128xf32>
    %42 = arith.addf %40, %41 : vector<8x128xf32>
    %43 = vector.extract_strided_slice %32 {offsets = [16, 0], sizes = [8, 128], strides = [1, 1]} : vector<32x128xf32> to vector<8x128xf32>
    %cst_20 = arith.constant 5.000000e-01 : f32
    %44 = vector.broadcast %cst_20 : f32 to vector<8x128xf32>
    %45 = arith.mulf %43, %44 : vector<8x128xf32>
    %cst_21 = arith.constant 5.000000e-01 : f32
    %46 = vector.broadcast %cst_21 : f32 to vector<8x128xf32>
    %47 = arith.addf %45, %46 : vector<8x128xf32>
    %48 = vector.extract_strided_slice %32 {offsets = [24, 0], sizes = [8, 128], strides = [1, 1]} : vector<32x128xf32> to vector<8x128xf32>
    %49 = arith.mulf %42, %30 : vector<8x128xf32>
    %50 = arith.mulf %37, %48 : vector<8x128xf32>
    %51 = arith.addf %49, %50 : vector<8x128xf32>
    %52 = math.tanh %51 : vector<8x128xf32>
    %53 = arith.mulf %47, %52 : vector<8x128xf32>
    %c0_22 = arith.constant 0 : index
    %c0_23 = arith.constant 0 : index
    %54 = vector.load %arg8[%c0_22, %c0_23] : memref<8x1024xf32, #tpu.memory_space<vmem>>, vector<8x128xf32>
    tpu.vector_store %arg8[%c0_22, %c0_23], %53 {strides = array<i32>} : memref<8x1024xf32, #tpu.memory_space<vmem>>, vector<8x128xf32>,
    %c0_24 = arith.constant 0 : index
    %c128 = arith.constant 128 : index
    %55 = vector.load %arg9[%c0_24, %c128] : memref<32x1024xf32, #tpu.memory_space<vmem>>, vector<32x128xf32>
    %56 = vector.extract_strided_slice %53 {offsets = [0, 0], sizes = [1, 128], strides = [1, 1]} : vector<8x128xf32> to vector<1x128xf32>
    %57 = vector.shape_cast %56 : vector<1x128xf32> to vector<1x128xf32>
    %58 = vector.broadcast %57 : vector<1x128xf32> to vector<32x128xf32>
    %59 = arith.mulf %14, %58 : vector<32x128xf32>
    %60 = vector.extract_strided_slice %53 {offsets = [1, 0], sizes = [1, 128], strides = [1, 1]} : vector<8x128xf32> to vector<1x128xf32>
    %61 = vector.shape_cast %60 : vector<1x128xf32> to vector<1x128xf32>
    %62 = vector.broadcast %61 : vector<1x128xf32> to vector<32x128xf32>
    %63 = arith.mulf %17, %62 : vector<32x128xf32>
    %64 = arith.addf %59, %63 : vector<32x128xf32>
    %65 = vector.extract_strided_slice %53 {offsets = [2, 0], sizes = [1, 128], strides = [1, 1]} : vector<8x128xf32> to vector<1x128xf32>
    %66 = vector.shape_cast %65 : vector<1x128xf32> to vector<1x128xf32>
    %67 = vector.broadcast %66 : vector<1x128xf32> to vector<32x128xf32>
    %68 = arith.mulf %20, %67 : vector<32x128xf32>
    %69 = vector.extract_strided_slice %53 {offsets = [3, 0], sizes = [1, 128], strides = [1, 1]} : vector<8x128xf32> to vector<1x128xf32>
    %70 = vector.shape_cast %69 : vector<1x128xf32> to vector<1x128xf32>
    %71 = vector.broadcast %70 : vector<1x128xf32> to vector<32x128xf32>
    %72 = arith.mulf %23, %71 : vector<32x128xf32>
    %73 = arith.addf %68, %72 : vector<32x128xf32>
    %74 = arith.addf %64, %73 : vector<32x128xf32>
    %75 = vector.extract_strided_slice %53 {offsets = [4, 0], sizes = [1, 128], strides = [1, 1]} : vector<8x128xf32> to vector<1x128xf32>
    %76 = vector.shape_cast %75 : vector<1x128xf32> to vector<1x128xf32>
    %77 = vector.broadcast %76 : vector<1x128xf32> to vector<32x128xf32>
    %78 = arith.mulf %26, %77 : vector<32x128xf32>
    %79 = vector.extract_strided_slice %53 {offsets = [5, 0], sizes = [1, 128], strides = [1, 1]} : vector<8x128xf32> to vector<1x128xf32>
    %80 = vector.shape_cast %79 : vector<1x128xf32> to vector<1x128xf32>
    %81 = vector.broadcast %80 : vector<1x128xf32> to vector<32x128xf32>
    %82 = arith.mulf %29, %81 : vector<32x128xf32>
    %83 = arith.addf %78, %82 : vector<32x128xf32>
    %84 = arith.addf %74, %83 : vector<32x128xf32>
    %85 = arith.addf %55, %84 : vector<32x128xf32>
    %86 = math.tanh %85 : vector<32x128xf32>
    %87 = vector.extract_strided_slice %86 {offsets = [0, 0], sizes = [8, 128], strides = [1, 1]} : vector<32x128xf32> to vector<8x128xf32>
    %cst_25 = arith.constant 5.000000e-01 : f32
    %88 = vector.broadcast %cst_25 : f32 to vector<8x128xf32>
    %89 = arith.mulf %87, %88 : vector<8x128xf32>
    %cst_26 = arith.constant 5.000000e-01 : f32
    %90 = vector.broadcast %cst_26 : f32 to vector<8x128xf32>
    %91 = arith.addf %89, %90 : vector<8x128xf32>
    %92 = vector.extract_strided_slice %86 {offsets = [8, 0], sizes = [8, 128], strides = [1, 1]} : vector<32x128xf32> to vector<8x128xf32>
    %cst_27 = arith.constant 5.000000e-01 : f32
    %93 = vector.broadcast %cst_27 : f32 to vector<8x128xf32>
    %94 = arith.mulf %92, %93 : vector<8x128xf32>
    %cst_28 = arith.constant 5.000000e-01 : f32
    %95 = vector.broadcast %cst_28 : f32 to vector<8x128xf32>
    %96 = arith.addf %94, %95 : vector<8x128xf32>
    %97 = vector.extract_strided_slice %86 {offsets = [16, 0], sizes = [8, 128], strides = [1, 1]} : vector<32x128xf32> to vector<8x128xf32>
    %cst_29 = arith.constant 5.000000e-01 : f32
    %98 = vector.broadcast %cst_29 : f32 to vector<8x128xf32>
    %99 = arith.mulf %97, %98 : vector<8x128xf32>
    %cst_30 = arith.constant 5.000000e-01 : f32
    %100 = vector.broadcast %cst_30 : f32 to vector<8x128xf32>
    %101 = arith.addf %99, %100 : vector<8x128xf32>
    %102 = vector.extract_strided_slice %86 {offsets = [24, 0], sizes = [8, 128], strides = [1, 1]} : vector<32x128xf32> to vector<8x128xf32>
    %103 = arith.mulf %96, %51 : vector<8x128xf32>
    %104 = arith.mulf %91, %102 : vector<8x128xf32>
    %105 = arith.addf %103, %104 : vector<8x128xf32>
    %106 = math.tanh %105 : vector<8x128xf32>
    %107 = arith.mulf %101, %106 : vector<8x128xf32>
    %c0_31 = arith.constant 0 : index
    %c128_32 = arith.constant 128 : index
    %108 = vector.load %arg8[%c0_31, %c128_32] : memref<8x1024xf32, #tpu.memory_space<vmem>>, vector<8x128xf32>
    tpu.vector_store %arg8[%c0_31, %c128_32], %107 {strides = array<i32>} : memref<8x1024xf32, #tpu.memory_space<vmem>>, vector<8x128xf32>,
    %c0_33 = arith.constant 0 : index
    %c256 = arith.constant 256 : index
    %109 = vector.load %arg9[%c0_33, %c256] : memref<32x1024xf32, #tpu.memory_space<vmem>>, vector<32x128xf32>
    %110 = vector.extract_strided_slice %107 {offsets = [0, 0], sizes = [1, 128], strides = [1, 1]} : vector<8x128xf32> to vector<1x128xf32>
    %111 = vector.shape_cast %110 : vector<1x128xf32> to vector<1x128xf32>
    %112 = vector.broadcast %111 : vector<1x128xf32> to vector<32x128xf32>
    %113 = arith.mulf %14, %112 : vector<32x128xf32>
    %114 = vector.extract_strided_slice %107 {offsets = [1, 0], sizes = [1, 128], strides = [1, 1]} : vector<8x128xf32> to vector<1x128xf32>
    %115 = vector.shape_cast %114 : vector<1x128xf32> to vector<1x128xf32>
    %116 = vector.broadcast %115 : vector<1x128xf32> to vector<32x128xf32>
    %117 = arith.mulf %17, %116 : vector<32x128xf32>
    %118 = arith.addf %113, %117 : vector<32x128xf32>
    %119 = vector.extract_strided_slice %107 {offsets = [2, 0], sizes = [1, 128], strides = [1, 1]} : vector<8x128xf32> to vector<1x128xf32>
    %120 = vector.shape_cast %119 : vector<1x128xf32> to vector<1x128xf32>
    %121 = vector.broadcast %120 : vector<1x128xf32> to vector<32x128xf32>
    %122 = arith.mulf %20, %121 : vector<32x128xf32>
    %123 = vector.extract_strided_slice %107 {offsets = [3, 0], sizes = [1, 128], strides = [1, 1]} : vector<8x128xf32> to vector<1x128xf32>
    %124 = vector.shape_cast %123 : vector<1x128xf32> to vector<1x128xf32>
    %125 = vector.broadcast %124 : vector<1x128xf32> to vector<32x128xf32>
    %126 = arith.mulf %23, %125 : vector<32x128xf32>
    %127 = arith.addf %122, %126 : vector<32x128xf32>
    %128 = arith.addf %118, %127 : vector<32x128xf32>
    %129 = vector.extract_strided_slice %107 {offsets = [4, 0], sizes = [1, 128], strides = [1, 1]} : vector<8x128xf32> to vector<1x128xf32>
    %130 = vector.shape_cast %129 : vector<1x128xf32> to vector<1x128xf32>
    %131 = vector.broadcast %130 : vector<1x128xf32> to vector<32x128xf32>
    %132 = arith.mulf %26, %131 : vector<32x128xf32>
    %133 = vector.extract_strided_slice %107 {offsets = [5, 0], sizes = [1, 128], strides = [1, 1]} : vector<8x128xf32> to vector<1x128xf32>
    %134 = vector.shape_cast %133 : vector<1x128xf32> to vector<1x128xf32>
    %135 = vector.broadcast %134 : vector<1x128xf32> to vector<32x128xf32>
    %136 = arith.mulf %29, %135 : vector<32x128xf32>
    %137 = arith.addf %132, %136 : vector<32x128xf32>
    %138 = arith.addf %128, %137 : vector<32x128xf32>
    %139 = arith.addf %109, %138 : vector<32x128xf32>
    %140 = math.tanh %139 : vector<32x128xf32>
    %141 = vector.extract_strided_slice %140 {offsets = [0, 0], sizes = [8, 128], strides = [1, 1]} : vector<32x128xf32> to vector<8x128xf32>
    %cst_34 = arith.constant 5.000000e-01 : f32
    %142 = vector.broadcast %cst_34 : f32 to vector<8x128xf32>
    %143 = arith.mulf %141, %142 : vector<8x128xf32>
    %cst_35 = arith.constant 5.000000e-01 : f32
    %144 = vector.broadcast %cst_35 : f32 to vector<8x128xf32>
    %145 = arith.addf %143, %144 : vector<8x128xf32>
    %146 = vector.extract_strided_slice %140 {offsets = [8, 0], sizes = [8, 128], strides = [1, 1]} : vector<32x128xf32> to vector<8x128xf32>
    %cst_36 = arith.constant 5.000000e-01 : f32
    %147 = vector.broadcast %cst_36 : f32 to vector<8x128xf32>
    %148 = arith.mulf %146, %147 : vector<8x128xf32>
    %cst_37 = arith.constant 5.000000e-01 : f32
    %149 = vector.broadcast %cst_37 : f32 to vector<8x128xf32>
    %150 = arith.addf %148, %149 : vector<8x128xf32>
    %151 = vector.extract_strided_slice %140 {offsets = [16, 0], sizes = [8, 128], strides = [1, 1]} : vector<32x128xf32> to vector<8x128xf32>
    %cst_38 = arith.constant 5.000000e-01 : f32
    %152 = vector.broadcast %cst_38 : f32 to vector<8x128xf32>
    %153 = arith.mulf %151, %152 : vector<8x128xf32>
    %cst_39 = arith.constant 5.000000e-01 : f32
    %154 = vector.broadcast %cst_39 : f32 to vector<8x128xf32>
    %155 = arith.addf %153, %154 : vector<8x128xf32>
    %156 = vector.extract_strided_slice %140 {offsets = [24, 0], sizes = [8, 128], strides = [1, 1]} : vector<32x128xf32> to vector<8x128xf32>
    %157 = arith.mulf %150, %105 : vector<8x128xf32>
    %158 = arith.mulf %145, %156 : vector<8x128xf32>
    %159 = arith.addf %157, %158 : vector<8x128xf32>
    %160 = math.tanh %159 : vector<8x128xf32>
    %161 = arith.mulf %155, %160 : vector<8x128xf32>
    %c0_40 = arith.constant 0 : index
    %c256_41 = arith.constant 256 : index
    %162 = vector.load %arg8[%c0_40, %c256_41] : memref<8x1024xf32, #tpu.memory_space<vmem>>, vector<8x128xf32>
    tpu.vector_store %arg8[%c0_40, %c256_41], %161 {strides = array<i32>} : memref<8x1024xf32, #tpu.memory_space<vmem>>, vector<8x128xf32>,
    %c0_42 = arith.constant 0 : index
    %c384 = arith.constant 384 : index
    %163 = vector.load %arg9[%c0_42, %c384] : memref<32x1024xf32, #tpu.memory_space<vmem>>, vector<32x128xf32>
    %164 = vector.extract_strided_slice %161 {offsets = [0, 0], sizes = [1, 128], strides = [1, 1]} : vector<8x128xf32> to vector<1x128xf32>
    %165 = vector.shape_cast %164 : vector<1x128xf32> to vector<1x128xf32>
    %166 = vector.broadcast %165 : vector<1x128xf32> to vector<32x128xf32>
    %167 = arith.mulf %14, %166 : vector<32x128xf32>
    %168 = vector.extract_strided_slice %161 {offsets = [1, 0], sizes = [1, 128], strides = [1, 1]} : vector<8x128xf32> to vector<1x128xf32>
    %169 = vector.shape_cast %168 : vector<1x128xf32> to vector<1x128xf32>
    %170 = vector.broadcast %169 : vector<1x128xf32> to vector<32x128xf32>
    %171 = arith.mulf %17, %170 : vector<32x128xf32>
    %172 = arith.addf %167, %171 : vector<32x128xf32>
    %173 = vector.extract_strided_slice %161 {offsets = [2, 0], sizes = [1, 128], strides = [1, 1]} : vector<8x128xf32> to vector<1x128xf32>
    %174 = vector.shape_cast %173 : vector<1x128xf32> to vector<1x128xf32>
    %175 = vector.broadcast %174 : vector<1x128xf32> to vector<32x128xf32>
    %176 = arith.mulf %20, %175 : vector<32x128xf32>
    %177 = vector.extract_strided_slice %161 {offsets = [3, 0], sizes = [1, 128], strides = [1, 1]} : vector<8x128xf32> to vector<1x128xf32>
    %178 = vector.shape_cast %177 : vector<1x128xf32> to vector<1x128xf32>
    %179 = vector.broadcast %178 : vector<1x128xf32> to vector<32x128xf32>
    %180 = arith.mulf %23, %179 : vector<32x128xf32>
    %181 = arith.addf %176, %180 : vector<32x128xf32>
    %182 = arith.addf %172, %181 : vector<32x128xf32>
    %183 = vector.extract_strided_slice %161 {offsets = [4, 0], sizes = [1, 128], strides = [1, 1]} : vector<8x128xf32> to vector<1x128xf32>
    %184 = vector.shape_cast %183 : vector<1x128xf32> to vector<1x128xf32>
    %185 = vector.broadcast %184 : vector<1x128xf32> to vector<32x128xf32>
    %186 = arith.mulf %26, %185 : vector<32x128xf32>
    %187 = vector.extract_strided_slice %161 {offsets = [5, 0], sizes = [1, 128], strides = [1, 1]} : vector<8x128xf32> to vector<1x128xf32>
    %188 = vector.shape_cast %187 : vector<1x128xf32> to vector<1x128xf32>
    %189 = vector.broadcast %188 : vector<1x128xf32> to vector<32x128xf32>
    %190 = arith.mulf %29, %189 : vector<32x128xf32>
    %191 = arith.addf %186, %190 : vector<32x128xf32>
    %192 = arith.addf %182, %191 : vector<32x128xf32>
    %193 = arith.addf %163, %192 : vector<32x128xf32>
    %194 = math.tanh %193 : vector<32x128xf32>
    %195 = vector.extract_strided_slice %194 {offsets = [0, 0], sizes = [8, 128], strides = [1, 1]} : vector<32x128xf32> to vector<8x128xf32>
    %cst_43 = arith.constant 5.000000e-01 : f32
    %196 = vector.broadcast %cst_43 : f32 to vector<8x128xf32>
    %197 = arith.mulf %195, %196 : vector<8x128xf32>
    %cst_44 = arith.constant 5.000000e-01 : f32
    %198 = vector.broadcast %cst_44 : f32 to vector<8x128xf32>
    %199 = arith.addf %197, %198 : vector<8x128xf32>
    %200 = vector.extract_strided_slice %194 {offsets = [8, 0], sizes = [8, 128], strides = [1, 1]} : vector<32x128xf32> to vector<8x128xf32>
    %cst_45 = arith.constant 5.000000e-01 : f32
    %201 = vector.broadcast %cst_45 : f32 to vector<8x128xf32>
    %202 = arith.mulf %200, %201 : vector<8x128xf32>
    %cst_46 = arith.constant 5.000000e-01 : f32
    %203 = vector.broadcast %cst_46 : f32 to vector<8x128xf32>
    %204 = arith.addf %202, %203 : vector<8x128xf32>
    %205 = vector.extract_strided_slice %194 {offsets = [16, 0], sizes = [8, 128], strides = [1, 1]} : vector<32x128xf32> to vector<8x128xf32>
    %cst_47 = arith.constant 5.000000e-01 : f32
    %206 = vector.broadcast %cst_47 : f32 to vector<8x128xf32>
    %207 = arith.mulf %205, %206 : vector<8x128xf32>
    %cst_48 = arith.constant 5.000000e-01 : f32
    %208 = vector.broadcast %cst_48 : f32 to vector<8x128xf32>
    %209 = arith.addf %207, %208 : vector<8x128xf32>
    %210 = vector.extract_strided_slice %194 {offsets = [24, 0], sizes = [8, 128], strides = [1, 1]} : vector<32x128xf32> to vector<8x128xf32>
    %211 = arith.mulf %204, %159 : vector<8x128xf32>
    %212 = arith.mulf %199, %210 : vector<8x128xf32>
    %213 = arith.addf %211, %212 : vector<8x128xf32>
    %214 = math.tanh %213 : vector<8x128xf32>
    %215 = arith.mulf %209, %214 : vector<8x128xf32>
    %c0_49 = arith.constant 0 : index
    %c384_50 = arith.constant 384 : index
    %216 = vector.load %arg8[%c0_49, %c384_50] : memref<8x1024xf32, #tpu.memory_space<vmem>>, vector<8x128xf32>
    tpu.vector_store %arg8[%c0_49, %c384_50], %215 {strides = array<i32>} : memref<8x1024xf32, #tpu.memory_space<vmem>>, vector<8x128xf32>,
    %c0_51 = arith.constant 0 : index
    %c512 = arith.constant 512 : index
    %217 = vector.load %arg9[%c0_51, %c512] : memref<32x1024xf32, #tpu.memory_space<vmem>>, vector<32x128xf32>
    %218 = vector.extract_strided_slice %215 {offsets = [0, 0], sizes = [1, 128], strides = [1, 1]} : vector<8x128xf32> to vector<1x128xf32>
    %219 = vector.shape_cast %218 : vector<1x128xf32> to vector<1x128xf32>
    %220 = vector.broadcast %219 : vector<1x128xf32> to vector<32x128xf32>
    %221 = arith.mulf %14, %220 : vector<32x128xf32>
    %222 = vector.extract_strided_slice %215 {offsets = [1, 0], sizes = [1, 128], strides = [1, 1]} : vector<8x128xf32> to vector<1x128xf32>
    %223 = vector.shape_cast %222 : vector<1x128xf32> to vector<1x128xf32>
    %224 = vector.broadcast %223 : vector<1x128xf32> to vector<32x128xf32>
    %225 = arith.mulf %17, %224 : vector<32x128xf32>
    %226 = arith.addf %221, %225 : vector<32x128xf32>
    %227 = vector.extract_strided_slice %215 {offsets = [2, 0], sizes = [1, 128], strides = [1, 1]} : vector<8x128xf32> to vector<1x128xf32>
    %228 = vector.shape_cast %227 : vector<1x128xf32> to vector<1x128xf32>
    %229 = vector.broadcast %228 : vector<1x128xf32> to vector<32x128xf32>
    %230 = arith.mulf %20, %229 : vector<32x128xf32>
    %231 = vector.extract_strided_slice %215 {offsets = [3, 0], sizes = [1, 128], strides = [1, 1]} : vector<8x128xf32> to vector<1x128xf32>
    %232 = vector.shape_cast %231 : vector<1x128xf32> to vector<1x128xf32>
    %233 = vector.broadcast %232 : vector<1x128xf32> to vector<32x128xf32>
    %234 = arith.mulf %23, %233 : vector<32x128xf32>
    %235 = arith.addf %230, %234 : vector<32x128xf32>
    %236 = arith.addf %226, %235 : vector<32x128xf32>
    %237 = vector.extract_strided_slice %215 {offsets = [4, 0], sizes = [1, 128], strides = [1, 1]} : vector<8x128xf32> to vector<1x128xf32>
    %238 = vector.shape_cast %237 : vector<1x128xf32> to vector<1x128xf32>
    %239 = vector.broadcast %238 : vector<1x128xf32> to vector<32x128xf32>
    %240 = arith.mulf %26, %239 : vector<32x128xf32>
    %241 = vector.extract_strided_slice %215 {offsets = [5, 0], sizes = [1, 128], strides = [1, 1]} : vector<8x128xf32> to vector<1x128xf32>
    %242 = vector.shape_cast %241 : vector<1x128xf32> to vector<1x128xf32>
    %243 = vector.broadcast %242 : vector<1x128xf32> to vector<32x128xf32>
    %244 = arith.mulf %29, %243 : vector<32x128xf32>
    %245 = arith.addf %240, %244 : vector<32x128xf32>
    %246 = arith.addf %236, %245 : vector<32x128xf32>
    %247 = arith.addf %217, %246 : vector<32x128xf32>
    %248 = math.tanh %247 : vector<32x128xf32>
    %249 = vector.extract_strided_slice %248 {offsets = [0, 0], sizes = [8, 128], strides = [1, 1]} : vector<32x128xf32> to vector<8x128xf32>
    %cst_52 = arith.constant 5.000000e-01 : f32
    %250 = vector.broadcast %cst_52 : f32 to vector<8x128xf32>
    %251 = arith.mulf %249, %250 : vector<8x128xf32>
    %cst_53 = arith.constant 5.000000e-01 : f32
    %252 = vector.broadcast %cst_53 : f32 to vector<8x128xf32>
    %253 = arith.addf %251, %252 : vector<8x128xf32>
    %254 = vector.extract_strided_slice %248 {offsets = [8, 0], sizes = [8, 128], strides = [1, 1]} : vector<32x128xf32> to vector<8x128xf32>
    %cst_54 = arith.constant 5.000000e-01 : f32
    %255 = vector.broadcast %cst_54 : f32 to vector<8x128xf32>
    %256 = arith.mulf %254, %255 : vector<8x128xf32>
    %cst_55 = arith.constant 5.000000e-01 : f32
    %257 = vector.broadcast %cst_55 : f32 to vector<8x128xf32>
    %258 = arith.addf %256, %257 : vector<8x128xf32>
    %259 = vector.extract_strided_slice %248 {offsets = [16, 0], sizes = [8, 128], strides = [1, 1]} : vector<32x128xf32> to vector<8x128xf32>
    %cst_56 = arith.constant 5.000000e-01 : f32
    %260 = vector.broadcast %cst_56 : f32 to vector<8x128xf32>
    %261 = arith.mulf %259, %260 : vector<8x128xf32>
    %cst_57 = arith.constant 5.000000e-01 : f32
    %262 = vector.broadcast %cst_57 : f32 to vector<8x128xf32>
    %263 = arith.addf %261, %262 : vector<8x128xf32>
    %264 = vector.extract_strided_slice %248 {offsets = [24, 0], sizes = [8, 128], strides = [1, 1]} : vector<32x128xf32> to vector<8x128xf32>
    %265 = arith.mulf %258, %213 : vector<8x128xf32>
    %266 = arith.mulf %253, %264 : vector<8x128xf32>
    %267 = arith.addf %265, %266 : vector<8x128xf32>
    %268 = math.tanh %267 : vector<8x128xf32>
    %269 = arith.mulf %263, %268 : vector<8x128xf32>
    %c0_58 = arith.constant 0 : index
    %c512_59 = arith.constant 512 : index
    %270 = vector.load %arg8[%c0_58, %c512_59] : memref<8x1024xf32, #tpu.memory_space<vmem>>, vector<8x128xf32>
    tpu.vector_store %arg8[%c0_58, %c512_59], %269 {strides = array<i32>} : memref<8x1024xf32, #tpu.memory_space<vmem>>, vector<8x128xf32>,
    %c0_60 = arith.constant 0 : index
    %c640 = arith.constant 640 : index
    %271 = vector.load %arg9[%c0_60, %c640] : memref<32x1024xf32, #tpu.memory_space<vmem>>, vector<32x128xf32>
    %272 = vector.extract_strided_slice %269 {offsets = [0, 0], sizes = [1, 128], strides = [1, 1]} : vector<8x128xf32> to vector<1x128xf32>
    %273 = vector.shape_cast %272 : vector<1x128xf32> to vector<1x128xf32>
    %274 = vector.broadcast %273 : vector<1x128xf32> to vector<32x128xf32>
    %275 = arith.mulf %14, %274 : vector<32x128xf32>
    %276 = vector.extract_strided_slice %269 {offsets = [1, 0], sizes = [1, 128], strides = [1, 1]} : vector<8x128xf32> to vector<1x128xf32>
    %277 = vector.shape_cast %276 : vector<1x128xf32> to vector<1x128xf32>
    %278 = vector.broadcast %277 : vector<1x128xf32> to vector<32x128xf32>
    %279 = arith.mulf %17, %278 : vector<32x128xf32>
    %280 = arith.addf %275, %279 : vector<32x128xf32>
    %281 = vector.extract_strided_slice %269 {offsets = [2, 0], sizes = [1, 128], strides = [1, 1]} : vector<8x128xf32> to vector<1x128xf32>
    %282 = vector.shape_cast %281 : vector<1x128xf32> to vector<1x128xf32>
    %283 = vector.broadcast %282 : vector<1x128xf32> to vector<32x128xf32>
    %284 = arith.mulf %20, %283 : vector<32x128xf32>
    %285 = vector.extract_strided_slice %269 {offsets = [3, 0], sizes = [1, 128], strides = [1, 1]} : vector<8x128xf32> to vector<1x128xf32>
    %286 = vector.shape_cast %285 : vector<1x128xf32> to vector<1x128xf32>
    %287 = vector.broadcast %286 : vector<1x128xf32> to vector<32x128xf32>
    %288 = arith.mulf %23, %287 : vector<32x128xf32>
    %289 = arith.addf %284, %288 : vector<32x128xf32>
    %290 = arith.addf %280, %289 : vector<32x128xf32>
    %291 = vector.extract_strided_slice %269 {offsets = [4, 0], sizes = [1, 128], strides = [1, 1]} : vector<8x128xf32> to vector<1x128xf32>
    %292 = vector.shape_cast %291 : vector<1x128xf32> to vector<1x128xf32>
    %293 = vector.broadcast %292 : vector<1x128xf32> to vector<32x128xf32>
    %294 = arith.mulf %26, %293 : vector<32x128xf32>
    %295 = vector.extract_strided_slice %269 {offsets = [5, 0], sizes = [1, 128], strides = [1, 1]} : vector<8x128xf32> to vector<1x128xf32>
    %296 = vector.shape_cast %295 : vector<1x128xf32> to vector<1x128xf32>
    %297 = vector.broadcast %296 : vector<1x128xf32> to vector<32x128xf32>
    %298 = arith.mulf %29, %297 : vector<32x128xf32>
    %299 = arith.addf %294, %298 : vector<32x128xf32>
    %300 = arith.addf %290, %299 : vector<32x128xf32>
    %301 = arith.addf %271, %300 : vector<32x128xf32>
    %302 = math.tanh %301 : vector<32x128xf32>
    %303 = vector.extract_strided_slice %302 {offsets = [0, 0], sizes = [8, 128], strides = [1, 1]} : vector<32x128xf32> to vector<8x128xf32>
    %cst_61 = arith.constant 5.000000e-01 : f32
    %304 = vector.broadcast %cst_61 : f32 to vector<8x128xf32>
    %305 = arith.mulf %303, %304 : vector<8x128xf32>
    %cst_62 = arith.constant 5.000000e-01 : f32
    %306 = vector.broadcast %cst_62 : f32 to vector<8x128xf32>
    %307 = arith.addf %305, %306 : vector<8x128xf32>
    %308 = vector.extract_strided_slice %302 {offsets = [8, 0], sizes = [8, 128], strides = [1, 1]} : vector<32x128xf32> to vector<8x128xf32>
    %cst_63 = arith.constant 5.000000e-01 : f32
    %309 = vector.broadcast %cst_63 : f32 to vector<8x128xf32>
    %310 = arith.mulf %308, %309 : vector<8x128xf32>
    %cst_64 = arith.constant 5.000000e-01 : f32
    %311 = vector.broadcast %cst_64 : f32 to vector<8x128xf32>
    %312 = arith.addf %310, %311 : vector<8x128xf32>
    %313 = vector.extract_strided_slice %302 {offsets = [16, 0], sizes = [8, 128], strides = [1, 1]} : vector<32x128xf32> to vector<8x128xf32>
    %cst_65 = arith.constant 5.000000e-01 : f32
    %314 = vector.broadcast %cst_65 : f32 to vector<8x128xf32>
    %315 = arith.mulf %313, %314 : vector<8x128xf32>
    %cst_66 = arith.constant 5.000000e-01 : f32
    %316 = vector.broadcast %cst_66 : f32 to vector<8x128xf32>
    %317 = arith.addf %315, %316 : vector<8x128xf32>
    %318 = vector.extract_strided_slice %302 {offsets = [24, 0], sizes = [8, 128], strides = [1, 1]} : vector<32x128xf32> to vector<8x128xf32>
    %319 = arith.mulf %312, %267 : vector<8x128xf32>
    %320 = arith.mulf %307, %318 : vector<8x128xf32>
    %321 = arith.addf %319, %320 : vector<8x128xf32>
    %322 = math.tanh %321 : vector<8x128xf32>
    %323 = arith.mulf %317, %322 : vector<8x128xf32>
    %c0_67 = arith.constant 0 : index
    %c640_68 = arith.constant 640 : index
    %324 = vector.load %arg8[%c0_67, %c640_68] : memref<8x1024xf32, #tpu.memory_space<vmem>>, vector<8x128xf32>
    tpu.vector_store %arg8[%c0_67, %c640_68], %323 {strides = array<i32>} : memref<8x1024xf32, #tpu.memory_space<vmem>>, vector<8x128xf32>,
    %c0_69 = arith.constant 0 : index
    %c768 = arith.constant 768 : index
    %325 = vector.load %arg9[%c0_69, %c768] : memref<32x1024xf32, #tpu.memory_space<vmem>>, vector<32x128xf32>
    %326 = vector.extract_strided_slice %323 {offsets = [0, 0], sizes = [1, 128], strides = [1, 1]} : vector<8x128xf32> to vector<1x128xf32>
    %327 = vector.shape_cast %326 : vector<1x128xf32> to vector<1x128xf32>
    %328 = vector.broadcast %327 : vector<1x128xf32> to vector<32x128xf32>
    %329 = arith.mulf %14, %328 : vector<32x128xf32>
    %330 = vector.extract_strided_slice %323 {offsets = [1, 0], sizes = [1, 128], strides = [1, 1]} : vector<8x128xf32> to vector<1x128xf32>
    %331 = vector.shape_cast %330 : vector<1x128xf32> to vector<1x128xf32>
    %332 = vector.broadcast %331 : vector<1x128xf32> to vector<32x128xf32>
    %333 = arith.mulf %17, %332 : vector<32x128xf32>
    %334 = arith.addf %329, %333 : vector<32x128xf32>
    %335 = vector.extract_strided_slice %323 {offsets = [2, 0], sizes = [1, 128], strides = [1, 1]} : vector<8x128xf32> to vector<1x128xf32>
    %336 = vector.shape_cast %335 : vector<1x128xf32> to vector<1x128xf32>
    %337 = vector.broadcast %336 : vector<1x128xf32> to vector<32x128xf32>
    %338 = arith.mulf %20, %337 : vector<32x128xf32>
    %339 = vector.extract_strided_slice %323 {offsets = [3, 0], sizes = [1, 128], strides = [1, 1]} : vector<8x128xf32> to vector<1x128xf32>
    %340 = vector.shape_cast %339 : vector<1x128xf32> to vector<1x128xf32>
    %341 = vector.broadcast %340 : vector<1x128xf32> to vector<32x128xf32>
    %342 = arith.mulf %23, %341 : vector<32x128xf32>
    %343 = arith.addf %338, %342 : vector<32x128xf32>
    %344 = arith.addf %334, %343 : vector<32x128xf32>
    %345 = vector.extract_strided_slice %323 {offsets = [4, 0], sizes = [1, 128], strides = [1, 1]} : vector<8x128xf32> to vector<1x128xf32>
    %346 = vector.shape_cast %345 : vector<1x128xf32> to vector<1x128xf32>
    %347 = vector.broadcast %346 : vector<1x128xf32> to vector<32x128xf32>
    %348 = arith.mulf %26, %347 : vector<32x128xf32>
    %349 = vector.extract_strided_slice %323 {offsets = [5, 0], sizes = [1, 128], strides = [1, 1]} : vector<8x128xf32> to vector<1x128xf32>
    %350 = vector.shape_cast %349 : vector<1x128xf32> to vector<1x128xf32>
    %351 = vector.broadcast %350 : vector<1x128xf32> to vector<32x128xf32>
    %352 = arith.mulf %29, %351 : vector<32x128xf32>
    %353 = arith.addf %348, %352 : vector<32x128xf32>
    %354 = arith.addf %344, %353 : vector<32x128xf32>
    %355 = arith.addf %325, %354 : vector<32x128xf32>
    %356 = math.tanh %355 : vector<32x128xf32>
    %357 = vector.extract_strided_slice %356 {offsets = [0, 0], sizes = [8, 128], strides = [1, 1]} : vector<32x128xf32> to vector<8x128xf32>
    %cst_70 = arith.constant 5.000000e-01 : f32
    %358 = vector.broadcast %cst_70 : f32 to vector<8x128xf32>
    %359 = arith.mulf %357, %358 : vector<8x128xf32>
    %cst_71 = arith.constant 5.000000e-01 : f32
    %360 = vector.broadcast %cst_71 : f32 to vector<8x128xf32>
    %361 = arith.addf %359, %360 : vector<8x128xf32>
    %362 = vector.extract_strided_slice %356 {offsets = [8, 0], sizes = [8, 128], strides = [1, 1]} : vector<32x128xf32> to vector<8x128xf32>
    %cst_72 = arith.constant 5.000000e-01 : f32
    %363 = vector.broadcast %cst_72 : f32 to vector<8x128xf32>
    %364 = arith.mulf %362, %363 : vector<8x128xf32>
    %cst_73 = arith.constant 5.000000e-01 : f32
    %365 = vector.broadcast %cst_73 : f32 to vector<8x128xf32>
    %366 = arith.addf %364, %365 : vector<8x128xf32>
    %367 = vector.extract_strided_slice %356 {offsets = [16, 0], sizes = [8, 128], strides = [1, 1]} : vector<32x128xf32> to vector<8x128xf32>
    %cst_74 = arith.constant 5.000000e-01 : f32
    %368 = vector.broadcast %cst_74 : f32 to vector<8x128xf32>
    %369 = arith.mulf %367, %368 : vector<8x128xf32>
    %cst_75 = arith.constant 5.000000e-01 : f32
    %370 = vector.broadcast %cst_75 : f32 to vector<8x128xf32>
    %371 = arith.addf %369, %370 : vector<8x128xf32>
    %372 = vector.extract_strided_slice %356 {offsets = [24, 0], sizes = [8, 128], strides = [1, 1]} : vector<32x128xf32> to vector<8x128xf32>
    %373 = arith.mulf %366, %321 : vector<8x128xf32>
    %374 = arith.mulf %361, %372 : vector<8x128xf32>
    %375 = arith.addf %373, %374 : vector<8x128xf32>
    %376 = math.tanh %375 : vector<8x128xf32>
    %377 = arith.mulf %371, %376 : vector<8x128xf32>
    %c0_76 = arith.constant 0 : index
    %c768_77 = arith.constant 768 : index
    %378 = vector.load %arg8[%c0_76, %c768_77] : memref<8x1024xf32, #tpu.memory_space<vmem>>, vector<8x128xf32>
    tpu.vector_store %arg8[%c0_76, %c768_77], %377 {strides = array<i32>} : memref<8x1024xf32, #tpu.memory_space<vmem>>, vector<8x128xf32>,
    %c0_78 = arith.constant 0 : index
    %c896 = arith.constant 896 : index
    %379 = vector.load %arg9[%c0_78, %c896] : memref<32x1024xf32, #tpu.memory_space<vmem>>, vector<32x128xf32>
    %380 = vector.extract_strided_slice %377 {offsets = [0, 0], sizes = [1, 128], strides = [1, 1]} : vector<8x128xf32> to vector<1x128xf32>
    %381 = vector.shape_cast %380 : vector<1x128xf32> to vector<1x128xf32>
    %382 = vector.broadcast %381 : vector<1x128xf32> to vector<32x128xf32>
    %383 = arith.mulf %14, %382 : vector<32x128xf32>
    %384 = vector.extract_strided_slice %377 {offsets = [1, 0], sizes = [1, 128], strides = [1, 1]} : vector<8x128xf32> to vector<1x128xf32>
    %385 = vector.shape_cast %384 : vector<1x128xf32> to vector<1x128xf32>
    %386 = vector.broadcast %385 : vector<1x128xf32> to vector<32x128xf32>
    %387 = arith.mulf %17, %386 : vector<32x128xf32>
    %388 = arith.addf %383, %387 : vector<32x128xf32>
    %389 = vector.extract_strided_slice %377 {offsets = [2, 0], sizes = [1, 128], strides = [1, 1]} : vector<8x128xf32> to vector<1x128xf32>
    %390 = vector.shape_cast %389 : vector<1x128xf32> to vector<1x128xf32>
    %391 = vector.broadcast %390 : vector<1x128xf32> to vector<32x128xf32>
    %392 = arith.mulf %20, %391 : vector<32x128xf32>
    %393 = vector.extract_strided_slice %377 {offsets = [3, 0], sizes = [1, 128], strides = [1, 1]} : vector<8x128xf32> to vector<1x128xf32>
    %394 = vector.shape_cast %393 : vector<1x128xf32> to vector<1x128xf32>
    %395 = vector.broadcast %394 : vector<1x128xf32> to vector<32x128xf32>
    %396 = arith.mulf %23, %395 : vector<32x128xf32>
    %397 = arith.addf %392, %396 : vector<32x128xf32>
    %398 = arith.addf %388, %397 : vector<32x128xf32>
    %399 = vector.extract_strided_slice %377 {offsets = [4, 0], sizes = [1, 128], strides = [1, 1]} : vector<8x128xf32> to vector<1x128xf32>
    %400 = vector.shape_cast %399 : vector<1x128xf32> to vector<1x128xf32>
    %401 = vector.broadcast %400 : vector<1x128xf32> to vector<32x128xf32>
    %402 = arith.mulf %26, %401 : vector<32x128xf32>
    %403 = vector.extract_strided_slice %377 {offsets = [5, 0], sizes = [1, 128], strides = [1, 1]} : vector<8x128xf32> to vector<1x128xf32>
    %404 = vector.shape_cast %403 : vector<1x128xf32> to vector<1x128xf32>
    %405 = vector.broadcast %404 : vector<1x128xf32> to vector<32x128xf32>
    %406 = arith.mulf %29, %405 : vector<32x128xf32>
    %407 = arith.addf %402, %406 : vector<32x128xf32>
    %408 = arith.addf %398, %407 : vector<32x128xf32>
    %409 = arith.addf %379, %408 : vector<32x128xf32>
    %410 = math.tanh %409 : vector<32x128xf32>
    %411 = vector.extract_strided_slice %410 {offsets = [0, 0], sizes = [8, 128], strides = [1, 1]} : vector<32x128xf32> to vector<8x128xf32>
    %cst_79 = arith.constant 5.000000e-01 : f32
    %412 = vector.broadcast %cst_79 : f32 to vector<8x128xf32>
    %413 = arith.mulf %411, %412 : vector<8x128xf32>
    %cst_80 = arith.constant 5.000000e-01 : f32
    %414 = vector.broadcast %cst_80 : f32 to vector<8x128xf32>
    %415 = arith.addf %413, %414 : vector<8x128xf32>
    %416 = vector.extract_strided_slice %410 {offsets = [8, 0], sizes = [8, 128], strides = [1, 1]} : vector<32x128xf32> to vector<8x128xf32>
    %cst_81 = arith.constant 5.000000e-01 : f32
    %417 = vector.broadcast %cst_81 : f32 to vector<8x128xf32>
    %418 = arith.mulf %416, %417 : vector<8x128xf32>
    %cst_82 = arith.constant 5.000000e-01 : f32
    %419 = vector.broadcast %cst_82 : f32 to vector<8x128xf32>
    %420 = arith.addf %418, %419 : vector<8x128xf32>
    %421 = vector.extract_strided_slice %410 {offsets = [16, 0], sizes = [8, 128], strides = [1, 1]} : vector<32x128xf32> to vector<8x128xf32>
    %cst_83 = arith.constant 5.000000e-01 : f32
    %422 = vector.broadcast %cst_83 : f32 to vector<8x128xf32>
    %423 = arith.mulf %421, %422 : vector<8x128xf32>
    %cst_84 = arith.constant 5.000000e-01 : f32
    %424 = vector.broadcast %cst_84 : f32 to vector<8x128xf32>
    %425 = arith.addf %423, %424 : vector<8x128xf32>
    %426 = vector.extract_strided_slice %410 {offsets = [24, 0], sizes = [8, 128], strides = [1, 1]} : vector<32x128xf32> to vector<8x128xf32>
    %427 = arith.mulf %420, %375 : vector<8x128xf32>
    %428 = arith.mulf %415, %426 : vector<8x128xf32>
    %429 = arith.addf %427, %428 : vector<8x128xf32>
    %430 = math.tanh %429 : vector<8x128xf32>
    %431 = arith.mulf %425, %430 : vector<8x128xf32>
    %c0_85 = arith.constant 0 : index
    %c896_86 = arith.constant 896 : index
    %432 = vector.load %arg8[%c0_85, %c896_86] : memref<8x1024xf32, #tpu.memory_space<vmem>>, vector<8x128xf32>
    tpu.vector_store %arg8[%c0_85, %c896_86], %431 {strides = array<i32>} : memref<8x1024xf32, #tpu.memory_space<vmem>>, vector<8x128xf32>,
    %c1 = arith.constant 1 : index
    %c0_87 = arith.constant 0 : index
    %c0_88 = arith.constant 0 : index
    %433 = vector.load %arg2[%c1, %c0_87, %c0_88] : memref<3x32x8xf32, #tpu.memory_space<vmem>>, vector<1x32x8xf32>
    %434 = vector.shape_cast %433 : vector<1x32x8xf32> to vector<32x8xf32>
    %c0_89 = arith.constant 0 : index
    %c0_90 = arith.constant 0 : index
    %435 = vector.load %arg8[%c0_89, %c0_90] : memref<8x1024xf32, #tpu.memory_space<vmem>>, vector<8x1024xf32>
    %cst_91 = arith.constant dense<0.000000e+00> : vector<32x1024xf32>
    %436 = tpu.matmul %434, %435, %cst_91 {dimension_numbers = #tpu.dot_dimension_numbers<[1], [0], [0], [1], [0, 0, 1, 1], [], []>} : vector<32x8xf32>, vector<8x1024xf32>, vector<32x1024xf32> -> vector<32x1024xf32>
    %c1_92 = arith.constant 1 : index
    %c0_93 = arith.constant 0 : index
    %c0_94 = arith.constant 0 : index
    %437 = vector.load %arg4[%c1_92, %c0_93, %c0_94] : memref<3x32x1xf32, #tpu.memory_space<vmem>>, vector<1x32x1xf32>
    %438 = vector.shape_cast %437 : vector<1x32x1xf32> to vector<32x1xf32>
    %439 = vector.broadcast %438 : vector<32x1xf32> to vector<32x1024xf32>
    %440 = arith.addf %436, %439 : vector<32x1024xf32>
    %c0_95 = arith.constant 0 : index
    %c0_96 = arith.constant 0 : index
    %441 = vector.load %arg9[%c0_95, %c0_96] : memref<32x1024xf32, #tpu.memory_space<vmem>>, vector<32x1024xf32>
    tpu.vector_store %arg9[%c0_95, %c0_96], %440 {strides = array<i32>} : memref<32x1024xf32, #tpu.memory_space<vmem>>, vector<32x1024xf32>,
    %c1_97 = arith.constant 1 : index
    %c0_98 = arith.constant 0 : index
    %c0_99 = arith.constant 0 : index
    %442 = vector.load %arg3[%c1_97, %c0_98, %c0_99] : memref<3x32x8xf32, #tpu.memory_space<vmem>>, vector<1x32x8xf32>
    %443 = vector.shape_cast %442 : vector<1x32x8xf32> to vector<32x8xf32>
    %444 = vector.extract_strided_slice %443 {offsets = [0, 0], sizes = [32, 1], strides = [1, 1]} : vector<32x8xf32> to vector<32x1xf32>
    %445 = vector.shape_cast %444 : vector<32x1xf32> to vector<32x1xf32>
    %446 = vector.broadcast %445 : vector<32x1xf32> to vector<32x128xf32>
    %447 = vector.extract_strided_slice %443 {offsets = [0, 1], sizes = [32, 1], strides = [1, 1]} : vector<32x8xf32> to vector<32x1xf32>
    %448 = vector.shape_cast %447 : vector<32x1xf32> to vector<32x1xf32>
    %449 = vector.broadcast %448 : vector<32x1xf32> to vector<32x128xf32>
    %450 = vector.extract_strided_slice %443 {offsets = [0, 2], sizes = [32, 1], strides = [1, 1]} : vector<32x8xf32> to vector<32x1xf32>
    %451 = vector.shape_cast %450 : vector<32x1xf32> to vector<32x1xf32>
    %452 = vector.broadcast %451 : vector<32x1xf32> to vector<32x128xf32>
    %453 = vector.extract_strided_slice %443 {offsets = [0, 3], sizes = [32, 1], strides = [1, 1]} : vector<32x8xf32> to vector<32x1xf32>
    %454 = vector.shape_cast %453 : vector<32x1xf32> to vector<32x1xf32>
    %455 = vector.broadcast %454 : vector<32x1xf32> to vector<32x128xf32>
    %456 = vector.extract_strided_slice %443 {offsets = [0, 4], sizes = [32, 1], strides = [1, 1]} : vector<32x8xf32> to vector<32x1xf32>
    %457 = vector.shape_cast %456 : vector<32x1xf32> to vector<32x1xf32>
    %458 = vector.broadcast %457 : vector<32x1xf32> to vector<32x128xf32>
    %459 = vector.extract_strided_slice %443 {offsets = [0, 5], sizes = [32, 1], strides = [1, 1]} : vector<32x8xf32> to vector<32x1xf32>
    %460 = vector.shape_cast %459 : vector<32x1xf32> to vector<32x1xf32>
    %461 = vector.broadcast %460 : vector<32x1xf32> to vector<32x128xf32>
    %cst_100 = arith.constant 0.000000e+00 : f32
    %462 = vector.broadcast %cst_100 : f32 to vector<8x128xf32>
    %c0_101 = arith.constant 0 : index
    %c0_102 = arith.constant 0 : index
    %463 = vector.load %arg9[%c0_101, %c0_102] : memref<32x1024xf32, #tpu.memory_space<vmem>>, vector<32x128xf32>
    %464 = math.tanh %463 : vector<32x128xf32>
    %465 = vector.extract_strided_slice %464 {offsets = [0, 0], sizes = [8, 128], strides = [1, 1]} : vector<32x128xf32> to vector<8x128xf32>
    %cst_103 = arith.constant 5.000000e-01 : f32
    %466 = vector.broadcast %cst_103 : f32 to vector<8x128xf32>
    %467 = arith.mulf %465, %466 : vector<8x128xf32>
    %cst_104 = arith.constant 5.000000e-01 : f32
    %468 = vector.broadcast %cst_104 : f32 to vector<8x128xf32>
    %469 = arith.addf %467, %468 : vector<8x128xf32>
    %470 = vector.extract_strided_slice %464 {offsets = [8, 0], sizes = [8, 128], strides = [1, 1]} : vector<32x128xf32> to vector<8x128xf32>
    %cst_105 = arith.constant 5.000000e-01 : f32
    %471 = vector.broadcast %cst_105 : f32 to vector<8x128xf32>
    %472 = arith.mulf %470, %471 : vector<8x128xf32>
    %cst_106 = arith.constant 5.000000e-01 : f32
    %473 = vector.broadcast %cst_106 : f32 to vector<8x128xf32>
    %474 = arith.addf %472, %473 : vector<8x128xf32>
    %475 = vector.extract_strided_slice %464 {offsets = [16, 0], sizes = [8, 128], strides = [1, 1]} : vector<32x128xf32> to vector<8x128xf32>
    %cst_107 = arith.constant 5.000000e-01 : f32
    %476 = vector.broadcast %cst_107 : f32 to vector<8x128xf32>
    %477 = arith.mulf %475, %476 : vector<8x128xf32>
    %cst_108 = arith.constant 5.000000e-01 : f32
    %478 = vector.broadcast %cst_108 : f32 to vector<8x128xf32>
    %479 = arith.addf %477, %478 : vector<8x128xf32>
    %480 = vector.extract_strided_slice %464 {offsets = [24, 0], sizes = [8, 128], strides = [1, 1]} : vector<32x128xf32> to vector<8x128xf32>
    %481 = arith.mulf %474, %462 : vector<8x128xf32>
    %482 = arith.mulf %469, %480 : vector<8x128xf32>
    %483 = arith.addf %481, %482 : vector<8x128xf32>
    %484 = math.tanh %483 : vector<8x128xf32>
    %485 = arith.mulf %479, %484 : vector<8x128xf32>
    %c0_109 = arith.constant 0 : index
    %c0_110 = arith.constant 0 : index
    %486 = vector.load %arg8[%c0_109, %c0_110] : memref<8x1024xf32, #tpu.memory_space<vmem>>, vector<8x128xf32>
    tpu.vector_store %arg8[%c0_109, %c0_110], %485 {strides = array<i32>} : memref<8x1024xf32, #tpu.memory_space<vmem>>, vector<8x128xf32>,
    %c0_111 = arith.constant 0 : index
    %c128_112 = arith.constant 128 : index
    %487 = vector.load %arg9[%c0_111, %c128_112] : memref<32x1024xf32, #tpu.memory_space<vmem>>, vector<32x128xf32>
    %488 = vector.extract_strided_slice %485 {offsets = [0, 0], sizes = [1, 128], strides = [1, 1]} : vector<8x128xf32> to vector<1x128xf32>
    %489 = vector.shape_cast %488 : vector<1x128xf32> to vector<1x128xf32>
    %490 = vector.broadcast %489 : vector<1x128xf32> to vector<32x128xf32>
    %491 = arith.mulf %446, %490 : vector<32x128xf32>
    %492 = vector.extract_strided_slice %485 {offsets = [1, 0], sizes = [1, 128], strides = [1, 1]} : vector<8x128xf32> to vector<1x128xf32>
    %493 = vector.shape_cast %492 : vector<1x128xf32> to vector<1x128xf32>
    %494 = vector.broadcast %493 : vector<1x128xf32> to vector<32x128xf32>
    %495 = arith.mulf %449, %494 : vector<32x128xf32>
    %496 = arith.addf %491, %495 : vector<32x128xf32>
    %497 = vector.extract_strided_slice %485 {offsets = [2, 0], sizes = [1, 128], strides = [1, 1]} : vector<8x128xf32> to vector<1x128xf32>
    %498 = vector.shape_cast %497 : vector<1x128xf32> to vector<1x128xf32>
    %499 = vector.broadcast %498 : vector<1x128xf32> to vector<32x128xf32>
    %500 = arith.mulf %452, %499 : vector<32x128xf32>
    %501 = vector.extract_strided_slice %485 {offsets = [3, 0], sizes = [1, 128], strides = [1, 1]} : vector<8x128xf32> to vector<1x128xf32>
    %502 = vector.shape_cast %501 : vector<1x128xf32> to vector<1x128xf32>
    %503 = vector.broadcast %502 : vector<1x128xf32> to vector<32x128xf32>
    %504 = arith.mulf %455, %503 : vector<32x128xf32>
    %505 = arith.addf %500, %504 : vector<32x128xf32>
    %506 = arith.addf %496, %505 : vector<32x128xf32>
    %507 = vector.extract_strided_slice %485 {offsets = [4, 0], sizes = [1, 128], strides = [1, 1]} : vector<8x128xf32> to vector<1x128xf32>
    %508 = vector.shape_cast %507 : vector<1x128xf32> to vector<1x128xf32>
    %509 = vector.broadcast %508 : vector<1x128xf32> to vector<32x128xf32>
    %510 = arith.mulf %458, %509 : vector<32x128xf32>
    %511 = vector.extract_strided_slice %485 {offsets = [5, 0], sizes = [1, 128], strides = [1, 1]} : vector<8x128xf32> to vector<1x128xf32>
    %512 = vector.shape_cast %511 : vector<1x128xf32> to vector<1x128xf32>
    %513 = vector.broadcast %512 : vector<1x128xf32> to vector<32x128xf32>
    %514 = arith.mulf %461, %513 : vector<32x128xf32>
    %515 = arith.addf %510, %514 : vector<32x128xf32>
    %516 = arith.addf %506, %515 : vector<32x128xf32>
    %517 = arith.addf %487, %516 : vector<32x128xf32>
    %518 = math.tanh %517 : vector<32x128xf32>
    %519 = vector.extract_strided_slice %518 {offsets = [0, 0], sizes = [8, 128], strides = [1, 1]} : vector<32x128xf32> to vector<8x128xf32>
    %cst_113 = arith.constant 5.000000e-01 : f32
    %520 = vector.broadcast %cst_113 : f32 to vector<8x128xf32>
    %521 = arith.mulf %519, %520 : vector<8x128xf32>
    %cst_114 = arith.constant 5.000000e-01 : f32
    %522 = vector.broadcast %cst_114 : f32 to vector<8x128xf32>
    %523 = arith.addf %521, %522 : vector<8x128xf32>
    %524 = vector.extract_strided_slice %518 {offsets = [8, 0], sizes = [8, 128], strides = [1, 1]} : vector<32x128xf32> to vector<8x128xf32>
    %cst_115 = arith.constant 5.000000e-01 : f32
    %525 = vector.broadcast %cst_115 : f32 to vector<8x128xf32>
    %526 = arith.mulf %524, %525 : vector<8x128xf32>
    %cst_116 = arith.constant 5.000000e-01 : f32
    %527 = vector.broadcast %cst_116 : f32 to vector<8x128xf32>
    %528 = arith.addf %526, %527 : vector<8x128xf32>
    %529 = vector.extract_strided_slice %518 {offsets = [16, 0], sizes = [8, 128], strides = [1, 1]} : vector<32x128xf32> to vector<8x128xf32>
    %cst_117 = arith.constant 5.000000e-01 : f32
    %530 = vector.broadcast %cst_117 : f32 to vector<8x128xf32>
    %531 = arith.mulf %529, %530 : vector<8x128xf32>
    %cst_118 = arith.constant 5.000000e-01 : f32
    %532 = vector.broadcast %cst_118 : f32 to vector<8x128xf32>
    %533 = arith.addf %531, %532 : vector<8x128xf32>
    %534 = vector.extract_strided_slice %518 {offsets = [24, 0], sizes = [8, 128], strides = [1, 1]} : vector<32x128xf32> to vector<8x128xf32>
    %535 = arith.mulf %528, %483 : vector<8x128xf32>
    %536 = arith.mulf %523, %534 : vector<8x128xf32>
    %537 = arith.addf %535, %536 : vector<8x128xf32>
    %538 = math.tanh %537 : vector<8x128xf32>
    %539 = arith.mulf %533, %538 : vector<8x128xf32>
    %c0_119 = arith.constant 0 : index
    %c128_120 = arith.constant 128 : index
    %540 = vector.load %arg8[%c0_119, %c128_120] : memref<8x1024xf32, #tpu.memory_space<vmem>>, vector<8x128xf32>
    tpu.vector_store %arg8[%c0_119, %c128_120], %539 {strides = array<i32>} : memref<8x1024xf32, #tpu.memory_space<vmem>>, vector<8x128xf32>,
    %c0_121 = arith.constant 0 : index
    %c256_122 = arith.constant 256 : index
    %541 = vector.load %arg9[%c0_121, %c256_122] : memref<32x1024xf32, #tpu.memory_space<vmem>>, vector<32x128xf32>
    %542 = vector.extract_strided_slice %539 {offsets = [0, 0], sizes = [1, 128], strides = [1, 1]} : vector<8x128xf32> to vector<1x128xf32>
    %543 = vector.shape_cast %542 : vector<1x128xf32> to vector<1x128xf32>
    %544 = vector.broadcast %543 : vector<1x128xf32> to vector<32x128xf32>
    %545 = arith.mulf %446, %544 : vector<32x128xf32>
    %546 = vector.extract_strided_slice %539 {offsets = [1, 0], sizes = [1, 128], strides = [1, 1]} : vector<8x128xf32> to vector<1x128xf32>
    %547 = vector.shape_cast %546 : vector<1x128xf32> to vector<1x128xf32>
    %548 = vector.broadcast %547 : vector<1x128xf32> to vector<32x128xf32>
    %549 = arith.mulf %449, %548 : vector<32x128xf32>
    %550 = arith.addf %545, %549 : vector<32x128xf32>
    %551 = vector.extract_strided_slice %539 {offsets = [2, 0], sizes = [1, 128], strides = [1, 1]} : vector<8x128xf32> to vector<1x128xf32>
    %552 = vector.shape_cast %551 : vector<1x128xf32> to vector<1x128xf32>
    %553 = vector.broadcast %552 : vector<1x128xf32> to vector<32x128xf32>
    %554 = arith.mulf %452, %553 : vector<32x128xf32>
    %555 = vector.extract_strided_slice %539 {offsets = [3, 0], sizes = [1, 128], strides = [1, 1]} : vector<8x128xf32> to vector<1x128xf32>
    %556 = vector.shape_cast %555 : vector<1x128xf32> to vector<1x128xf32>
    %557 = vector.broadcast %556 : vector<1x128xf32> to vector<32x128xf32>
    %558 = arith.mulf %455, %557 : vector<32x128xf32>
    %559 = arith.addf %554, %558 : vector<32x128xf32>
    %560 = arith.addf %550, %559 : vector<32x128xf32>
    %561 = vector.extract_strided_slice %539 {offsets = [4, 0], sizes = [1, 128], strides = [1, 1]} : vector<8x128xf32> to vector<1x128xf32>
    %562 = vector.shape_cast %561 : vector<1x128xf32> to vector<1x128xf32>
    %563 = vector.broadcast %562 : vector<1x128xf32> to vector<32x128xf32>
    %564 = arith.mulf %458, %563 : vector<32x128xf32>
    %565 = vector.extract_strided_slice %539 {offsets = [5, 0], sizes = [1, 128], strides = [1, 1]} : vector<8x128xf32> to vector<1x128xf32>
    %566 = vector.shape_cast %565 : vector<1x128xf32> to vector<1x128xf32>
    %567 = vector.broadcast %566 : vector<1x128xf32> to vector<32x128xf32>
    %568 = arith.mulf %461, %567 : vector<32x128xf32>
    %569 = arith.addf %564, %568 : vector<32x128xf32>
    %570 = arith.addf %560, %569 : vector<32x128xf32>
    %571 = arith.addf %541, %570 : vector<32x128xf32>
    %572 = math.tanh %571 : vector<32x128xf32>
    %573 = vector.extract_strided_slice %572 {offsets = [0, 0], sizes = [8, 128], strides = [1, 1]} : vector<32x128xf32> to vector<8x128xf32>
    %cst_123 = arith.constant 5.000000e-01 : f32
    %574 = vector.broadcast %cst_123 : f32 to vector<8x128xf32>
    %575 = arith.mulf %573, %574 : vector<8x128xf32>
    %cst_124 = arith.constant 5.000000e-01 : f32
    %576 = vector.broadcast %cst_124 : f32 to vector<8x128xf32>
    %577 = arith.addf %575, %576 : vector<8x128xf32>
    %578 = vector.extract_strided_slice %572 {offsets = [8, 0], sizes = [8, 128], strides = [1, 1]} : vector<32x128xf32> to vector<8x128xf32>
    %cst_125 = arith.constant 5.000000e-01 : f32
    %579 = vector.broadcast %cst_125 : f32 to vector<8x128xf32>
    %580 = arith.mulf %578, %579 : vector<8x128xf32>
    %cst_126 = arith.constant 5.000000e-01 : f32
    %581 = vector.broadcast %cst_126 : f32 to vector<8x128xf32>
    %582 = arith.addf %580, %581 : vector<8x128xf32>
    %583 = vector.extract_strided_slice %572 {offsets = [16, 0], sizes = [8, 128], strides = [1, 1]} : vector<32x128xf32> to vector<8x128xf32>
    %cst_127 = arith.constant 5.000000e-01 : f32
    %584 = vector.broadcast %cst_127 : f32 to vector<8x128xf32>
    %585 = arith.mulf %583, %584 : vector<8x128xf32>
    %cst_128 = arith.constant 5.000000e-01 : f32
    %586 = vector.broadcast %cst_128 : f32 to vector<8x128xf32>
    %587 = arith.addf %585, %586 : vector<8x128xf32>
    %588 = vector.extract_strided_slice %572 {offsets = [24, 0], sizes = [8, 128], strides = [1, 1]} : vector<32x128xf32> to vector<8x128xf32>
    %589 = arith.mulf %582, %537 : vector<8x128xf32>
    %590 = arith.mulf %577, %588 : vector<8x128xf32>
    %591 = arith.addf %589, %590 : vector<8x128xf32>
    %592 = math.tanh %591 : vector<8x128xf32>
    %593 = arith.mulf %587, %592 : vector<8x128xf32>
    %c0_129 = arith.constant 0 : index
    %c256_130 = arith.constant 256 : index
    %594 = vector.load %arg8[%c0_129, %c256_130] : memref<8x1024xf32, #tpu.memory_space<vmem>>, vector<8x128xf32>
    tpu.vector_store %arg8[%c0_129, %c256_130], %593 {strides = array<i32>} : memref<8x1024xf32, #tpu.memory_space<vmem>>, vector<8x128xf32>,
    %c0_131 = arith.constant 0 : index
    %c384_132 = arith.constant 384 : index
    %595 = vector.load %arg9[%c0_131, %c384_132] : memref<32x1024xf32, #tpu.memory_space<vmem>>, vector<32x128xf32>
    %596 = vector.extract_strided_slice %593 {offsets = [0, 0], sizes = [1, 128], strides = [1, 1]} : vector<8x128xf32> to vector<1x128xf32>
    %597 = vector.shape_cast %596 : vector<1x128xf32> to vector<1x128xf32>
    %598 = vector.broadcast %597 : vector<1x128xf32> to vector<32x128xf32>
    %599 = arith.mulf %446, %598 : vector<32x128xf32>
    %600 = vector.extract_strided_slice %593 {offsets = [1, 0], sizes = [1, 128], strides = [1, 1]} : vector<8x128xf32> to vector<1x128xf32>
    %601 = vector.shape_cast %600 : vector<1x128xf32> to vector<1x128xf32>
    %602 = vector.broadcast %601 : vector<1x128xf32> to vector<32x128xf32>
    %603 = arith.mulf %449, %602 : vector<32x128xf32>
    %604 = arith.addf %599, %603 : vector<32x128xf32>
    %605 = vector.extract_strided_slice %593 {offsets = [2, 0], sizes = [1, 128], strides = [1, 1]} : vector<8x128xf32> to vector<1x128xf32>
    %606 = vector.shape_cast %605 : vector<1x128xf32> to vector<1x128xf32>
    %607 = vector.broadcast %606 : vector<1x128xf32> to vector<32x128xf32>
    %608 = arith.mulf %452, %607 : vector<32x128xf32>
    %609 = vector.extract_strided_slice %593 {offsets = [3, 0], sizes = [1, 128], strides = [1, 1]} : vector<8x128xf32> to vector<1x128xf32>
    %610 = vector.shape_cast %609 : vector<1x128xf32> to vector<1x128xf32>
    %611 = vector.broadcast %610 : vector<1x128xf32> to vector<32x128xf32>
    %612 = arith.mulf %455, %611 : vector<32x128xf32>
    %613 = arith.addf %608, %612 : vector<32x128xf32>
    %614 = arith.addf %604, %613 : vector<32x128xf32>
    %615 = vector.extract_strided_slice %593 {offsets = [4, 0], sizes = [1, 128], strides = [1, 1]} : vector<8x128xf32> to vector<1x128xf32>
    %616 = vector.shape_cast %615 : vector<1x128xf32> to vector<1x128xf32>
    %617 = vector.broadcast %616 : vector<1x128xf32> to vector<32x128xf32>
    %618 = arith.mulf %458, %617 : vector<32x128xf32>
    %619 = vector.extract_strided_slice %593 {offsets = [5, 0], sizes = [1, 128], strides = [1, 1]} : vector<8x128xf32> to vector<1x128xf32>
    %620 = vector.shape_cast %619 : vector<1x128xf32> to vector<1x128xf32>
    %621 = vector.broadcast %620 : vector<1x128xf32> to vector<32x128xf32>
    %622 = arith.mulf %461, %621 : vector<32x128xf32>
    %623 = arith.addf %618, %622 : vector<32x128xf32>
    %624 = arith.addf %614, %623 : vector<32x128xf32>
    %625 = arith.addf %595, %624 : vector<32x128xf32>
    %626 = math.tanh %625 : vector<32x128xf32>
    %627 = vector.extract_strided_slice %626 {offsets = [0, 0], sizes = [8, 128], strides = [1, 1]} : vector<32x128xf32> to vector<8x128xf32>
    %cst_133 = arith.constant 5.000000e-01 : f32
    %628 = vector.broadcast %cst_133 : f32 to vector<8x128xf32>
    %629 = arith.mulf %627, %628 : vector<8x128xf32>
    %cst_134 = arith.constant 5.000000e-01 : f32
    %630 = vector.broadcast %cst_134 : f32 to vector<8x128xf32>
    %631 = arith.addf %629, %630 : vector<8x128xf32>
    %632 = vector.extract_strided_slice %626 {offsets = [8, 0], sizes = [8, 128], strides = [1, 1]} : vector<32x128xf32> to vector<8x128xf32>
    %cst_135 = arith.constant 5.000000e-01 : f32
    %633 = vector.broadcast %cst_135 : f32 to vector<8x128xf32>
    %634 = arith.mulf %632, %633 : vector<8x128xf32>
    %cst_136 = arith.constant 5.000000e-01 : f32
    %635 = vector.broadcast %cst_136 : f32 to vector<8x128xf32>
    %636 = arith.addf %634, %635 : vector<8x128xf32>
    %637 = vector.extract_strided_slice %626 {offsets = [16, 0], sizes = [8, 128], strides = [1, 1]} : vector<32x128xf32> to vector<8x128xf32>
    %cst_137 = arith.constant 5.000000e-01 : f32
    %638 = vector.broadcast %cst_137 : f32 to vector<8x128xf32>
    %639 = arith.mulf %637, %638 : vector<8x128xf32>
    %cst_138 = arith.constant 5.000000e-01 : f32
    %640 = vector.broadcast %cst_138 : f32 to vector<8x128xf32>
    %641 = arith.addf %639, %640 : vector<8x128xf32>
    %642 = vector.extract_strided_slice %626 {offsets = [24, 0], sizes = [8, 128], strides = [1, 1]} : vector<32x128xf32> to vector<8x128xf32>
    %643 = arith.mulf %636, %591 : vector<8x128xf32>
    %644 = arith.mulf %631, %642 : vector<8x128xf32>
    %645 = arith.addf %643, %644 : vector<8x128xf32>
    %646 = math.tanh %645 : vector<8x128xf32>
    %647 = arith.mulf %641, %646 : vector<8x128xf32>
    %c0_139 = arith.constant 0 : index
    %c384_140 = arith.constant 384 : index
    %648 = vector.load %arg8[%c0_139, %c384_140] : memref<8x1024xf32, #tpu.memory_space<vmem>>, vector<8x128xf32>
    tpu.vector_store %arg8[%c0_139, %c384_140], %647 {strides = array<i32>} : memref<8x1024xf32, #tpu.memory_space<vmem>>, vector<8x128xf32>,
    %c0_141 = arith.constant 0 : index
    %c512_142 = arith.constant 512 : index
    %649 = vector.load %arg9[%c0_141, %c512_142] : memref<32x1024xf32, #tpu.memory_space<vmem>>, vector<32x128xf32>
    %650 = vector.extract_strided_slice %647 {offsets = [0, 0], sizes = [1, 128], strides = [1, 1]} : vector<8x128xf32> to vector<1x128xf32>
    %651 = vector.shape_cast %650 : vector<1x128xf32> to vector<1x128xf32>
    %652 = vector.broadcast %651 : vector<1x128xf32> to vector<32x128xf32>
    %653 = arith.mulf %446, %652 : vector<32x128xf32>
    %654 = vector.extract_strided_slice %647 {offsets = [1, 0], sizes = [1, 128], strides = [1, 1]} : vector<8x128xf32> to vector<1x128xf32>
    %655 = vector.shape_cast %654 : vector<1x128xf32> to vector<1x128xf32>
    %656 = vector.broadcast %655 : vector<1x128xf32> to vector<32x128xf32>
    %657 = arith.mulf %449, %656 : vector<32x128xf32>
    %658 = arith.addf %653, %657 : vector<32x128xf32>
    %659 = vector.extract_strided_slice %647 {offsets = [2, 0], sizes = [1, 128], strides = [1, 1]} : vector<8x128xf32> to vector<1x128xf32>
    %660 = vector.shape_cast %659 : vector<1x128xf32> to vector<1x128xf32>
    %661 = vector.broadcast %660 : vector<1x128xf32> to vector<32x128xf32>
    %662 = arith.mulf %452, %661 : vector<32x128xf32>
    %663 = vector.extract_strided_slice %647 {offsets = [3, 0], sizes = [1, 128], strides = [1, 1]} : vector<8x128xf32> to vector<1x128xf32>
    %664 = vector.shape_cast %663 : vector<1x128xf32> to vector<1x128xf32>
    %665 = vector.broadcast %664 : vector<1x128xf32> to vector<32x128xf32>
    %666 = arith.mulf %455, %665 : vector<32x128xf32>
    %667 = arith.addf %662, %666 : vector<32x128xf32>
    %668 = arith.addf %658, %667 : vector<32x128xf32>
    %669 = vector.extract_strided_slice %647 {offsets = [4, 0], sizes = [1, 128], strides = [1, 1]} : vector<8x128xf32> to vector<1x128xf32>
    %670 = vector.shape_cast %669 : vector<1x128xf32> to vector<1x128xf32>
    %671 = vector.broadcast %670 : vector<1x128xf32> to vector<32x128xf32>
    %672 = arith.mulf %458, %671 : vector<32x128xf32>
    %673 = vector.extract_strided_slice %647 {offsets = [5, 0], sizes = [1, 128], strides = [1, 1]} : vector<8x128xf32> to vector<1x128xf32>
    %674 = vector.shape_cast %673 : vector<1x128xf32> to vector<1x128xf32>
    %675 = vector.broadcast %674 : vector<1x128xf32> to vector<32x128xf32>
    %676 = arith.mulf %461, %675 : vector<32x128xf32>
    %677 = arith.addf %672, %676 : vector<32x128xf32>
    %678 = arith.addf %668, %677 : vector<32x128xf32>
    %679 = arith.addf %649, %678 : vector<32x128xf32>
    %680 = math.tanh %679 : vector<32x128xf32>
    %681 = vector.extract_strided_slice %680 {offsets = [0, 0], sizes = [8, 128], strides = [1, 1]} : vector<32x128xf32> to vector<8x128xf32>
    %cst_143 = arith.constant 5.000000e-01 : f32
    %682 = vector.broadcast %cst_143 : f32 to vector<8x128xf32>
    %683 = arith.mulf %681, %682 : vector<8x128xf32>
    %cst_144 = arith.constant 5.000000e-01 : f32
    %684 = vector.broadcast %cst_144 : f32 to vector<8x128xf32>
    %685 = arith.addf %683, %684 : vector<8x128xf32>
    %686 = vector.extract_strided_slice %680 {offsets = [8, 0], sizes = [8, 128], strides = [1, 1]} : vector<32x128xf32> to vector<8x128xf32>
    %cst_145 = arith.constant 5.000000e-01 : f32
    %687 = vector.broadcast %cst_145 : f32 to vector<8x128xf32>
    %688 = arith.mulf %686, %687 : vector<8x128xf32>
    %cst_146 = arith.constant 5.000000e-01 : f32
    %689 = vector.broadcast %cst_146 : f32 to vector<8x128xf32>
    %690 = arith.addf %688, %689 : vector<8x128xf32>
    %691 = vector.extract_strided_slice %680 {offsets = [16, 0], sizes = [8, 128], strides = [1, 1]} : vector<32x128xf32> to vector<8x128xf32>
    %cst_147 = arith.constant 5.000000e-01 : f32
    %692 = vector.broadcast %cst_147 : f32 to vector<8x128xf32>
    %693 = arith.mulf %691, %692 : vector<8x128xf32>
    %cst_148 = arith.constant 5.000000e-01 : f32
    %694 = vector.broadcast %cst_148 : f32 to vector<8x128xf32>
    %695 = arith.addf %693, %694 : vector<8x128xf32>
    %696 = vector.extract_strided_slice %680 {offsets = [24, 0], sizes = [8, 128], strides = [1, 1]} : vector<32x128xf32> to vector<8x128xf32>
    %697 = arith.mulf %690, %645 : vector<8x128xf32>
    %698 = arith.mulf %685, %696 : vector<8x128xf32>
    %699 = arith.addf %697, %698 : vector<8x128xf32>
    %700 = math.tanh %699 : vector<8x128xf32>
    %701 = arith.mulf %695, %700 : vector<8x128xf32>
    %c0_149 = arith.constant 0 : index
    %c512_150 = arith.constant 512 : index
    %702 = vector.load %arg8[%c0_149, %c512_150] : memref<8x1024xf32, #tpu.memory_space<vmem>>, vector<8x128xf32>
    tpu.vector_store %arg8[%c0_149, %c512_150], %701 {strides = array<i32>} : memref<8x1024xf32, #tpu.memory_space<vmem>>, vector<8x128xf32>,
    %c0_151 = arith.constant 0 : index
    %c640_152 = arith.constant 640 : index
    %703 = vector.load %arg9[%c0_151, %c640_152] : memref<32x1024xf32, #tpu.memory_space<vmem>>, vector<32x128xf32>
    %704 = vector.extract_strided_slice %701 {offsets = [0, 0], sizes = [1, 128], strides = [1, 1]} : vector<8x128xf32> to vector<1x128xf32>
    %705 = vector.shape_cast %704 : vector<1x128xf32> to vector<1x128xf32>
    %706 = vector.broadcast %705 : vector<1x128xf32> to vector<32x128xf32>
    %707 = arith.mulf %446, %706 : vector<32x128xf32>
    %708 = vector.extract_strided_slice %701 {offsets = [1, 0], sizes = [1, 128], strides = [1, 1]} : vector<8x128xf32> to vector<1x128xf32>
    %709 = vector.shape_cast %708 : vector<1x128xf32> to vector<1x128xf32>
    %710 = vector.broadcast %709 : vector<1x128xf32> to vector<32x128xf32>
    %711 = arith.mulf %449, %710 : vector<32x128xf32>
    %712 = arith.addf %707, %711 : vector<32x128xf32>
    %713 = vector.extract_strided_slice %701 {offsets = [2, 0], sizes = [1, 128], strides = [1, 1]} : vector<8x128xf32> to vector<1x128xf32>
    %714 = vector.shape_cast %713 : vector<1x128xf32> to vector<1x128xf32>
    %715 = vector.broadcast %714 : vector<1x128xf32> to vector<32x128xf32>
    %716 = arith.mulf %452, %715 : vector<32x128xf32>
    %717 = vector.extract_strided_slice %701 {offsets = [3, 0], sizes = [1, 128], strides = [1, 1]} : vector<8x128xf32> to vector<1x128xf32>
    %718 = vector.shape_cast %717 : vector<1x128xf32> to vector<1x128xf32>
    %719 = vector.broadcast %718 : vector<1x128xf32> to vector<32x128xf32>
    %720 = arith.mulf %455, %719 : vector<32x128xf32>
    %721 = arith.addf %716, %720 : vector<32x128xf32>
    %722 = arith.addf %712, %721 : vector<32x128xf32>
    %723 = vector.extract_strided_slice %701 {offsets = [4, 0], sizes = [1, 128], strides = [1, 1]} : vector<8x128xf32> to vector<1x128xf32>
    %724 = vector.shape_cast %723 : vector<1x128xf32> to vector<1x128xf32>
    %725 = vector.broadcast %724 : vector<1x128xf32> to vector<32x128xf32>
    %726 = arith.mulf %458, %725 : vector<32x128xf32>
    %727 = vector.extract_strided_slice %701 {offsets = [5, 0], sizes = [1, 128], strides = [1, 1]} : vector<8x128xf32> to vector<1x128xf32>
    %728 = vector.shape_cast %727 : vector<1x128xf32> to vector<1x128xf32>
    %729 = vector.broadcast %728 : vector<1x128xf32> to vector<32x128xf32>
    %730 = arith.mulf %461, %729 : vector<32x128xf32>
    %731 = arith.addf %726, %730 : vector<32x128xf32>
    %732 = arith.addf %722, %731 : vector<32x128xf32>
    %733 = arith.addf %703, %732 : vector<32x128xf32>
    %734 = math.tanh %733 : vector<32x128xf32>
    %735 = vector.extract_strided_slice %734 {offsets = [0, 0], sizes = [8, 128], strides = [1, 1]} : vector<32x128xf32> to vector<8x128xf32>
    %cst_153 = arith.constant 5.000000e-01 : f32
    %736 = vector.broadcast %cst_153 : f32 to vector<8x128xf32>
    %737 = arith.mulf %735, %736 : vector<8x128xf32>
    %cst_154 = arith.constant 5.000000e-01 : f32
    %738 = vector.broadcast %cst_154 : f32 to vector<8x128xf32>
    %739 = arith.addf %737, %738 : vector<8x128xf32>
    %740 = vector.extract_strided_slice %734 {offsets = [8, 0], sizes = [8, 128], strides = [1, 1]} : vector<32x128xf32> to vector<8x128xf32>
    %cst_155 = arith.constant 5.000000e-01 : f32
    %741 = vector.broadcast %cst_155 : f32 to vector<8x128xf32>
    %742 = arith.mulf %740, %741 : vector<8x128xf32>
    %cst_156 = arith.constant 5.000000e-01 : f32
    %743 = vector.broadcast %cst_156 : f32 to vector<8x128xf32>
    %744 = arith.addf %742, %743 : vector<8x128xf32>
    %745 = vector.extract_strided_slice %734 {offsets = [16, 0], sizes = [8, 128], strides = [1, 1]} : vector<32x128xf32> to vector<8x128xf32>
    %cst_157 = arith.constant 5.000000e-01 : f32
    %746 = vector.broadcast %cst_157 : f32 to vector<8x128xf32>
    %747 = arith.mulf %745, %746 : vector<8x128xf32>
    %cst_158 = arith.constant 5.000000e-01 : f32
    %748 = vector.broadcast %cst_158 : f32 to vector<8x128xf32>
    %749 = arith.addf %747, %748 : vector<8x128xf32>
    %750 = vector.extract_strided_slice %734 {offsets = [24, 0], sizes = [8, 128], strides = [1, 1]} : vector<32x128xf32> to vector<8x128xf32>
    %751 = arith.mulf %744, %699 : vector<8x128xf32>
    %752 = arith.mulf %739, %750 : vector<8x128xf32>
    %753 = arith.addf %751, %752 : vector<8x128xf32>
    %754 = math.tanh %753 : vector<8x128xf32>
    %755 = arith.mulf %749, %754 : vector<8x128xf32>
    %c0_159 = arith.constant 0 : index
    %c640_160 = arith.constant 640 : index
    %756 = vector.load %arg8[%c0_159, %c640_160] : memref<8x1024xf32, #tpu.memory_space<vmem>>, vector<8x128xf32>
    tpu.vector_store %arg8[%c0_159, %c640_160], %755 {strides = array<i32>} : memref<8x1024xf32, #tpu.memory_space<vmem>>, vector<8x128xf32>,
    %c0_161 = arith.constant 0 : index
    %c768_162 = arith.constant 768 : index
    %757 = vector.load %arg9[%c0_161, %c768_162] : memref<32x1024xf32, #tpu.memory_space<vmem>>, vector<32x128xf32>
    %758 = vector.extract_strided_slice %755 {offsets = [0, 0], sizes = [1, 128], strides = [1, 1]} : vector<8x128xf32> to vector<1x128xf32>
    %759 = vector.shape_cast %758 : vector<1x128xf32> to vector<1x128xf32>
    %760 = vector.broadcast %759 : vector<1x128xf32> to vector<32x128xf32>
    %761 = arith.mulf %446, %760 : vector<32x128xf32>
    %762 = vector.extract_strided_slice %755 {offsets = [1, 0], sizes = [1, 128], strides = [1, 1]} : vector<8x128xf32> to vector<1x128xf32>
    %763 = vector.shape_cast %762 : vector<1x128xf32> to vector<1x128xf32>
    %764 = vector.broadcast %763 : vector<1x128xf32> to vector<32x128xf32>
    %765 = arith.mulf %449, %764 : vector<32x128xf32>
    %766 = arith.addf %761, %765 : vector<32x128xf32>
    %767 = vector.extract_strided_slice %755 {offsets = [2, 0], sizes = [1, 128], strides = [1, 1]} : vector<8x128xf32> to vector<1x128xf32>
    %768 = vector.shape_cast %767 : vector<1x128xf32> to vector<1x128xf32>
    %769 = vector.broadcast %768 : vector<1x128xf32> to vector<32x128xf32>
    %770 = arith.mulf %452, %769 : vector<32x128xf32>
    %771 = vector.extract_strided_slice %755 {offsets = [3, 0], sizes = [1, 128], strides = [1, 1]} : vector<8x128xf32> to vector<1x128xf32>
    %772 = vector.shape_cast %771 : vector<1x128xf32> to vector<1x128xf32>
    %773 = vector.broadcast %772 : vector<1x128xf32> to vector<32x128xf32>
    %774 = arith.mulf %455, %773 : vector<32x128xf32>
    %775 = arith.addf %770, %774 : vector<32x128xf32>
    %776 = arith.addf %766, %775 : vector<32x128xf32>
    %777 = vector.extract_strided_slice %755 {offsets = [4, 0], sizes = [1, 128], strides = [1, 1]} : vector<8x128xf32> to vector<1x128xf32>
    %778 = vector.shape_cast %777 : vector<1x128xf32> to vector<1x128xf32>
    %779 = vector.broadcast %778 : vector<1x128xf32> to vector<32x128xf32>
    %780 = arith.mulf %458, %779 : vector<32x128xf32>
    %781 = vector.extract_strided_slice %755 {offsets = [5, 0], sizes = [1, 128], strides = [1, 1]} : vector<8x128xf32> to vector<1x128xf32>
    %782 = vector.shape_cast %781 : vector<1x128xf32> to vector<1x128xf32>
    %783 = vector.broadcast %782 : vector<1x128xf32> to vector<32x128xf32>
    %784 = arith.mulf %461, %783 : vector<32x128xf32>
    %785 = arith.addf %780, %784 : vector<32x128xf32>
    %786 = arith.addf %776, %785 : vector<32x128xf32>
    %787 = arith.addf %757, %786 : vector<32x128xf32>
    %788 = math.tanh %787 : vector<32x128xf32>
    %789 = vector.extract_strided_slice %788 {offsets = [0, 0], sizes = [8, 128], strides = [1, 1]} : vector<32x128xf32> to vector<8x128xf32>
    %cst_163 = arith.constant 5.000000e-01 : f32
    %790 = vector.broadcast %cst_163 : f32 to vector<8x128xf32>
    %791 = arith.mulf %789, %790 : vector<8x128xf32>
    %cst_164 = arith.constant 5.000000e-01 : f32
    %792 = vector.broadcast %cst_164 : f32 to vector<8x128xf32>
    %793 = arith.addf %791, %792 : vector<8x128xf32>
    %794 = vector.extract_strided_slice %788 {offsets = [8, 0], sizes = [8, 128], strides = [1, 1]} : vector<32x128xf32> to vector<8x128xf32>
    %cst_165 = arith.constant 5.000000e-01 : f32
    %795 = vector.broadcast %cst_165 : f32 to vector<8x128xf32>
    %796 = arith.mulf %794, %795 : vector<8x128xf32>
    %cst_166 = arith.constant 5.000000e-01 : f32
    %797 = vector.broadcast %cst_166 : f32 to vector<8x128xf32>
    %798 = arith.addf %796, %797 : vector<8x128xf32>
    %799 = vector.extract_strided_slice %788 {offsets = [16, 0], sizes = [8, 128], strides = [1, 1]} : vector<32x128xf32> to vector<8x128xf32>
    %cst_167 = arith.constant 5.000000e-01 : f32
    %800 = vector.broadcast %cst_167 : f32 to vector<8x128xf32>
    %801 = arith.mulf %799, %800 : vector<8x128xf32>
    %cst_168 = arith.constant 5.000000e-01 : f32
    %802 = vector.broadcast %cst_168 : f32 to vector<8x128xf32>
    %803 = arith.addf %801, %802 : vector<8x128xf32>
    %804 = vector.extract_strided_slice %788 {offsets = [24, 0], sizes = [8, 128], strides = [1, 1]} : vector<32x128xf32> to vector<8x128xf32>
    %805 = arith.mulf %798, %753 : vector<8x128xf32>
    %806 = arith.mulf %793, %804 : vector<8x128xf32>
    %807 = arith.addf %805, %806 : vector<8x128xf32>
    %808 = math.tanh %807 : vector<8x128xf32>
    %809 = arith.mulf %803, %808 : vector<8x128xf32>
    %c0_169 = arith.constant 0 : index
    %c768_170 = arith.constant 768 : index
    %810 = vector.load %arg8[%c0_169, %c768_170] : memref<8x1024xf32, #tpu.memory_space<vmem>>, vector<8x128xf32>
    tpu.vector_store %arg8[%c0_169, %c768_170], %809 {strides = array<i32>} : memref<8x1024xf32, #tpu.memory_space<vmem>>, vector<8x128xf32>,
    %c0_171 = arith.constant 0 : index
    %c896_172 = arith.constant 896 : index
    %811 = vector.load %arg9[%c0_171, %c896_172] : memref<32x1024xf32, #tpu.memory_space<vmem>>, vector<32x128xf32>
    %812 = vector.extract_strided_slice %809 {offsets = [0, 0], sizes = [1, 128], strides = [1, 1]} : vector<8x128xf32> to vector<1x128xf32>
    %813 = vector.shape_cast %812 : vector<1x128xf32> to vector<1x128xf32>
    %814 = vector.broadcast %813 : vector<1x128xf32> to vector<32x128xf32>
    %815 = arith.mulf %446, %814 : vector<32x128xf32>
    %816 = vector.extract_strided_slice %809 {offsets = [1, 0], sizes = [1, 128], strides = [1, 1]} : vector<8x128xf32> to vector<1x128xf32>
    %817 = vector.shape_cast %816 : vector<1x128xf32> to vector<1x128xf32>
    %818 = vector.broadcast %817 : vector<1x128xf32> to vector<32x128xf32>
    %819 = arith.mulf %449, %818 : vector<32x128xf32>
    %820 = arith.addf %815, %819 : vector<32x128xf32>
    %821 = vector.extract_strided_slice %809 {offsets = [2, 0], sizes = [1, 128], strides = [1, 1]} : vector<8x128xf32> to vector<1x128xf32>
    %822 = vector.shape_cast %821 : vector<1x128xf32> to vector<1x128xf32>
    %823 = vector.broadcast %822 : vector<1x128xf32> to vector<32x128xf32>
    %824 = arith.mulf %452, %823 : vector<32x128xf32>
    %825 = vector.extract_strided_slice %809 {offsets = [3, 0], sizes = [1, 128], strides = [1, 1]} : vector<8x128xf32> to vector<1x128xf32>
    %826 = vector.shape_cast %825 : vector<1x128xf32> to vector<1x128xf32>
    %827 = vector.broadcast %826 : vector<1x128xf32> to vector<32x128xf32>
    %828 = arith.mulf %455, %827 : vector<32x128xf32>
    %829 = arith.addf %824, %828 : vector<32x128xf32>
    %830 = arith.addf %820, %829 : vector<32x128xf32>
    %831 = vector.extract_strided_slice %809 {offsets = [4, 0], sizes = [1, 128], strides = [1, 1]} : vector<8x128xf32> to vector<1x128xf32>
    %832 = vector.shape_cast %831 : vector<1x128xf32> to vector<1x128xf32>
    %833 = vector.broadcast %832 : vector<1x128xf32> to vector<32x128xf32>
    %834 = arith.mulf %458, %833 : vector<32x128xf32>
    %835 = vector.extract_strided_slice %809 {offsets = [5, 0], sizes = [1, 128], strides = [1, 1]} : vector<8x128xf32> to vector<1x128xf32>
    %836 = vector.shape_cast %835 : vector<1x128xf32> to vector<1x128xf32>
    %837 = vector.broadcast %836 : vector<1x128xf32> to vector<32x128xf32>
    %838 = arith.mulf %461, %837 : vector<32x128xf32>
    %839 = arith.addf %834, %838 : vector<32x128xf32>
    %840 = arith.addf %830, %839 : vector<32x128xf32>
    %841 = arith.addf %811, %840 : vector<32x128xf32>
    %842 = math.tanh %841 : vector<32x128xf32>
    %843 = vector.extract_strided_slice %842 {offsets = [0, 0], sizes = [8, 128], strides = [1, 1]} : vector<32x128xf32> to vector<8x128xf32>
    %cst_173 = arith.constant 5.000000e-01 : f32
    %844 = vector.broadcast %cst_173 : f32 to vector<8x128xf32>
    %845 = arith.mulf %843, %844 : vector<8x128xf32>
    %cst_174 = arith.constant 5.000000e-01 : f32
    %846 = vector.broadcast %cst_174 : f32 to vector<8x128xf32>
    %847 = arith.addf %845, %846 : vector<8x128xf32>
    %848 = vector.extract_strided_slice %842 {offsets = [8, 0], sizes = [8, 128], strides = [1, 1]} : vector<32x128xf32> to vector<8x128xf32>
    %cst_175 = arith.constant 5.000000e-01 : f32
    %849 = vector.broadcast %cst_175 : f32 to vector<8x128xf32>
    %850 = arith.mulf %848, %849 : vector<8x128xf32>
    %cst_176 = arith.constant 5.000000e-01 : f32
    %851 = vector.broadcast %cst_176 : f32 to vector<8x128xf32>
    %852 = arith.addf %850, %851 : vector<8x128xf32>
    %853 = vector.extract_strided_slice %842 {offsets = [16, 0], sizes = [8, 128], strides = [1, 1]} : vector<32x128xf32> to vector<8x128xf32>
    %cst_177 = arith.constant 5.000000e-01 : f32
    %854 = vector.broadcast %cst_177 : f32 to vector<8x128xf32>
    %855 = arith.mulf %853, %854 : vector<8x128xf32>
    %cst_178 = arith.constant 5.000000e-01 : f32
    %856 = vector.broadcast %cst_178 : f32 to vector<8x128xf32>
    %857 = arith.addf %855, %856 : vector<8x128xf32>
    %858 = vector.extract_strided_slice %842 {offsets = [24, 0], sizes = [8, 128], strides = [1, 1]} : vector<32x128xf32> to vector<8x128xf32>
    %859 = arith.mulf %852, %807 : vector<8x128xf32>
    %860 = arith.mulf %847, %858 : vector<8x128xf32>
    %861 = arith.addf %859, %860 : vector<8x128xf32>
    %862 = math.tanh %861 : vector<8x128xf32>
    %863 = arith.mulf %857, %862 : vector<8x128xf32>
    %c0_179 = arith.constant 0 : index
    %c896_180 = arith.constant 896 : index
    %864 = vector.load %arg8[%c0_179, %c896_180] : memref<8x1024xf32, #tpu.memory_space<vmem>>, vector<8x128xf32>
    tpu.vector_store %arg8[%c0_179, %c896_180], %863 {strides = array<i32>} : memref<8x1024xf32, #tpu.memory_space<vmem>>, vector<8x128xf32>,
    %c2 = arith.constant 2 : index
    %c0_181 = arith.constant 0 : index
    %c0_182 = arith.constant 0 : index
    %865 = vector.load %arg2[%c2, %c0_181, %c0_182] : memref<3x32x8xf32, #tpu.memory_space<vmem>>, vector<1x32x8xf32>
    %866 = vector.shape_cast %865 : vector<1x32x8xf32> to vector<32x8xf32>
    %c0_183 = arith.constant 0 : index
    %c0_184 = arith.constant 0 : index
    %867 = vector.load %arg8[%c0_183, %c0_184] : memref<8x1024xf32, #tpu.memory_space<vmem>>, vector<8x1024xf32>
    %cst_185 = arith.constant dense<0.000000e+00> : vector<32x1024xf32>
    %868 = tpu.matmul %866, %867, %cst_185 {dimension_numbers = #tpu.dot_dimension_numbers<[1], [0], [0], [1], [0, 0, 1, 1], [], []>} : vector<32x8xf32>, vector<8x1024xf32>, vector<32x1024xf32> -> vector<32x1024xf32>
    %c2_186 = arith.constant 2 : index
    %c0_187 = arith.constant 0 : index
    %c0_188 = arith.constant 0 : index
    %869 = vector.load %arg4[%c2_186, %c0_187, %c0_188] : memref<3x32x1xf32, #tpu.memory_space<vmem>>, vector<1x32x1xf32>
    %870 = vector.shape_cast %869 : vector<1x32x1xf32> to vector<32x1xf32>
    %871 = vector.broadcast %870 : vector<32x1xf32> to vector<32x1024xf32>
    %872 = arith.addf %868, %871 : vector<32x1024xf32>
    %c0_189 = arith.constant 0 : index
    %c0_190 = arith.constant 0 : index
    %873 = vector.load %arg9[%c0_189, %c0_190] : memref<32x1024xf32, #tpu.memory_space<vmem>>, vector<32x1024xf32>
    tpu.vector_store %arg9[%c0_189, %c0_190], %872 {strides = array<i32>} : memref<32x1024xf32, #tpu.memory_space<vmem>>, vector<32x1024xf32>,
    %c2_191 = arith.constant 2 : index
    %c0_192 = arith.constant 0 : index
    %c0_193 = arith.constant 0 : index
    %874 = vector.load %arg3[%c2_191, %c0_192, %c0_193] : memref<3x32x8xf32, #tpu.memory_space<vmem>>, vector<1x32x8xf32>
    %875 = vector.shape_cast %874 : vector<1x32x8xf32> to vector<32x8xf32>
    %876 = vector.extract_strided_slice %875 {offsets = [0, 0], sizes = [32, 1], strides = [1, 1]} : vector<32x8xf32> to vector<32x1xf32>
    %877 = vector.shape_cast %876 : vector<32x1xf32> to vector<32x1xf32>
    %878 = vector.broadcast %877 : vector<32x1xf32> to vector<32x128xf32>
    %879 = vector.extract_strided_slice %875 {offsets = [0, 1], sizes = [32, 1], strides = [1, 1]} : vector<32x8xf32> to vector<32x1xf32>
    %880 = vector.shape_cast %879 : vector<32x1xf32> to vector<32x1xf32>
    %881 = vector.broadcast %880 : vector<32x1xf32> to vector<32x128xf32>
    %882 = vector.extract_strided_slice %875 {offsets = [0, 2], sizes = [32, 1], strides = [1, 1]} : vector<32x8xf32> to vector<32x1xf32>
    %883 = vector.shape_cast %882 : vector<32x1xf32> to vector<32x1xf32>
    %884 = vector.broadcast %883 : vector<32x1xf32> to vector<32x128xf32>
    %885 = vector.extract_strided_slice %875 {offsets = [0, 3], sizes = [32, 1], strides = [1, 1]} : vector<32x8xf32> to vector<32x1xf32>
    %886 = vector.shape_cast %885 : vector<32x1xf32> to vector<32x1xf32>
    %887 = vector.broadcast %886 : vector<32x1xf32> to vector<32x128xf32>
    %888 = vector.extract_strided_slice %875 {offsets = [0, 4], sizes = [32, 1], strides = [1, 1]} : vector<32x8xf32> to vector<32x1xf32>
    %889 = vector.shape_cast %888 : vector<32x1xf32> to vector<32x1xf32>
    %890 = vector.broadcast %889 : vector<32x1xf32> to vector<32x128xf32>
    %891 = vector.extract_strided_slice %875 {offsets = [0, 5], sizes = [32, 1], strides = [1, 1]} : vector<32x8xf32> to vector<32x1xf32>
    %892 = vector.shape_cast %891 : vector<32x1xf32> to vector<32x1xf32>
    %893 = vector.broadcast %892 : vector<32x1xf32> to vector<32x128xf32>
    %cst_194 = arith.constant 0.000000e+00 : f32
    %894 = vector.broadcast %cst_194 : f32 to vector<8x128xf32>
    %c0_195 = arith.constant 0 : index
    %c0_196 = arith.constant 0 : index
    %895 = vector.load %arg9[%c0_195, %c0_196] : memref<32x1024xf32, #tpu.memory_space<vmem>>, vector<32x128xf32>
    %896 = math.tanh %895 : vector<32x128xf32>
    %897 = vector.extract_strided_slice %896 {offsets = [0, 0], sizes = [8, 128], strides = [1, 1]} : vector<32x128xf32> to vector<8x128xf32>
    %cst_197 = arith.constant 5.000000e-01 : f32
    %898 = vector.broadcast %cst_197 : f32 to vector<8x128xf32>
    %899 = arith.mulf %897, %898 : vector<8x128xf32>
    %cst_198 = arith.constant 5.000000e-01 : f32
    %900 = vector.broadcast %cst_198 : f32 to vector<8x128xf32>
    %901 = arith.addf %899, %900 : vector<8x128xf32>
    %902 = vector.extract_strided_slice %896 {offsets = [8, 0], sizes = [8, 128], strides = [1, 1]} : vector<32x128xf32> to vector<8x128xf32>
    %cst_199 = arith.constant 5.000000e-01 : f32
    %903 = vector.broadcast %cst_199 : f32 to vector<8x128xf32>
    %904 = arith.mulf %902, %903 : vector<8x128xf32>
    %cst_200 = arith.constant 5.000000e-01 : f32
    %905 = vector.broadcast %cst_200 : f32 to vector<8x128xf32>
    %906 = arith.addf %904, %905 : vector<8x128xf32>
    %907 = vector.extract_strided_slice %896 {offsets = [16, 0], sizes = [8, 128], strides = [1, 1]} : vector<32x128xf32> to vector<8x128xf32>
    %cst_201 = arith.constant 5.000000e-01 : f32
    %908 = vector.broadcast %cst_201 : f32 to vector<8x128xf32>
    %909 = arith.mulf %907, %908 : vector<8x128xf32>
    %cst_202 = arith.constant 5.000000e-01 : f32
    %910 = vector.broadcast %cst_202 : f32 to vector<8x128xf32>
    %911 = arith.addf %909, %910 : vector<8x128xf32>
    %912 = vector.extract_strided_slice %896 {offsets = [24, 0], sizes = [8, 128], strides = [1, 1]} : vector<32x128xf32> to vector<8x128xf32>
    %913 = arith.mulf %906, %894 : vector<8x128xf32>
    %914 = arith.mulf %901, %912 : vector<8x128xf32>
    %915 = arith.addf %913, %914 : vector<8x128xf32>
    %916 = math.tanh %915 : vector<8x128xf32>
    %917 = arith.mulf %911, %916 : vector<8x128xf32>
    %c0_203 = arith.constant 0 : index
    %c128_204 = arith.constant 128 : index
    %918 = vector.load %arg9[%c0_203, %c128_204] : memref<32x1024xf32, #tpu.memory_space<vmem>>, vector<32x128xf32>
    %919 = vector.extract_strided_slice %917 {offsets = [0, 0], sizes = [1, 128], strides = [1, 1]} : vector<8x128xf32> to vector<1x128xf32>
    %920 = vector.shape_cast %919 : vector<1x128xf32> to vector<1x128xf32>
    %921 = vector.broadcast %920 : vector<1x128xf32> to vector<32x128xf32>
    %922 = arith.mulf %878, %921 : vector<32x128xf32>
    %923 = vector.extract_strided_slice %917 {offsets = [1, 0], sizes = [1, 128], strides = [1, 1]} : vector<8x128xf32> to vector<1x128xf32>
    %924 = vector.shape_cast %923 : vector<1x128xf32> to vector<1x128xf32>
    %925 = vector.broadcast %924 : vector<1x128xf32> to vector<32x128xf32>
    %926 = arith.mulf %881, %925 : vector<32x128xf32>
    %927 = arith.addf %922, %926 : vector<32x128xf32>
    %928 = vector.extract_strided_slice %917 {offsets = [2, 0], sizes = [1, 128], strides = [1, 1]} : vector<8x128xf32> to vector<1x128xf32>
    %929 = vector.shape_cast %928 : vector<1x128xf32> to vector<1x128xf32>
    %930 = vector.broadcast %929 : vector<1x128xf32> to vector<32x128xf32>
    %931 = arith.mulf %884, %930 : vector<32x128xf32>
    %932 = vector.extract_strided_slice %917 {offsets = [3, 0], sizes = [1, 128], strides = [1, 1]} : vector<8x128xf32> to vector<1x128xf32>
    %933 = vector.shape_cast %932 : vector<1x128xf32> to vector<1x128xf32>
    %934 = vector.broadcast %933 : vector<1x128xf32> to vector<32x128xf32>
    %935 = arith.mulf %887, %934 : vector<32x128xf32>
    %936 = arith.addf %931, %935 : vector<32x128xf32>
    %937 = arith.addf %927, %936 : vector<32x128xf32>
    %938 = vector.extract_strided_slice %917 {offsets = [4, 0], sizes = [1, 128], strides = [1, 1]} : vector<8x128xf32> to vector<1x128xf32>
    %939 = vector.shape_cast %938 : vector<1x128xf32> to vector<1x128xf32>
    %940 = vector.broadcast %939 : vector<1x128xf32> to vector<32x128xf32>
    %941 = arith.mulf %890, %940 : vector<32x128xf32>
    %942 = vector.extract_strided_slice %917 {offsets = [5, 0], sizes = [1, 128], strides = [1, 1]} : vector<8x128xf32> to vector<1x128xf32>
    %943 = vector.shape_cast %942 : vector<1x128xf32> to vector<1x128xf32>
    %944 = vector.broadcast %943 : vector<1x128xf32> to vector<32x128xf32>
    %945 = arith.mulf %893, %944 : vector<32x128xf32>
    %946 = arith.addf %941, %945 : vector<32x128xf32>
    %947 = arith.addf %937, %946 : vector<32x128xf32>
    %948 = arith.addf %918, %947 : vector<32x128xf32>
    %949 = math.tanh %948 : vector<32x128xf32>
    %950 = vector.extract_strided_slice %949 {offsets = [0, 0], sizes = [8, 128], strides = [1, 1]} : vector<32x128xf32> to vector<8x128xf32>
    %cst_205 = arith.constant 5.000000e-01 : f32
    %951 = vector.broadcast %cst_205 : f32 to vector<8x128xf32>
    %952 = arith.mulf %950, %951 : vector<8x128xf32>
    %cst_206 = arith.constant 5.000000e-01 : f32
    %953 = vector.broadcast %cst_206 : f32 to vector<8x128xf32>
    %954 = arith.addf %952, %953 : vector<8x128xf32>
    %955 = vector.extract_strided_slice %949 {offsets = [8, 0], sizes = [8, 128], strides = [1, 1]} : vector<32x128xf32> to vector<8x128xf32>
    %cst_207 = arith.constant 5.000000e-01 : f32
    %956 = vector.broadcast %cst_207 : f32 to vector<8x128xf32>
    %957 = arith.mulf %955, %956 : vector<8x128xf32>
    %cst_208 = arith.constant 5.000000e-01 : f32
    %958 = vector.broadcast %cst_208 : f32 to vector<8x128xf32>
    %959 = arith.addf %957, %958 : vector<8x128xf32>
    %960 = vector.extract_strided_slice %949 {offsets = [16, 0], sizes = [8, 128], strides = [1, 1]} : vector<32x128xf32> to vector<8x128xf32>
    %cst_209 = arith.constant 5.000000e-01 : f32
    %961 = vector.broadcast %cst_209 : f32 to vector<8x128xf32>
    %962 = arith.mulf %960, %961 : vector<8x128xf32>
    %cst_210 = arith.constant 5.000000e-01 : f32
    %963 = vector.broadcast %cst_210 : f32 to vector<8x128xf32>
    %964 = arith.addf %962, %963 : vector<8x128xf32>
    %965 = vector.extract_strided_slice %949 {offsets = [24, 0], sizes = [8, 128], strides = [1, 1]} : vector<32x128xf32> to vector<8x128xf32>
    %966 = arith.mulf %959, %915 : vector<8x128xf32>
    %967 = arith.mulf %954, %965 : vector<8x128xf32>
    %968 = arith.addf %966, %967 : vector<8x128xf32>
    %969 = math.tanh %968 : vector<8x128xf32>
    %970 = arith.mulf %964, %969 : vector<8x128xf32>
    %c0_211 = arith.constant 0 : index
    %c256_212 = arith.constant 256 : index
    %971 = vector.load %arg9[%c0_211, %c256_212] : memref<32x1024xf32, #tpu.memory_space<vmem>>, vector<32x128xf32>
    %972 = vector.extract_strided_slice %970 {offsets = [0, 0], sizes = [1, 128], strides = [1, 1]} : vector<8x128xf32> to vector<1x128xf32>
    %973 = vector.shape_cast %972 : vector<1x128xf32> to vector<1x128xf32>
    %974 = vector.broadcast %973 : vector<1x128xf32> to vector<32x128xf32>
    %975 = arith.mulf %878, %974 : vector<32x128xf32>
    %976 = vector.extract_strided_slice %970 {offsets = [1, 0], sizes = [1, 128], strides = [1, 1]} : vector<8x128xf32> to vector<1x128xf32>
    %977 = vector.shape_cast %976 : vector<1x128xf32> to vector<1x128xf32>
    %978 = vector.broadcast %977 : vector<1x128xf32> to vector<32x128xf32>
    %979 = arith.mulf %881, %978 : vector<32x128xf32>
    %980 = arith.addf %975, %979 : vector<32x128xf32>
    %981 = vector.extract_strided_slice %970 {offsets = [2, 0], sizes = [1, 128], strides = [1, 1]} : vector<8x128xf32> to vector<1x128xf32>
    %982 = vector.shape_cast %981 : vector<1x128xf32> to vector<1x128xf32>
    %983 = vector.broadcast %982 : vector<1x128xf32> to vector<32x128xf32>
    %984 = arith.mulf %884, %983 : vector<32x128xf32>
    %985 = vector.extract_strided_slice %970 {offsets = [3, 0], sizes = [1, 128], strides = [1, 1]} : vector<8x128xf32> to vector<1x128xf32>
    %986 = vector.shape_cast %985 : vector<1x128xf32> to vector<1x128xf32>
    %987 = vector.broadcast %986 : vector<1x128xf32> to vector<32x128xf32>
    %988 = arith.mulf %887, %987 : vector<32x128xf32>
    %989 = arith.addf %984, %988 : vector<32x128xf32>
    %990 = arith.addf %980, %989 : vector<32x128xf32>
    %991 = vector.extract_strided_slice %970 {offsets = [4, 0], sizes = [1, 128], strides = [1, 1]} : vector<8x128xf32> to vector<1x128xf32>
    %992 = vector.shape_cast %991 : vector<1x128xf32> to vector<1x128xf32>
    %993 = vector.broadcast %992 : vector<1x128xf32> to vector<32x128xf32>
    %994 = arith.mulf %890, %993 : vector<32x128xf32>
    %995 = vector.extract_strided_slice %970 {offsets = [5, 0], sizes = [1, 128], strides = [1, 1]} : vector<8x128xf32> to vector<1x128xf32>
    %996 = vector.shape_cast %995 : vector<1x128xf32> to vector<1x128xf32>
    %997 = vector.broadcast %996 : vector<1x128xf32> to vector<32x128xf32>
    %998 = arith.mulf %893, %997 : vector<32x128xf32>
    %999 = arith.addf %994, %998 : vector<32x128xf32>
    %1000 = arith.addf %990, %999 : vector<32x128xf32>
    %1001 = arith.addf %971, %1000 : vector<32x128xf32>
    %1002 = math.tanh %1001 : vector<32x128xf32>
    %1003 = vector.extract_strided_slice %1002 {offsets = [0, 0], sizes = [8, 128], strides = [1, 1]} : vector<32x128xf32> to vector<8x128xf32>
    %cst_213 = arith.constant 5.000000e-01 : f32
    %1004 = vector.broadcast %cst_213 : f32 to vector<8x128xf32>
    %1005 = arith.mulf %1003, %1004 : vector<8x128xf32>
    %cst_214 = arith.constant 5.000000e-01 : f32
    %1006 = vector.broadcast %cst_214 : f32 to vector<8x128xf32>
    %1007 = arith.addf %1005, %1006 : vector<8x128xf32>
    %1008 = vector.extract_strided_slice %1002 {offsets = [8, 0], sizes = [8, 128], strides = [1, 1]} : vector<32x128xf32> to vector<8x128xf32>
    %cst_215 = arith.constant 5.000000e-01 : f32
    %1009 = vector.broadcast %cst_215 : f32 to vector<8x128xf32>
    %1010 = arith.mulf %1008, %1009 : vector<8x128xf32>
    %cst_216 = arith.constant 5.000000e-01 : f32
    %1011 = vector.broadcast %cst_216 : f32 to vector<8x128xf32>
    %1012 = arith.addf %1010, %1011 : vector<8x128xf32>
    %1013 = vector.extract_strided_slice %1002 {offsets = [16, 0], sizes = [8, 128], strides = [1, 1]} : vector<32x128xf32> to vector<8x128xf32>
    %cst_217 = arith.constant 5.000000e-01 : f32
    %1014 = vector.broadcast %cst_217 : f32 to vector<8x128xf32>
    %1015 = arith.mulf %1013, %1014 : vector<8x128xf32>
    %cst_218 = arith.constant 5.000000e-01 : f32
    %1016 = vector.broadcast %cst_218 : f32 to vector<8x128xf32>
    %1017 = arith.addf %1015, %1016 : vector<8x128xf32>
    %1018 = vector.extract_strided_slice %1002 {offsets = [24, 0], sizes = [8, 128], strides = [1, 1]} : vector<32x128xf32> to vector<8x128xf32>
    %1019 = arith.mulf %1012, %968 : vector<8x128xf32>
    %1020 = arith.mulf %1007, %1018 : vector<8x128xf32>
    %1021 = arith.addf %1019, %1020 : vector<8x128xf32>
    %1022 = math.tanh %1021 : vector<8x128xf32>
    %1023 = arith.mulf %1017, %1022 : vector<8x128xf32>
    %c0_219 = arith.constant 0 : index
    %c384_220 = arith.constant 384 : index
    %1024 = vector.load %arg9[%c0_219, %c384_220] : memref<32x1024xf32, #tpu.memory_space<vmem>>, vector<32x128xf32>
    %1025 = vector.extract_strided_slice %1023 {offsets = [0, 0], sizes = [1, 128], strides = [1, 1]} : vector<8x128xf32> to vector<1x128xf32>
    %1026 = vector.shape_cast %1025 : vector<1x128xf32> to vector<1x128xf32>
    %1027 = vector.broadcast %1026 : vector<1x128xf32> to vector<32x128xf32>
    %1028 = arith.mulf %878, %1027 : vector<32x128xf32>
    %1029 = vector.extract_strided_slice %1023 {offsets = [1, 0], sizes = [1, 128], strides = [1, 1]} : vector<8x128xf32> to vector<1x128xf32>
    %1030 = vector.shape_cast %1029 : vector<1x128xf32> to vector<1x128xf32>
    %1031 = vector.broadcast %1030 : vector<1x128xf32> to vector<32x128xf32>
    %1032 = arith.mulf %881, %1031 : vector<32x128xf32>
    %1033 = arith.addf %1028, %1032 : vector<32x128xf32>
    %1034 = vector.extract_strided_slice %1023 {offsets = [2, 0], sizes = [1, 128], strides = [1, 1]} : vector<8x128xf32> to vector<1x128xf32>
    %1035 = vector.shape_cast %1034 : vector<1x128xf32> to vector<1x128xf32>
    %1036 = vector.broadcast %1035 : vector<1x128xf32> to vector<32x128xf32>
    %1037 = arith.mulf %884, %1036 : vector<32x128xf32>
    %1038 = vector.extract_strided_slice %1023 {offsets = [3, 0], sizes = [1, 128], strides = [1, 1]} : vector<8x128xf32> to vector<1x128xf32>
    %1039 = vector.shape_cast %1038 : vector<1x128xf32> to vector<1x128xf32>
    %1040 = vector.broadcast %1039 : vector<1x128xf32> to vector<32x128xf32>
    %1041 = arith.mulf %887, %1040 : vector<32x128xf32>
    %1042 = arith.addf %1037, %1041 : vector<32x128xf32>
    %1043 = arith.addf %1033, %1042 : vector<32x128xf32>
    %1044 = vector.extract_strided_slice %1023 {offsets = [4, 0], sizes = [1, 128], strides = [1, 1]} : vector<8x128xf32> to vector<1x128xf32>
    %1045 = vector.shape_cast %1044 : vector<1x128xf32> to vector<1x128xf32>
    %1046 = vector.broadcast %1045 : vector<1x128xf32> to vector<32x128xf32>
    %1047 = arith.mulf %890, %1046 : vector<32x128xf32>
    %1048 = vector.extract_strided_slice %1023 {offsets = [5, 0], sizes = [1, 128], strides = [1, 1]} : vector<8x128xf32> to vector<1x128xf32>
    %1049 = vector.shape_cast %1048 : vector<1x128xf32> to vector<1x128xf32>
    %1050 = vector.broadcast %1049 : vector<1x128xf32> to vector<32x128xf32>
    %1051 = arith.mulf %893, %1050 : vector<32x128xf32>
    %1052 = arith.addf %1047, %1051 : vector<32x128xf32>
    %1053 = arith.addf %1043, %1052 : vector<32x128xf32>
    %1054 = arith.addf %1024, %1053 : vector<32x128xf32>
    %1055 = math.tanh %1054 : vector<32x128xf32>
    %1056 = vector.extract_strided_slice %1055 {offsets = [0, 0], sizes = [8, 128], strides = [1, 1]} : vector<32x128xf32> to vector<8x128xf32>
    %cst_221 = arith.constant 5.000000e-01 : f32
    %1057 = vector.broadcast %cst_221 : f32 to vector<8x128xf32>
    %1058 = arith.mulf %1056, %1057 : vector<8x128xf32>
    %cst_222 = arith.constant 5.000000e-01 : f32
    %1059 = vector.broadcast %cst_222 : f32 to vector<8x128xf32>
    %1060 = arith.addf %1058, %1059 : vector<8x128xf32>
    %1061 = vector.extract_strided_slice %1055 {offsets = [8, 0], sizes = [8, 128], strides = [1, 1]} : vector<32x128xf32> to vector<8x128xf32>
    %cst_223 = arith.constant 5.000000e-01 : f32
    %1062 = vector.broadcast %cst_223 : f32 to vector<8x128xf32>
    %1063 = arith.mulf %1061, %1062 : vector<8x128xf32>
    %cst_224 = arith.constant 5.000000e-01 : f32
    %1064 = vector.broadcast %cst_224 : f32 to vector<8x128xf32>
    %1065 = arith.addf %1063, %1064 : vector<8x128xf32>
    %1066 = vector.extract_strided_slice %1055 {offsets = [16, 0], sizes = [8, 128], strides = [1, 1]} : vector<32x128xf32> to vector<8x128xf32>
    %cst_225 = arith.constant 5.000000e-01 : f32
    %1067 = vector.broadcast %cst_225 : f32 to vector<8x128xf32>
    %1068 = arith.mulf %1066, %1067 : vector<8x128xf32>
    %cst_226 = arith.constant 5.000000e-01 : f32
    %1069 = vector.broadcast %cst_226 : f32 to vector<8x128xf32>
    %1070 = arith.addf %1068, %1069 : vector<8x128xf32>
    %1071 = vector.extract_strided_slice %1055 {offsets = [24, 0], sizes = [8, 128], strides = [1, 1]} : vector<32x128xf32> to vector<8x128xf32>
    %1072 = arith.mulf %1065, %1021 : vector<8x128xf32>
    %1073 = arith.mulf %1060, %1071 : vector<8x128xf32>
    %1074 = arith.addf %1072, %1073 : vector<8x128xf32>
    %1075 = math.tanh %1074 : vector<8x128xf32>
    %1076 = arith.mulf %1070, %1075 : vector<8x128xf32>
    %c0_227 = arith.constant 0 : index
    %c512_228 = arith.constant 512 : index
    %1077 = vector.load %arg9[%c0_227, %c512_228] : memref<32x1024xf32, #tpu.memory_space<vmem>>, vector<32x128xf32>
    %1078 = vector.extract_strided_slice %1076 {offsets = [0, 0], sizes = [1, 128], strides = [1, 1]} : vector<8x128xf32> to vector<1x128xf32>
    %1079 = vector.shape_cast %1078 : vector<1x128xf32> to vector<1x128xf32>
    %1080 = vector.broadcast %1079 : vector<1x128xf32> to vector<32x128xf32>
    %1081 = arith.mulf %878, %1080 : vector<32x128xf32>
    %1082 = vector.extract_strided_slice %1076 {offsets = [1, 0], sizes = [1, 128], strides = [1, 1]} : vector<8x128xf32> to vector<1x128xf32>
    %1083 = vector.shape_cast %1082 : vector<1x128xf32> to vector<1x128xf32>
    %1084 = vector.broadcast %1083 : vector<1x128xf32> to vector<32x128xf32>
    %1085 = arith.mulf %881, %1084 : vector<32x128xf32>
    %1086 = arith.addf %1081, %1085 : vector<32x128xf32>
    %1087 = vector.extract_strided_slice %1076 {offsets = [2, 0], sizes = [1, 128], strides = [1, 1]} : vector<8x128xf32> to vector<1x128xf32>
    %1088 = vector.shape_cast %1087 : vector<1x128xf32> to vector<1x128xf32>
    %1089 = vector.broadcast %1088 : vector<1x128xf32> to vector<32x128xf32>
    %1090 = arith.mulf %884, %1089 : vector<32x128xf32>
    %1091 = vector.extract_strided_slice %1076 {offsets = [3, 0], sizes = [1, 128], strides = [1, 1]} : vector<8x128xf32> to vector<1x128xf32>
    %1092 = vector.shape_cast %1091 : vector<1x128xf32> to vector<1x128xf32>
    %1093 = vector.broadcast %1092 : vector<1x128xf32> to vector<32x128xf32>
    %1094 = arith.mulf %887, %1093 : vector<32x128xf32>
    %1095 = arith.addf %1090, %1094 : vector<32x128xf32>
    %1096 = arith.addf %1086, %1095 : vector<32x128xf32>
    %1097 = vector.extract_strided_slice %1076 {offsets = [4, 0], sizes = [1, 128], strides = [1, 1]} : vector<8x128xf32> to vector<1x128xf32>
    %1098 = vector.shape_cast %1097 : vector<1x128xf32> to vector<1x128xf32>
    %1099 = vector.broadcast %1098 : vector<1x128xf32> to vector<32x128xf32>
    %1100 = arith.mulf %890, %1099 : vector<32x128xf32>
    %1101 = vector.extract_strided_slice %1076 {offsets = [5, 0], sizes = [1, 128], strides = [1, 1]} : vector<8x128xf32> to vector<1x128xf32>
    %1102 = vector.shape_cast %1101 : vector<1x128xf32> to vector<1x128xf32>
    %1103 = vector.broadcast %1102 : vector<1x128xf32> to vector<32x128xf32>
    %1104 = arith.mulf %893, %1103 : vector<32x128xf32>
    %1105 = arith.addf %1100, %1104 : vector<32x128xf32>
    %1106 = arith.addf %1096, %1105 : vector<32x128xf32>
    %1107 = arith.addf %1077, %1106 : vector<32x128xf32>
    %1108 = math.tanh %1107 : vector<32x128xf32>
    %1109 = vector.extract_strided_slice %1108 {offsets = [0, 0], sizes = [8, 128], strides = [1, 1]} : vector<32x128xf32> to vector<8x128xf32>
    %cst_229 = arith.constant 5.000000e-01 : f32
    %1110 = vector.broadcast %cst_229 : f32 to vector<8x128xf32>
    %1111 = arith.mulf %1109, %1110 : vector<8x128xf32>
    %cst_230 = arith.constant 5.000000e-01 : f32
    %1112 = vector.broadcast %cst_230 : f32 to vector<8x128xf32>
    %1113 = arith.addf %1111, %1112 : vector<8x128xf32>
    %1114 = vector.extract_strided_slice %1108 {offsets = [8, 0], sizes = [8, 128], strides = [1, 1]} : vector<32x128xf32> to vector<8x128xf32>
    %cst_231 = arith.constant 5.000000e-01 : f32
    %1115 = vector.broadcast %cst_231 : f32 to vector<8x128xf32>
    %1116 = arith.mulf %1114, %1115 : vector<8x128xf32>
    %cst_232 = arith.constant 5.000000e-01 : f32
    %1117 = vector.broadcast %cst_232 : f32 to vector<8x128xf32>
    %1118 = arith.addf %1116, %1117 : vector<8x128xf32>
    %1119 = vector.extract_strided_slice %1108 {offsets = [16, 0], sizes = [8, 128], strides = [1, 1]} : vector<32x128xf32> to vector<8x128xf32>
    %cst_233 = arith.constant 5.000000e-01 : f32
    %1120 = vector.broadcast %cst_233 : f32 to vector<8x128xf32>
    %1121 = arith.mulf %1119, %1120 : vector<8x128xf32>
    %cst_234 = arith.constant 5.000000e-01 : f32
    %1122 = vector.broadcast %cst_234 : f32 to vector<8x128xf32>
    %1123 = arith.addf %1121, %1122 : vector<8x128xf32>
    %1124 = vector.extract_strided_slice %1108 {offsets = [24, 0], sizes = [8, 128], strides = [1, 1]} : vector<32x128xf32> to vector<8x128xf32>
    %1125 = arith.mulf %1118, %1074 : vector<8x128xf32>
    %1126 = arith.mulf %1113, %1124 : vector<8x128xf32>
    %1127 = arith.addf %1125, %1126 : vector<8x128xf32>
    %1128 = math.tanh %1127 : vector<8x128xf32>
    %1129 = arith.mulf %1123, %1128 : vector<8x128xf32>
    %c0_235 = arith.constant 0 : index
    %c640_236 = arith.constant 640 : index
    %1130 = vector.load %arg9[%c0_235, %c640_236] : memref<32x1024xf32, #tpu.memory_space<vmem>>, vector<32x128xf32>
    %1131 = vector.extract_strided_slice %1129 {offsets = [0, 0], sizes = [1, 128], strides = [1, 1]} : vector<8x128xf32> to vector<1x128xf32>
    %1132 = vector.shape_cast %1131 : vector<1x128xf32> to vector<1x128xf32>
    %1133 = vector.broadcast %1132 : vector<1x128xf32> to vector<32x128xf32>
    %1134 = arith.mulf %878, %1133 : vector<32x128xf32>
    %1135 = vector.extract_strided_slice %1129 {offsets = [1, 0], sizes = [1, 128], strides = [1, 1]} : vector<8x128xf32> to vector<1x128xf32>
    %1136 = vector.shape_cast %1135 : vector<1x128xf32> to vector<1x128xf32>
    %1137 = vector.broadcast %1136 : vector<1x128xf32> to vector<32x128xf32>
    %1138 = arith.mulf %881, %1137 : vector<32x128xf32>
    %1139 = arith.addf %1134, %1138 : vector<32x128xf32>
    %1140 = vector.extract_strided_slice %1129 {offsets = [2, 0], sizes = [1, 128], strides = [1, 1]} : vector<8x128xf32> to vector<1x128xf32>
    %1141 = vector.shape_cast %1140 : vector<1x128xf32> to vector<1x128xf32>
    %1142 = vector.broadcast %1141 : vector<1x128xf32> to vector<32x128xf32>
    %1143 = arith.mulf %884, %1142 : vector<32x128xf32>
    %1144 = vector.extract_strided_slice %1129 {offsets = [3, 0], sizes = [1, 128], strides = [1, 1]} : vector<8x128xf32> to vector<1x128xf32>
    %1145 = vector.shape_cast %1144 : vector<1x128xf32> to vector<1x128xf32>
    %1146 = vector.broadcast %1145 : vector<1x128xf32> to vector<32x128xf32>
    %1147 = arith.mulf %887, %1146 : vector<32x128xf32>
    %1148 = arith.addf %1143, %1147 : vector<32x128xf32>
    %1149 = arith.addf %1139, %1148 : vector<32x128xf32>
    %1150 = vector.extract_strided_slice %1129 {offsets = [4, 0], sizes = [1, 128], strides = [1, 1]} : vector<8x128xf32> to vector<1x128xf32>
    %1151 = vector.shape_cast %1150 : vector<1x128xf32> to vector<1x128xf32>
    %1152 = vector.broadcast %1151 : vector<1x128xf32> to vector<32x128xf32>
    %1153 = arith.mulf %890, %1152 : vector<32x128xf32>
    %1154 = vector.extract_strided_slice %1129 {offsets = [5, 0], sizes = [1, 128], strides = [1, 1]} : vector<8x128xf32> to vector<1x128xf32>
    %1155 = vector.shape_cast %1154 : vector<1x128xf32> to vector<1x128xf32>
    %1156 = vector.broadcast %1155 : vector<1x128xf32> to vector<32x128xf32>
    %1157 = arith.mulf %893, %1156 : vector<32x128xf32>
    %1158 = arith.addf %1153, %1157 : vector<32x128xf32>
    %1159 = arith.addf %1149, %1158 : vector<32x128xf32>
    %1160 = arith.addf %1130, %1159 : vector<32x128xf32>
    %1161 = math.tanh %1160 : vector<32x128xf32>
    %1162 = vector.extract_strided_slice %1161 {offsets = [0, 0], sizes = [8, 128], strides = [1, 1]} : vector<32x128xf32> to vector<8x128xf32>
    %cst_237 = arith.constant 5.000000e-01 : f32
    %1163 = vector.broadcast %cst_237 : f32 to vector<8x128xf32>
    %1164 = arith.mulf %1162, %1163 : vector<8x128xf32>
    %cst_238 = arith.constant 5.000000e-01 : f32
    %1165 = vector.broadcast %cst_238 : f32 to vector<8x128xf32>
    %1166 = arith.addf %1164, %1165 : vector<8x128xf32>
    %1167 = vector.extract_strided_slice %1161 {offsets = [8, 0], sizes = [8, 128], strides = [1, 1]} : vector<32x128xf32> to vector<8x128xf32>
    %cst_239 = arith.constant 5.000000e-01 : f32
    %1168 = vector.broadcast %cst_239 : f32 to vector<8x128xf32>
    %1169 = arith.mulf %1167, %1168 : vector<8x128xf32>
    %cst_240 = arith.constant 5.000000e-01 : f32
    %1170 = vector.broadcast %cst_240 : f32 to vector<8x128xf32>
    %1171 = arith.addf %1169, %1170 : vector<8x128xf32>
    %1172 = vector.extract_strided_slice %1161 {offsets = [16, 0], sizes = [8, 128], strides = [1, 1]} : vector<32x128xf32> to vector<8x128xf32>
    %cst_241 = arith.constant 5.000000e-01 : f32
    %1173 = vector.broadcast %cst_241 : f32 to vector<8x128xf32>
    %1174 = arith.mulf %1172, %1173 : vector<8x128xf32>
    %cst_242 = arith.constant 5.000000e-01 : f32
    %1175 = vector.broadcast %cst_242 : f32 to vector<8x128xf32>
    %1176 = arith.addf %1174, %1175 : vector<8x128xf32>
    %1177 = vector.extract_strided_slice %1161 {offsets = [24, 0], sizes = [8, 128], strides = [1, 1]} : vector<32x128xf32> to vector<8x128xf32>
    %1178 = arith.mulf %1171, %1127 : vector<8x128xf32>
    %1179 = arith.mulf %1166, %1177 : vector<8x128xf32>
    %1180 = arith.addf %1178, %1179 : vector<8x128xf32>
    %1181 = math.tanh %1180 : vector<8x128xf32>
    %1182 = arith.mulf %1176, %1181 : vector<8x128xf32>
    %c0_243 = arith.constant 0 : index
    %c768_244 = arith.constant 768 : index
    %1183 = vector.load %arg9[%c0_243, %c768_244] : memref<32x1024xf32, #tpu.memory_space<vmem>>, vector<32x128xf32>
    %1184 = vector.extract_strided_slice %1182 {offsets = [0, 0], sizes = [1, 128], strides = [1, 1]} : vector<8x128xf32> to vector<1x128xf32>
    %1185 = vector.shape_cast %1184 : vector<1x128xf32> to vector<1x128xf32>
    %1186 = vector.broadcast %1185 : vector<1x128xf32> to vector<32x128xf32>
    %1187 = arith.mulf %878, %1186 : vector<32x128xf32>
    %1188 = vector.extract_strided_slice %1182 {offsets = [1, 0], sizes = [1, 128], strides = [1, 1]} : vector<8x128xf32> to vector<1x128xf32>
    %1189 = vector.shape_cast %1188 : vector<1x128xf32> to vector<1x128xf32>
    %1190 = vector.broadcast %1189 : vector<1x128xf32> to vector<32x128xf32>
    %1191 = arith.mulf %881, %1190 : vector<32x128xf32>
    %1192 = arith.addf %1187, %1191 : vector<32x128xf32>
    %1193 = vector.extract_strided_slice %1182 {offsets = [2, 0], sizes = [1, 128], strides = [1, 1]} : vector<8x128xf32> to vector<1x128xf32>
    %1194 = vector.shape_cast %1193 : vector<1x128xf32> to vector<1x128xf32>
    %1195 = vector.broadcast %1194 : vector<1x128xf32> to vector<32x128xf32>
    %1196 = arith.mulf %884, %1195 : vector<32x128xf32>
    %1197 = vector.extract_strided_slice %1182 {offsets = [3, 0], sizes = [1, 128], strides = [1, 1]} : vector<8x128xf32> to vector<1x128xf32>
    %1198 = vector.shape_cast %1197 : vector<1x128xf32> to vector<1x128xf32>
    %1199 = vector.broadcast %1198 : vector<1x128xf32> to vector<32x128xf32>
    %1200 = arith.mulf %887, %1199 : vector<32x128xf32>
    %1201 = arith.addf %1196, %1200 : vector<32x128xf32>
    %1202 = arith.addf %1192, %1201 : vector<32x128xf32>
    %1203 = vector.extract_strided_slice %1182 {offsets = [4, 0], sizes = [1, 128], strides = [1, 1]} : vector<8x128xf32> to vector<1x128xf32>
    %1204 = vector.shape_cast %1203 : vector<1x128xf32> to vector<1x128xf32>
    %1205 = vector.broadcast %1204 : vector<1x128xf32> to vector<32x128xf32>
    %1206 = arith.mulf %890, %1205 : vector<32x128xf32>
    %1207 = vector.extract_strided_slice %1182 {offsets = [5, 0], sizes = [1, 128], strides = [1, 1]} : vector<8x128xf32> to vector<1x128xf32>
    %1208 = vector.shape_cast %1207 : vector<1x128xf32> to vector<1x128xf32>
    %1209 = vector.broadcast %1208 : vector<1x128xf32> to vector<32x128xf32>
    %1210 = arith.mulf %893, %1209 : vector<32x128xf32>
    %1211 = arith.addf %1206, %1210 : vector<32x128xf32>
    %1212 = arith.addf %1202, %1211 : vector<32x128xf32>
    %1213 = arith.addf %1183, %1212 : vector<32x128xf32>
    %1214 = math.tanh %1213 : vector<32x128xf32>
    %1215 = vector.extract_strided_slice %1214 {offsets = [0, 0], sizes = [8, 128], strides = [1, 1]} : vector<32x128xf32> to vector<8x128xf32>
    %cst_245 = arith.constant 5.000000e-01 : f32
    %1216 = vector.broadcast %cst_245 : f32 to vector<8x128xf32>
    %1217 = arith.mulf %1215, %1216 : vector<8x128xf32>
    %cst_246 = arith.constant 5.000000e-01 : f32
    %1218 = vector.broadcast %cst_246 : f32 to vector<8x128xf32>
    %1219 = arith.addf %1217, %1218 : vector<8x128xf32>
    %1220 = vector.extract_strided_slice %1214 {offsets = [8, 0], sizes = [8, 128], strides = [1, 1]} : vector<32x128xf32> to vector<8x128xf32>
    %cst_247 = arith.constant 5.000000e-01 : f32
    %1221 = vector.broadcast %cst_247 : f32 to vector<8x128xf32>
    %1222 = arith.mulf %1220, %1221 : vector<8x128xf32>
    %cst_248 = arith.constant 5.000000e-01 : f32
    %1223 = vector.broadcast %cst_248 : f32 to vector<8x128xf32>
    %1224 = arith.addf %1222, %1223 : vector<8x128xf32>
    %1225 = vector.extract_strided_slice %1214 {offsets = [16, 0], sizes = [8, 128], strides = [1, 1]} : vector<32x128xf32> to vector<8x128xf32>
    %cst_249 = arith.constant 5.000000e-01 : f32
    %1226 = vector.broadcast %cst_249 : f32 to vector<8x128xf32>
    %1227 = arith.mulf %1225, %1226 : vector<8x128xf32>
    %cst_250 = arith.constant 5.000000e-01 : f32
    %1228 = vector.broadcast %cst_250 : f32 to vector<8x128xf32>
    %1229 = arith.addf %1227, %1228 : vector<8x128xf32>
    %1230 = vector.extract_strided_slice %1214 {offsets = [24, 0], sizes = [8, 128], strides = [1, 1]} : vector<32x128xf32> to vector<8x128xf32>
    %1231 = arith.mulf %1224, %1180 : vector<8x128xf32>
    %1232 = arith.mulf %1219, %1230 : vector<8x128xf32>
    %1233 = arith.addf %1231, %1232 : vector<8x128xf32>
    %1234 = math.tanh %1233 : vector<8x128xf32>
    %1235 = arith.mulf %1229, %1234 : vector<8x128xf32>
    %c0_251 = arith.constant 0 : index
    %c896_252 = arith.constant 896 : index
    %1236 = vector.load %arg9[%c0_251, %c896_252] : memref<32x1024xf32, #tpu.memory_space<vmem>>, vector<32x128xf32>
    %1237 = vector.extract_strided_slice %1235 {offsets = [0, 0], sizes = [1, 128], strides = [1, 1]} : vector<8x128xf32> to vector<1x128xf32>
    %1238 = vector.shape_cast %1237 : vector<1x128xf32> to vector<1x128xf32>
    %1239 = vector.broadcast %1238 : vector<1x128xf32> to vector<32x128xf32>
    %1240 = arith.mulf %878, %1239 : vector<32x128xf32>
    %1241 = vector.extract_strided_slice %1235 {offsets = [1, 0], sizes = [1, 128], strides = [1, 1]} : vector<8x128xf32> to vector<1x128xf32>
    %1242 = vector.shape_cast %1241 : vector<1x128xf32> to vector<1x128xf32>
    %1243 = vector.broadcast %1242 : vector<1x128xf32> to vector<32x128xf32>
    %1244 = arith.mulf %881, %1243 : vector<32x128xf32>
    %1245 = arith.addf %1240, %1244 : vector<32x128xf32>
    %1246 = vector.extract_strided_slice %1235 {offsets = [2, 0], sizes = [1, 128], strides = [1, 1]} : vector<8x128xf32> to vector<1x128xf32>
    %1247 = vector.shape_cast %1246 : vector<1x128xf32> to vector<1x128xf32>
    %1248 = vector.broadcast %1247 : vector<1x128xf32> to vector<32x128xf32>
    %1249 = arith.mulf %884, %1248 : vector<32x128xf32>
    %1250 = vector.extract_strided_slice %1235 {offsets = [3, 0], sizes = [1, 128], strides = [1, 1]} : vector<8x128xf32> to vector<1x128xf32>
    %1251 = vector.shape_cast %1250 : vector<1x128xf32> to vector<1x128xf32>
    %1252 = vector.broadcast %1251 : vector<1x128xf32> to vector<32x128xf32>
    %1253 = arith.mulf %887, %1252 : vector<32x128xf32>
    %1254 = arith.addf %1249, %1253 : vector<32x128xf32>
    %1255 = arith.addf %1245, %1254 : vector<32x128xf32>
    %1256 = vector.extract_strided_slice %1235 {offsets = [4, 0], sizes = [1, 128], strides = [1, 1]} : vector<8x128xf32> to vector<1x128xf32>
    %1257 = vector.shape_cast %1256 : vector<1x128xf32> to vector<1x128xf32>
    %1258 = vector.broadcast %1257 : vector<1x128xf32> to vector<32x128xf32>
    %1259 = arith.mulf %890, %1258 : vector<32x128xf32>
    %1260 = vector.extract_strided_slice %1235 {offsets = [5, 0], sizes = [1, 128], strides = [1, 1]} : vector<8x128xf32> to vector<1x128xf32>
    %1261 = vector.shape_cast %1260 : vector<1x128xf32> to vector<1x128xf32>
    %1262 = vector.broadcast %1261 : vector<1x128xf32> to vector<32x128xf32>
    %1263 = arith.mulf %893, %1262 : vector<32x128xf32>
    %1264 = arith.addf %1259, %1263 : vector<32x128xf32>
    %1265 = arith.addf %1255, %1264 : vector<32x128xf32>
    %1266 = arith.addf %1236, %1265 : vector<32x128xf32>
    %1267 = math.tanh %1266 : vector<32x128xf32>
    %1268 = vector.extract_strided_slice %1267 {offsets = [0, 0], sizes = [8, 128], strides = [1, 1]} : vector<32x128xf32> to vector<8x128xf32>
    %cst_253 = arith.constant 5.000000e-01 : f32
    %1269 = vector.broadcast %cst_253 : f32 to vector<8x128xf32>
    %1270 = arith.mulf %1268, %1269 : vector<8x128xf32>
    %cst_254 = arith.constant 5.000000e-01 : f32
    %1271 = vector.broadcast %cst_254 : f32 to vector<8x128xf32>
    %1272 = arith.addf %1270, %1271 : vector<8x128xf32>
    %1273 = vector.extract_strided_slice %1267 {offsets = [8, 0], sizes = [8, 128], strides = [1, 1]} : vector<32x128xf32> to vector<8x128xf32>
    %cst_255 = arith.constant 5.000000e-01 : f32
    %1274 = vector.broadcast %cst_255 : f32 to vector<8x128xf32>
    %1275 = arith.mulf %1273, %1274 : vector<8x128xf32>
    %cst_256 = arith.constant 5.000000e-01 : f32
    %1276 = vector.broadcast %cst_256 : f32 to vector<8x128xf32>
    %1277 = arith.addf %1275, %1276 : vector<8x128xf32>
    %1278 = vector.extract_strided_slice %1267 {offsets = [16, 0], sizes = [8, 128], strides = [1, 1]} : vector<32x128xf32> to vector<8x128xf32>
    %cst_257 = arith.constant 5.000000e-01 : f32
    %1279 = vector.broadcast %cst_257 : f32 to vector<8x128xf32>
    %1280 = arith.mulf %1278, %1279 : vector<8x128xf32>
    %cst_258 = arith.constant 5.000000e-01 : f32
    %1281 = vector.broadcast %cst_258 : f32 to vector<8x128xf32>
    %1282 = arith.addf %1280, %1281 : vector<8x128xf32>
    %1283 = vector.extract_strided_slice %1267 {offsets = [24, 0], sizes = [8, 128], strides = [1, 1]} : vector<32x128xf32> to vector<8x128xf32>
    %1284 = arith.mulf %1277, %1233 : vector<8x128xf32>
    %1285 = arith.mulf %1272, %1283 : vector<8x128xf32>
    %1286 = arith.addf %1284, %1285 : vector<8x128xf32>
    %1287 = math.tanh %1286 : vector<8x128xf32>
    %1288 = arith.mulf %1282, %1287 : vector<8x128xf32>
    %c0_259 = arith.constant 0 : index
    %c0_260 = arith.constant 0 : index
    %1289 = vector.load %arg5[%c0_259, %c0_260] : memref<8x8xf32, #tpu.memory_space<vmem>>, vector<8x8xf32>
    %cst_261 = arith.constant dense<0.000000e+00> : vector<8x128xf32>
    %1290 = tpu.matmul %1289, %1288, %cst_261 {dimension_numbers = #tpu.dot_dimension_numbers<[1], [0], [0], [1], [0, 0, 1, 1], [], []>} : vector<8x8xf32>, vector<8x128xf32>, vector<8x128xf32> -> vector<8x128xf32>
    %c0_262 = arith.constant 0 : index
    %c0_263 = arith.constant 0 : index
    %1291 = vector.load %arg6[%c0_262, %c0_263] : memref<1x1xf32, #tpu.memory_space<vmem>>, vector<1x1xf32>
    %1292 = vector.broadcast %1291 : vector<1x1xf32> to vector<8x128xf32>
    %1293 = arith.addf %1290, %1292 : vector<8x128xf32>
    %c0_264 = arith.constant 0 : index
    %c0_265 = arith.constant 0 : index
    %c0_266 = arith.constant 0 : index
    %1294 = vector.load %arg7[%c0_264, %c0_265, %c0_266] : memref<1x8x128xf32, #tpu.memory_space<vmem>>, vector<1x8x128xf32>
    %1295 = vector.shape_cast %1294 : vector<1x8x128xf32> to vector<8x128xf32>
    %1296 = vector.shape_cast %1293 : vector<8x128xf32> to vector<1x8x128xf32>
    tpu.vector_store %arg7[%c0_264, %c0_265, %c0_266], %1296 {strides = array<i32>} : memref<1x8x128xf32, #tpu.memory_space<vmem>>, vector<1x8x128xf32>,
    return
  }
  func.func @transform_0(%arg0: i32) -> (i32, i32, i32) {
    %c0_i32 = arith.constant 0 : i32
    %c0_i32_0 = arith.constant 0 : i32
    %c0_i32_1 = arith.constant 0 : i32
    return %arg0, %c0_i32, %c0_i32_0 : i32, i32, i32
  }
  func.func @transform_1(%arg0: i32) -> (i32, i32, i32) {
    %c0_i32 = arith.constant 0 : i32
    %c0_i32_0 = arith.constant 0 : i32
    %c0_i32_1 = arith.constant 0 : i32
    %c0_i32_2 = arith.constant 0 : i32
    return %c0_i32, %c0_i32_0, %c0_i32_1 : i32, i32, i32
  }
  func.func @transform_2(%arg0: i32) -> (i32, i32, i32) {
    %c0_i32 = arith.constant 0 : i32
    %c0_i32_0 = arith.constant 0 : i32
    %c0_i32_1 = arith.constant 0 : i32
    %c0_i32_2 = arith.constant 0 : i32
    return %c0_i32, %c0_i32_0, %c0_i32_1 : i32, i32, i32
  }
  func.func @transform_3(%arg0: i32) -> (i32, i32, i32) {
    %c0_i32 = arith.constant 0 : i32
    %c0_i32_0 = arith.constant 0 : i32
    %c0_i32_1 = arith.constant 0 : i32
    %c0_i32_2 = arith.constant 0 : i32
    return %c0_i32, %c0_i32_0, %c0_i32_1 : i32, i32, i32
  }
  func.func @transform_4(%arg0: i32) -> (i32, i32) {
    %c0_i32 = arith.constant 0 : i32
    %c0_i32_0 = arith.constant 0 : i32
    %c0_i32_1 = arith.constant 0 : i32
    return %c0_i32, %c0_i32_0 : i32, i32
  }
  func.func @transform_5(%arg0: i32) -> (i32, i32) {
    %c0_i32 = arith.constant 0 : i32
    %c0_i32_0 = arith.constant 0 : i32
    %c0_i32_1 = arith.constant 0 : i32
    return %c0_i32, %c0_i32_0 : i32, i32
  }
  func.func @transform_6(%arg0: i32) -> (i32, i32, i32) {
    %c0_i32 = arith.constant 0 : i32
    %c0_i32_0 = arith.constant 0 : i32
    %c0_i32_1 = arith.constant 0 : i32
    return %arg0, %c0_i32, %c0_i32_0 : i32, i32, i32
  }
}

</mosaic_0001>

<llo_original>
// kernel: tpu_custom_call.1
$region0: #{tpu_custom_call.1}
  #allocation0 [shape = 'u32[]', space=smem, size = 0x4, offset = 0x4, fixed_abs, tag = 'smem constant byte address 0x4 - core index']
  #allocation1 [shape = 'u32[144,128]{1,0:T(1,128)}', space=vmem, size = 0x12000, scoped, tag = 'internal scratch']
  #allocation2 [shape = 'f32[8,1024]{1,0:T(8,128)}', space=vmem, size = 0x8000, scoped, tag = 'scratch operand']
  #allocation3 [shape = 'f32[32,1024]{1,0:T(8,128)}', space=vmem, size = 0x20000, scoped, tag = 'scratch operand']
  #allocation4 [shape = 'f32[1,1]{1,0:T(1,128)S(1)}', space=vmem, size = 0x200, scoped, tag = 'scoped memory for tpu_custom_call.1']
  %s0 = inlined_call_operand.vmem [shape: f32[1,8,1024], index: 0, kind: input, shape index: {}]
  %s1 = inlined_call_operand.vmem [shape: f32[3,32,8], index: 1, kind: input, shape index: {}]
  %s2 = inlined_call_operand.vmem [shape: f32[3,32,8], index: 2, kind: input, shape index: {}]
  %s3 = inlined_call_operand.vmem [shape: f32[3,32,1], index: 3, kind: input, shape index: {}]
  %s4 = inlined_call_operand.vmem [shape: f32[8,8], index: 4, kind: input, shape index: {}]
  %s5 = inlined_call_operand.<no memory space> [shape: f32[1,1], index: 5, kind: input, shape index: {}]
  %s6 = inlined_call_operand.hbm [shape: f32[1,8,128], index: 6, kind: output, shape index: {}]
  %s7 = sld [smem:[#allocation0]]
  $region34: #{tpu_custom_call.1} parent=0
    _
  %s9 = ssub.s32 1, %s7
  %s10 = scalar_select 0, %s9, %s7
  %v11 = vstv %s5
  %12 = vst [vmem:[#allocation4] sm:$0x1] %v11
  $region1: #{tpu_custom_call.1} parent=0
    #allocation5 [shape = 'u8[4096]{0}', space=vmem, size = 0x1000, scoped, tag = 'output window, operand 0, single buffered']
    #allocation6 [shape = 's32[1]{0}', space=sflag, size = 0x4, scoped, tag = 'scoped memory for tpu_custom_call.1']
    %13 = vsyncpa [#allocation6], 0
    // Predicated region
    $region2: #{tpu_custom_call.1} parent=1 // pred_check
      _
    $region3: #{tpu_custom_call.1} parent=1 // pred_check_branch
      %15 = sbr.rel (0) target = $region5
    $region4: #{tpu_custom_call.1} parent=1 // pred_region
      _
    $region5: #{tpu_custom_call.1} parent=1 // pred_fallthru
      _
    // Predicated region
    $region6: #{tpu_custom_call.1} parent=1 // pred_check
      _
    $region7: #{tpu_custom_call.1} parent=1 // pred_check_branch
      %17 = sbr.rel (0) target = $region9
    $region8: #{tpu_custom_call.1} parent=1 // pred_region
      _
    $region9: #{tpu_custom_call.1} parent=1 // pred_fallthru
      _
    // Predicated region
    $region10: #{tpu_custom_call.1} parent=1 // pred_check
      _
    $region11: #{tpu_custom_call.1} parent=1 // pred_check_branch
      %19 = sbr.rel (0) target = $region13
    $region12: #{tpu_custom_call.1} parent=1 // pred_region
      _
    $region13: #{tpu_custom_call.1} parent=1 // pred_fallthru
      _
    // Predicated region
    $region14: #{tpu_custom_call.1} parent=1 // pred_check
      _
    $region15: #{tpu_custom_call.1} parent=1 // pred_check_branch
      %21 = sbr.rel (0) target = $region17
    $region16: #{tpu_custom_call.1} parent=1 // pred_region
      _
    $region17: #{tpu_custom_call.1} parent=1 // pred_fallthru
      _
    // Predicated region
    $region18: #{tpu_custom_call.1} parent=1 // pred_check
      _
    $region19: #{tpu_custom_call.1} parent=1 // pred_check_branch
      %23 = sbr.rel (0) target = $region21
    $region20: #{tpu_custom_call.1} parent=1 // pred_region
      _
    $region21: #{tpu_custom_call.1} parent=1 // pred_fallthru
      _
    // Predicated region
    $region22: #{tpu_custom_call.1} parent=1 // pred_check
      _
    $region23: #{tpu_custom_call.1} parent=1 // pred_check_branch
      %25 = sbr.rel (0) target = $region25
    $region24: #{tpu_custom_call.1} parent=1 // pred_region
      _
    $region25: #{tpu_custom_call.1} parent=1 // pred_fallthru
      _
    %v26 = vld [vmem:[%s1] sm:$0xff]
    %v27 = vld [vmem:[%s1 + $0x8] sm:$0xff]
    %v28 = vld [vmem:[%s1 + $0x10] sm:$0xff]
    %v29 = vld [vmem:[%s1 + $0x18] sm:$0xff]
    %v30 = vld [vmem:[%s0] sm:$0xff]
    %v31 = vld [vmem:[%s0 + $0x8] sm:$0xff]
    %v32 = vld [vmem:[%s0 + $0x10] sm:$0xff]
    %v33 = vld [vmem:[%s0 + $0x18] sm:$0xff]
    %v34 = vld [vmem:[%s0 + $0x20] sm:$0xff]
    %v35 = vld [vmem:[%s0 + $0x28] sm:$0xff]
    %v36 = vld [vmem:[%s0 + $0x30] sm:$0xff]
    %v37 = vld [vmem:[%s0 + $0x38] sm:$0xff]
    %v38 = vld [vmem:[%s3] sm:$0xff]
    %v39 = vld [vmem:[%s3 + $0x8] sm:$0xff]
    %v40 = vld [vmem:[%s3 + $0x10] sm:$0xff]
    %v41 = vld [vmem:[%s3 + $0x18] sm:$0xff]
    %43 = vset.pattern.permute.xlu0 0
    %44 = vperm.xlu0 %43, %v38
    %v45 = vpop.permute.xlu0 %44
    %48 = vset.pattern.permute.xlu0 0
    %49 = vperm.xlu0 %48, %v39
    %v50 = vpop.permute.xlu0 %49
    %53 = vset.pattern.permute.xlu0 0
    %54 = vperm.xlu0 %53, %v40
    %v55 = vpop.permute.xlu0 %54
    %58 = vset.pattern.permute.xlu0 0
    %59 = vperm.xlu0 %58, %v41
    %v60 = vpop.permute.xlu0 %59
    %vm62 = vcmask 64512
    %v64 = vsel %vm62, %v26, 0
    %v67 = vsel %vm62, %v27, 0
    %v70 = vsel %vm62, %v28, 0
    %v73 = vsel %vm62, %v29, 0
    %75 = vmatprep.subr.mxu0 %v31
    %76 = vmatpush1.msra.mxu0 %v30
    %77 = vmatprep.subr.mxu0 0.0
    %78 = vmatpush1.msra.mxu0 0.0
    %79 = vmatprep.subr.mxu0 0.0
    %80 = vmatpush1.msra.mxu0 0.0
    %81 = vmatprep.subr.mxu0 0.0
    %82 = vmatpush1.msra.mxu0 0.0
    %83 = vmatprep.subr.mxu0 0.0
    %84 = vmatpush1.msra.mxu0 0.0
    %85 = vmatprep.subr.mxu0 0.0
    %86 = vmatpush1.msra.mxu0 0.0
    %87 = vmatprep.subr.mxu0 0.0
    %88 = vmatpush1.msra.mxu0 0.0
    %89 = vmatprep.subr.mxu0 0.0
    %90 = vmatpush1.msra.mxu0 0.0
    %91 = vmatprep.subr.mxu0 0.0
    %92 = vmatpush1.msra.mxu0 0.0
    %93 = vmatprep.subr.mxu0 0.0
    %94 = vmatpush1.msra.mxu0 0.0
    %95 = vmatprep.subr.mxu0 0.0
    %96 = vmatpush1.msra.mxu0 0.0
    %97 = vmatprep.subr.mxu0 0.0
    %98 = vmatpush1.msra.mxu0 0.0
    %99 = vmatprep.subr.mxu0 0.0
    %100 = vmatpush1.msra.mxu0 0.0
    %101 = vmatprep.subr.mxu0 0.0
    %102 = vmatpush1.msra.mxu0 0.0
    %103 = vmatprep.subr.mxu0 0.0
    %104 = vmatpush1.msra.mxu0 0.0
    %105 = vmatprep.subr.mxu0 0.0
    %106 = vmatpush1.msra.mxu0 0.0
    %107 = vmatprep.subr.mxu0 0.0
    %108 = vmatpush1.msra.mxu0 0.0
    %109 = vmatprep.subr.mxu0 0.0
    %110 = vmatpush1.msra.mxu0 0.0
    %111 = vmatprep.subr.mxu0 0.0
    %112 = vmatpush1.msra.mxu0 0.0
    %113 = vmatprep.subr.mxu0 0.0
    %114 = vmatpush1.msra.mxu0 0.0
    %115 = vmatprep.subr.mxu0 0.0
    %116 = vmatpush1.msra.mxu0 0.0
    %117 = vmatprep.subr.mxu0 0.0
    %118 = vmatpush1.msra.mxu0 0.0
    %119 = vmatprep.subr.mxu0 0.0
    %120 = vmatpush1.msra.mxu0 0.0
    %121 = vmatprep.subr.mxu0 0.0
    %122 = vmatpush1.msra.mxu0 0.0
    %123 = vmatprep.subr.mxu0 0.0
    %124 = vmatpush1.msra.mxu0 0.0
    %125 = vmatprep.subr.mxu0 0.0
    %126 = vmatpush1.msra.mxu0 0.0
    %127 = vmatprep.subr.mxu0 0.0
    %128 = vmatpush1.msra.mxu0 0.0
    %129 = vmatprep.subr.mxu0 0.0
    %130 = vmatpush1.msra.mxu0 0.0
    %131 = vmatprep.subr.mxu0 0.0
    %132 = vmatpush1.msra.mxu0 0.0
    %133 = vmatprep.subr.mxu0 0.0
    %134 = vmatpush1.msra.mxu0 0.0
    %135 = vmatprep.subr.mxu0 0.0
    %136 = vmatpush1.msra.mxu0 0.0
    %137 = vmatprep.subr.mxu0 0.0
    %138 = vmatpush1.msra.mxu0 0.0
    %139 = vmatprep.mubr.f32.mxu0 0.0
    %140 = vmatmul.mubr.f32.gmra.mrb[0].mxu0 %v64
    %v141 = vpop.f32.mrb[0].mxu0
    %v142 = vadd.f32 %v45, %v141
    %v143 = vpop.f32.mrb[0].mxu0
    %v144 = vadd.f32 %v45, %v143
    %145 = vmatprep.mubr.f32.mxu0 0.0
    %146 = vmatmul.mubr.f32.gmra.mrb[0].mxu0 %v67
    %v147 = vpop.f32.mrb[0].mxu0
    %v148 = vadd.f32 %v50, %v147
    %v149 = vpop.f32.mrb[0].mxu0
    %v150 = vadd.f32 %v50, %v149
    %151 = vmatprep.mubr.f32.mxu0 0.0
    %152 = vmatmul.mubr.f32.gmra.mrb[0].mxu0 %v70
    %v153 = vpop.f32.mrb[0].mxu0
    %v154 = vadd.f32 %v55, %v153
    %v155 = vpop.f32.mrb[0].mxu0
    %v156 = vadd.f32 %v55, %v155
    %157 = vmatprep.mubr.f32.mxu0 0.0
    %158 = vmatmul.mubr.f32.gmra.mrb[0].mxu0 %v73
    %v159 = vpop.f32.mrb[0].mxu0
    %v160 = vadd.f32 %v60, %v159
    %v161 = vpop.f32.mrb[0].mxu0
    %v162 = vadd.f32 %v60, %v161
    %163 = vdwg.mxu0
    %164 = vmatprep.subr.mxu0 %v33
    %165 = vmatpush1.msra.mxu0 %v32
    %166 = vmatprep.subr.mxu0 0.0
    %167 = vmatpush1.msra.mxu0 0.0
    %168 = vmatprep.subr.mxu0 0.0
    %169 = vmatpush1.msra.mxu0 0.0
    %170 = vmatprep.subr.mxu0 0.0
    %171 = vmatpush1.msra.mxu0 0.0
    %172 = vmatprep.subr.mxu0 0.0
    %173 = vmatpush1.msra.mxu0 0.0
    %174 = vmatprep.subr.mxu0 0.0
    %175 = vmatpush1.msra.mxu0 0.0
    %176 = vmatprep.subr.mxu0 0.0
    %177 = vmatpush1.msra.mxu0 0.0
    %178 = vmatprep.subr.mxu0 0.0
    %179 = vmatpush1.msra.mxu0 0.0
    %180 = vmatprep.subr.mxu0 0.0
    %181 = vmatpush1.msra.mxu0 0.0
    %182 = vmatprep.subr.mxu0 0.0
    %183 = vmatpush1.msra.mxu0 0.0
    %184 = vmatprep.subr.mxu0 0.0
    %185 = vmatpush1.msra.mxu0 0.0
    %186 = vmatprep.subr.mxu0 0.0
    %187 = vmatpush1.msra.mxu0 0.0
    %188 = vmatprep.subr.mxu0 0.0
    %189 = vmatpush1.msra.mxu0 0.0
    %190 = vmatprep.subr.mxu0 0.0
    %191 = vmatpush1.msra.mxu0 0.0
    %192 = vmatprep.subr.mxu0 0.0
    %193 = vmatpush1.msra.mxu0 0.0
    %194 = vmatprep.subr.mxu0 0.0
    %195 = vmatpush1.msra.mxu0 0.0
    %196 = vmatprep.subr.mxu0 0.0
    %197 = vmatpush1.msra.mxu0 0.0
    %198 = vmatprep.subr.mxu0 0.0
    %199 = vmatpush1.msra.mxu0 0.0
    %200 = vmatprep.subr.mxu0 0.0
    %201 = vmatpush1.msra.mxu0 0.0
    %202 = vmatprep.subr.mxu0 0.0
    %203 = vmatpush1.msra.mxu0 0.0
    %204 = vmatprep.subr.mxu0 0.0
    %205 = vmatpush1.msra.mxu0 0.0
    %206 = vmatprep.subr.mxu0 0.0
    %207 = vmatpush1.msra.mxu0 0.0
    %208 = vmatprep.subr.mxu0 0.0
    %209 = vmatpush1.msra.mxu0 0.0
    %210 = vmatprep.subr.mxu0 0.0
    %211 = vmatpush1.msra.mxu0 0.0
    %212 = vmatprep.subr.mxu0 0.0
    %213 = vmatpush1.msra.mxu0 0.0
    %214 = vmatprep.subr.mxu0 0.0
    %215 = vmatpush1.msra.mxu0 0.0
    %216 = vmatprep.subr.mxu0 0.0
    %217 = vmatpush1.msra.mxu0 0.0
    %218 = vmatprep.subr.mxu0 0.0
    %219 = vmatpush1.msra.mxu0 0.0
    %220 = vmatprep.subr.mxu0 0.0
    %221 = vmatpush1.msra.mxu0 0.0
    %222 = vmatprep.subr.mxu0 0.0
    %223 = vmatpush1.msra.mxu0 0.0
    %224 = vmatprep.subr.mxu0 0.0
    %225 = vmatpush1.msra.mxu0 0.0
    %226 = vmatprep.subr.mxu0 0.0
    %227 = vmatpush1.msra.mxu0 0.0
    %228 = vmatprep.mubr.f32.mxu0 0.0
    %229 = vmatmul.mubr.f32.gmra.mrb[0].mxu0 %v64
    %v230 = vpop.f32.mrb[0].mxu0
    %v231 = vadd.f32 %v45, %v230
    %v232 = vpop.f32.mrb[0].mxu0
    %v233 = vadd.f32 %v45, %v232
    %234 = vmatprep.mubr.f32.mxu0 0.0
    %235 = vmatmul.mubr.f32.gmra.mrb[0].mxu0 %v67
    %v236 = vpop.f32.mrb[0].mxu0
    %v237 = vadd.f32 %v50, %v236
    %v238 = vpop.f32.mrb[0].mxu0
    %v239 = vadd.f32 %v50, %v238
    %240 = vmatprep.mubr.f32.mxu0 0.0
    %241 = vmatmul.mubr.f32.gmra.mrb[0].mxu0 %v70
    %v242 = vpop.f32.mrb[0].mxu0
    %v243 = vadd.f32 %v55, %v242
    %v244 = vpop.f32.mrb[0].mxu0
    %v245 = vadd.f32 %v55, %v244
    %246 = vmatprep.mubr.f32.mxu0 0.0
    %247 = vmatmul.mubr.f32.gmra.mrb[0].mxu0 %v73
    %v248 = vpop.f32.mrb[0].mxu0
    %v249 = vadd.f32 %v60, %v248
    %v250 = vpop.f32.mrb[0].mxu0
    %v251 = vadd.f32 %v60, %v250
    %252 = vdwg.mxu0
    %253 = vmatprep.subr.mxu0 %v35
    %254 = vmatpush1.msra.mxu0 %v34
    %255 = vmatprep.subr.mxu0 0.0
    %256 = vmatpush1.msra.mxu0 0.0
    %257 = vmatprep.subr.mxu0 0.0
    %258 = vmatpush1.msra.mxu0 0.0
    %259 = vmatprep.subr.mxu0 0.0
    %260 = vmatpush1.msra.mxu0 0.0
    %261 = vmatprep.subr.mxu0 0.0
    %262 = vmatpush1.msra.mxu0 0.0
    %263 = vmatprep.subr.mxu0 0.0
    %264 = vmatpush1.msra.mxu0 0.0
    %265 = vmatprep.subr.mxu0 0.0
    %266 = vmatpush1.msra.mxu0 0.0
    %267 = vmatprep.subr.mxu0 0.0
    %268 = vmatpush1.msra.mxu0 0.0
    %269 = vmatprep.subr.mxu0 0.0
    %270 = vmatpush1.msra.mxu0 0.0
    %271 = vmatprep.subr.mxu0 0.0
    %272 = vmatpush1.msra.mxu0 0.0
    %273 = vmatprep.subr.mxu0 0.0
    %274 = vmatpush1.msra.mxu0 0.0
    %275 = vmatprep.subr.mxu0 0.0
    %276 = vmatpush1.msra.mxu0 0.0
    %277 = vmatprep.subr.mxu0 0.0
    %278 = vmatpush1.msra.mxu0 0.0
    %279 = vmatprep.subr.mxu0 0.0
    %280 = vmatpush1.msra.mxu0 0.0
    %281 = vmatprep.subr.mxu0 0.0
    %282 = vmatpush1.msra.mxu0 0.0
    %283 = vmatprep.subr.mxu0 0.0
    %284 = vmatpush1.msra.mxu0 0.0
    %285 = vmatprep.subr.mxu0 0.0
    %286 = vmatpush1.msra.mxu0 0.0
    %287 = vmatprep.subr.mxu0 0.0
    %288 = vmatpush1.msra.mxu0 0.0
    %289 = vmatprep.subr.mxu0 0.0
    %290 = vmatpush1.msra.mxu0 0.0
    %291 = vmatprep.subr.mxu0 0.0
    %292 = vmatpush1.msra.mxu0 0.0
    %293 = vmatprep.subr.mxu0 0.0
    %294 = vmatpush1.msra.mxu0 0.0
    %295 = vmatprep.subr.mxu0 0.0
    %296 = vmatpush1.msra.mxu0 0.0
    %297 = vmatprep.subr.mxu0 0.0
    %298 = vmatpush1.msra.mxu0 0.0
    %299 = vmatprep.subr.mxu0 0.0
    %300 = vmatpush1.msra.mxu0 0.0
    %301 = vmatprep.subr.mxu0 0.0
    %302 = vmatpush1.msra.mxu0 0.0
    %303 = vmatprep.subr.mxu0 0.0
    %304 = vmatpush1.msra.mxu0 0.0
    %305 = vmatprep.subr.mxu0 0.0
    %306 = vmatpush1.msra.mxu0 0.0
    %307 = vmatprep.subr.mxu0 0.0
    %308 = vmatpush1.msra.mxu0 0.0
    %309 = vmatprep.subr.mxu0 0.0
    %310 = vmatpush1.msra.mxu0 0.0
    %311 = vmatprep.subr.mxu0 0.0
    %312 = vmatpush1.msra.mxu0 0.0
    %313 = vmatprep.subr.mxu0 0.0
    %314 = vmatpush1.msra.mxu0 0.0
    %315 = vmatprep.subr.mxu0 0.0
    %316 = vmatpush1.msra.mxu0 0.0
    %317 = vmatprep.mubr.f32.mxu0 0.0
    %318 = vmatmul.mubr.f32.gmra.mrb[0].mxu0 %v64
    %v319 = vpop.f32.mrb[0].mxu0
    %v320 = vadd.f32 %v45, %v319
    %v321 = vpop.f32.mrb[0].mxu0
    %v322 = vadd.f32 %v45, %v321
    %323 = vmatprep.mubr.f32.mxu0 0.0
    %324 = vmatmul.mubr.f32.gmra.mrb[0].mxu0 %v67
    %v325 = vpop.f32.mrb[0].mxu0
    %v326 = vadd.f32 %v50, %v325
    %v327 = vpop.f32.mrb[0].mxu0
    %v328 = vadd.f32 %v50, %v327
    %329 = vmatprep.mubr.f32.mxu0 0.0
    %330 = vmatmul.mubr.f32.gmra.mrb[0].mxu0 %v70
    %v331 = vpop.f32.mrb[0].mxu0
    %v332 = vadd.f32 %v55, %v331
    %v333 = vpop.f32.mrb[0].mxu0
    %v334 = vadd.f32 %v55, %v333
    %335 = vmatprep.mubr.f32.mxu0 0.0
    %336 = vmatmul.mubr.f32.gmra.mrb[0].mxu0 %v73
    %v337 = vpop.f32.mrb[0].mxu0
    %v338 = vadd.f32 %v60, %v337
    %v339 = vpop.f32.mrb[0].mxu0
    %v340 = vadd.f32 %v60, %v339
    %341 = vdwg.mxu0
    %342 = vmatprep.subr.mxu0 %v37
    %343 = vmatpush1.msra.mxu0 %v36
    %344 = vmatprep.subr.mxu0 0.0
    %345 = vmatpush1.msra.mxu0 0.0
    %346 = vmatprep.subr.mxu0 0.0
    %347 = vmatpush1.msra.mxu0 0.0
    %348 = vmatprep.subr.mxu0 0.0
    %349 = vmatpush1.msra.mxu0 0.0
    %350 = vmatprep.subr.mxu0 0.0
    %351 = vmatpush1.msra.mxu0 0.0
    %352 = vmatprep.subr.mxu0 0.0
    %353 = vmatpush1.msra.mxu0 0.0
    %354 = vmatprep.subr.mxu0 0.0
    %355 = vmatpush1.msra.mxu0 0.0
    %356 = vmatprep.subr.mxu0 0.0
    %357 = vmatpush1.msra.mxu0 0.0
    %358 = vmatprep.subr.mxu0 0.0
    %359 = vmatpush1.msra.mxu0 0.0
    %360 = vmatprep.subr.mxu0 0.0
    %361 = vmatpush1.msra.mxu0 0.0
    %362 = vmatprep.subr.mxu0 0.0
    %363 = vmatpush1.msra.mxu0 0.0
    %364 = vmatprep.subr.mxu0 0.0
    %365 = vmatpush1.msra.mxu0 0.0
    %366 = vmatprep.subr.mxu0 0.0
    %367 = vmatpush1.msra.mxu0 0.0
    %368 = vmatprep.subr.mxu0 0.0
    %369 = vmatpush1.msra.mxu0 0.0
    %370 = vmatprep.subr.mxu0 0.0
    %371 = vmatpush1.msra.mxu0 0.0
    %372 = vmatprep.subr.mxu0 0.0
    %373 = vmatpush1.msra.mxu0 0.0
    %374 = vmatprep.subr.mxu0 0.0
    %375 = vmatpush1.msra.mxu0 0.0
    %376 = vmatprep.subr.mxu0 0.0
    %377 = vmatpush1.msra.mxu0 0.0
    %378 = vmatprep.subr.mxu0 0.0
    %379 = vmatpush1.msra.mxu0 0.0
    %380 = vmatprep.subr.mxu0 0.0
    %381 = vmatpush1.msra.mxu0 0.0
    %382 = vmatprep.subr.mxu0 0.0
    %383 = vmatpush1.msra.mxu0 0.0
    %384 = vmatprep.subr.mxu0 0.0
    %385 = vmatpush1.msra.mxu0 0.0
    %386 = vmatprep.subr.mxu0 0.0
    %387 = vmatpush1.msra.mxu0 0.0
    %388 = vmatprep.subr.mxu0 0.0
    %389 = vmatpush1.msra.mxu0 0.0
    %390 = vmatprep.subr.mxu0 0.0
    %391 = vmatpush1.msra.mxu0 0.0
    %392 = vmatprep.subr.mxu0 0.0
    %393 = vmatpush1.msra.mxu0 0.0
    %394 = vmatprep.subr.mxu0 0.0
    %395 = vmatpush1.msra.mxu0 0.0
    %396 = vmatprep.subr.mxu0 0.0
    %397 = vmatpush1.msra.mxu0 0.0
    %398 = vmatprep.subr.mxu0 0.0
    %399 = vmatpush1.msra.mxu0 0.0
    %400 = vmatprep.subr.mxu0 0.0
    %401 = vmatpush1.msra.mxu0 0.0
    %402 = vmatprep.subr.mxu0 0.0
    %403 = vmatpush1.msra.mxu0 0.0
    %404 = vmatprep.subr.mxu0 0.0
    %405 = vmatpush1.msra.mxu0 0.0
    %406 = vmatprep.mubr.f32.mxu0 0.0
    %407 = vmatmul.mubr.f32.gmra.mrb[0].mxu0 %v64
    %v408 = vpop.f32.mrb[0].mxu0
    %v409 = vadd.f32 %v45, %v408
    %v410 = vpop.f32.mrb[0].mxu0
    %v411 = vadd.f32 %v45, %v410
    %412 = vmatprep.mubr.f32.mxu0 0.0
    %413 = vmatmul.mubr.f32.gmra.mrb[0].mxu0 %v67
    %v414 = vpop.f32.mrb[0].mxu0
    %v415 = vadd.f32 %v50, %v414
    %v416 = vpop.f32.mrb[0].mxu0
    %v417 = vadd.f32 %v50, %v416
    %418 = vmatprep.mubr.f32.mxu0 0.0
    %419 = vmatmul.mubr.f32.gmra.mrb[0].mxu0 %v70
    %v420 = vpop.f32.mrb[0].mxu0
    %v421 = vadd.f32 %v55, %v420
    %v422 = vpop.f32.mrb[0].mxu0
    %v423 = vadd.f32 %v55, %v422
    %424 = vmatprep.mubr.f32.mxu0 0.0
    %425 = vmatmul.mubr.f32.gmra.mrb[0].mxu0 %v73
    %v426 = vpop.f32.mrb[0].mxu0
    %v427 = vadd.f32 %v60, %v426
    %v428 = vpop.f32.mrb[0].mxu0
    %v429 = vadd.f32 %v60, %v428
    %430 = vdwg.mxu0
    %431 = vst [vmem:[#allocation3] sm:$0xff] %v142
    %432 = vst [vmem:[#allocation3 + $0x8] sm:$0xff] %v144
    %433 = vst [vmem:[#allocation3 + $0x10] sm:$0xff] %v231
    %434 = vst [vmem:[#allocation3 + $0x18] sm:$0xff] %v233
    %435 = vst [vmem:[#allocation3 + $0x20] sm:$0xff] %v320
    %436 = vst [vmem:[#allocation3 + $0x28] sm:$0xff] %v322
    %437 = vst [vmem:[#allocation3 + $0x30] sm:$0xff] %v409
    %438 = vst [vmem:[#allocation3 + $0x38] sm:$0xff] %v411
    %439 = vst [vmem:[#allocation3 + $0x40] sm:$0xff] %v148
    %440 = vst [vmem:[#allocation3 + $0x48] sm:$0xff] %v150
    %441 = vst [vmem:[#allocation3 + $0x50] sm:$0xff] %v237
    %442 = vst [vmem:[#allocation3 + $0x58] sm:$0xff] %v239
    %443 = vst [vmem:[#allocation3 + $0x60] sm:$0xff] %v326
    %444 = vst [vmem:[#allocation3 + $0x68] sm:$0xff] %v328
    %445 = vst [vmem:[#allocation3 + $0x70] sm:$0xff] %v415
    %446 = vst [vmem:[#allocation3 + $0x78] sm:$0xff] %v417
    %447 = vst [vmem:[#allocation3 + $0x80] sm:$0xff] %v154
    %448 = vst [vmem:[#allocation3 + $0x88] sm:$0xff] %v156
    %449 = vst [vmem:[#allocation3 + $0x90] sm:$0xff] %v243
    %450 = vst [vmem:[#allocation3 + $0x98] sm:$0xff] %v245
    %451 = vst [vmem:[#allocation3 + $0xa0] sm:$0xff] %v332
    %452 = vst [vmem:[#allocation3 + $0xa8] sm:$0xff] %v334
    %453 = vst [vmem:[#allocation3 + $0xb0] sm:$0xff] %v421
    %454 = vst [vmem:[#allocation3 + $0xb8] sm:$0xff] %v423
    %455 = vst [vmem:[#allocation3 + $0xc0] sm:$0xff] %v160
    %456 = vst [vmem:[#allocation3 + $0xc8] sm:$0xff] %v162
    %457 = vst [vmem:[#allocation3 + $0xd0] sm:$0xff] %v249
    %458 = vst [vmem:[#allocation3 + $0xd8] sm:$0xff] %v251
    %459 = vst [vmem:[#allocation3 + $0xe0] sm:$0xff] %v338
    %460 = vst [vmem:[#allocation3 + $0xe8] sm:$0xff] %v340
    %461 = vst [vmem:[#allocation3 + $0xf0] sm:$0xff] %v427
    %462 = vst [vmem:[#allocation3 + $0xf8] sm:$0xff] %v429
    %v463 = vld [vmem:[%s2] sm:$0xff]
    %v464 = vld [vmem:[%s2 + $0x8] sm:$0xff]
    %v465 = vld [vmem:[%s2 + $0x10] sm:$0xff]
    %v466 = vld [vmem:[%s2 + $0x18] sm:$0xff]
    %468 = vset.pattern.permute.xlu0 0
    %469 = vperm.xlu0 %468, %v463
    %v470 = vpop.permute.xlu0 %469
    %473 = vset.pattern.permute.xlu0 0
    %474 = vperm.xlu0 %473, %v464
    %v475 = vpop.permute.xlu0 %474
    %478 = vset.pattern.permute.xlu0 0
    %479 = vperm.xlu0 %478, %v465
    %v480 = vpop.permute.xlu0 %479
    %483 = vset.pattern.permute.xlu0 0
    %484 = vperm.xlu0 %483, %v466
    %v485 = vpop.permute.xlu0 %484
    %487 = vset.pattern.permute.xlu0 1
    %488 = vperm.xlu0 %487, %v463
    %v489 = vpop.permute.xlu0 %488
    %491 = vset.pattern.permute.xlu0 1
    %492 = vperm.xlu0 %491, %v464
    %v493 = vpop.permute.xlu0 %492
    %495 = vset.pattern.permute.xlu0 1
    %496 = vperm.xlu0 %495, %v465
    %v497 = vpop.permute.xlu0 %496
    %499 = vset.pattern.permute.xlu0 1
    %500 = vperm.xlu0 %499, %v466
    %v501 = vpop.permute.xlu0 %500
    %503 = vset.pattern.permute.xlu0 2
    %504 = vperm.xlu0 %503, %v463
    %v505 = vpop.permute.xlu0 %504
    %507 = vset.pattern.permute.xlu0 2
    %508 = vperm.xlu0 %507, %v464
    %v509 = vpop.permute.xlu0 %508
    %511 = vset.pattern.permute.xlu0 2
    %512 = vperm.xlu0 %511, %v465
    %v513 = vpop.permute.xlu0 %512
    %515 = vset.pattern.permute.xlu0 2
    %516 = vperm.xlu0 %515, %v466
    %v517 = vpop.permute.xlu0 %516
    %519 = vset.pattern.permute.xlu0 3
    %520 = vperm.xlu0 %519, %v463
    %v521 = vpop.permute.xlu0 %520
    %523 = vset.pattern.permute.xlu0 3
    %524 = vperm.xlu0 %523, %v464
    %v525 = vpop.permute.xlu0 %524
    %527 = vset.pattern.permute.xlu0 3
    %528 = vperm.xlu0 %527, %v465
    %v529 = vpop.permute.xlu0 %528
    %531 = vset.pattern.permute.xlu0 3
    %532 = vperm.xlu0 %531, %v466
    %v533 = vpop.permute.xlu0 %532
    %535 = vset.pattern.permute.xlu0 4
    %536 = vperm.xlu0 %535, %v463
    %v537 = vpop.permute.xlu0 %536
    %539 = vset.pattern.permute.xlu0 4
    %540 = vperm.xlu0 %539, %v464
    %v541 = vpop.permute.xlu0 %540
    %543 = vset.pattern.permute.xlu0 4
    %544 = vperm.xlu0 %543, %v465
    %v545 = vpop.permute.xlu0 %544
    %547 = vset.pattern.permute.xlu0 4
    %548 = vperm.xlu0 %547, %v466
    %v549 = vpop.permute.xlu0 %548
    %551 = vset.pattern.permute.xlu0 5
    %552 = vperm.xlu0 %551, %v463
    %v553 = vpop.permute.xlu0 %552
    %555 = vset.pattern.permute.xlu0 5
    %556 = vperm.xlu0 %555, %v464
    %v557 = vpop.permute.xlu0 %556
    %559 = vset.pattern.permute.xlu0 5
    %560 = vperm.xlu0 %559, %v465
    %v561 = vpop.permute.xlu0 %560
    %563 = vset.pattern.permute.xlu0 5
    %564 = vperm.xlu0 %563, %v466
    %v565 = vpop.permute.xlu0 %564
    %v567 = vld [vmem:[#allocation3] sm:$0xff]
    %v568 = vld [vmem:[#allocation3 + $0x40] sm:$0xff]
    %v569 = vld [vmem:[#allocation3 + $0x80] sm:$0xff]
    %v570 = vld [vmem:[#allocation3 + $0xc0] sm:$0xff]
    %v571 = vtanh.pop %v567
    %v572 = vtanh.pop %v568
    %v573 = vtanh.pop %v569
    %v574 = vtanh.pop %v570
    %v575 = vmul.f32 %v571, 0.5
    %v576 = vadd.f32 %v575, 0.5
    %v577 = vmul.f32 %v572, 0.5
    %v578 = vadd.f32 %v577, 0.5
    %v579 = vmul.f32 %v573, 0.5
    %v580 = vadd.f32 %v579, 0.5
    %v581 = vmul.f32 %v578, 0.0
    %v582 = vmul.f32 %v576, %v574
    %v583 = vadd.f32 %v581, %v582
    %v584 = vtanh.pop %v583
    %v585 = vmul.f32 %v580, %v584
    %586 = vst [vmem:[#allocation2] sm:$0xff] %v585
    %v587 = vld [vmem:[#allocation3 + $0x8] sm:$0xff]
    %v588 = vld [vmem:[#allocation3 + $0x48] sm:$0xff]
    %v589 = vld [vmem:[#allocation3 + $0x88] sm:$0xff]
    %v590 = vld [vmem:[#allocation3 + $0xc8] sm:$0xff]
    %v591 = vlaneseq
    %v592 = vshrl.u32 %v591, 7
    %v593 = vsub.s32 0, %v592
    %v594 = vrot.slane %v585, %v593
    %v595 = vmul.f32 %v470, %v594
    %v596 = vmul.f32 %v475, %v594
    %v597 = vmul.f32 %v480, %v594
    %v598 = vmul.f32 %v485, %v594
    %v599 = vlaneseq
    %v600 = vshrl.u32 %v599, 7
    %v601 = vsub.s32 1, %v600
    %v602 = vrot.slane %v585, %v601
    %v603 = vmul.f32 %v489, %v602
    %v604 = vmul.f32 %v493, %v602
    %v605 = vmul.f32 %v497, %v602
    %v606 = vmul.f32 %v501, %v602
    %v607 = vadd.f32 %v595, %v603
    %v608 = vadd.f32 %v596, %v604
    %v609 = vadd.f32 %v597, %v605
    %v610 = vadd.f32 %v598, %v606
    %v611 = vlaneseq
    %v612 = vshrl.u32 %v611, 7
    %v613 = vsub.s32 2, %v612
    %v614 = vrot.slane %v585, %v613
    %v615 = vmul.f32 %v505, %v614
    %v616 = vmul.f32 %v509, %v614
    %v617 = vmul.f32 %v513, %v614
    %v618 = vmul.f32 %v517, %v614
    %v619 = vlaneseq
    %v620 = vshrl.u32 %v619, 7
    %v621 = vsub.s32 3, %v620
    %v622 = vrot.slane %v585, %v621
    %v623 = vmul.f32 %v521, %v622
    %v624 = vmul.f32 %v525, %v622
    %v625 = vmul.f32 %v529, %v622
    %v626 = vmul.f32 %v533, %v622
    %v627 = vadd.f32 %v615, %v623
    %v628 = vadd.f32 %v616, %v624
    %v629 = vadd.f32 %v617, %v625
    %v630 = vadd.f32 %v618, %v626
    %v631 = vadd.f32 %v607, %v627
    %v632 = vadd.f32 %v608, %v628
    %v633 = vadd.f32 %v609, %v629
    %v634 = vadd.f32 %v610, %v630
    %v635 = vlaneseq
    %v636 = vshrl.u32 %v635, 7
    %v637 = vsub.s32 4, %v636
    %v638 = vrot.slane %v585, %v637
    %v639 = vmul.f32 %v537, %v638
    %v640 = vmul.f32 %v541, %v638
    %v641 = vmul.f32 %v545, %v638
    %v642 = vmul.f32 %v549, %v638
    %v643 = vlaneseq
    %v644 = vshrl.u32 %v643, 7
    %v645 = vsub.s32 5, %v644
    %v646 = vrot.slane %v585, %v645
    %v647 = vmul.f32 %v553, %v646
    %v648 = vmul.f32 %v557, %v646
    %v649 = vmul.f32 %v561, %v646
    %v650 = vmul.f32 %v565, %v646
    %v651 = vadd.f32 %v639, %v647
    %v652 = vadd.f32 %v640, %v648
    %v653 = vadd.f32 %v641, %v649
    %v654 = vadd.f32 %v642, %v650
    %v655 = vadd.f32 %v631, %v651
    %v656 = vadd.f32 %v632, %v652
    %v657 = vadd.f32 %v633, %v653
    %v658 = vadd.f32 %v634, %v654
    %v659 = vadd.f32 %v587, %v655
    %v660 = vadd.f32 %v588, %v656
    %v661 = vadd.f32 %v589, %v657
    %v662 = vadd.f32 %v590, %v658
    %v663 = vtanh.pop %v659
    %v664 = vtanh.pop %v660
    %v665 = vtanh.pop %v661
    %v666 = vtanh.pop %v662
    %v667 = vmul.f32 %v663, 0.5
    %v668 = vadd.f32 %v667, 0.5
    %v669 = vmul.f32 %v664, 0.5
    %v670 = vadd.f32 %v669, 0.5
    %v671 = vmul.f32 %v665, 0.5
    %v672 = vadd.f32 %v671, 0.5
    %v673 = vmul.f32 %v670, %v583
    %v674 = vmul.f32 %v668, %v666
    %v675 = vadd.f32 %v673, %v674
    %v676 = vtanh.pop %v675
    %v677 = vmul.f32 %v672, %v676
    %678 = vst [vmem:[#allocation2 + $0x8] sm:$0xff] %v677
    %v679 = vld [vmem:[#allocation3 + $0x10] sm:$0xff]
    %v680 = vld [vmem:[#allocation3 + $0x50] sm:$0xff]
    %v681 = vld [vmem:[#allocation3 + $0x90] sm:$0xff]
    %v682 = vld [vmem:[#allocation3 + $0xd0] sm:$0xff]
    %v683 = vlaneseq
    %v684 = vshrl.u32 %v683, 7
    %v685 = vsub.s32 0, %v684
    %v686 = vrot.slane %v677, %v685
    %v687 = vmul.f32 %v470, %v686
    %v688 = vmul.f32 %v475, %v686
    %v689 = vmul.f32 %v480, %v686
    %v690 = vmul.f32 %v485, %v686
    %v691 = vlaneseq
    %v692 = vshrl.u32 %v691, 7
    %v693 = vsub.s32 1, %v692
    %v694 = vrot.slane %v677, %v693
    %v695 = vmul.f32 %v489, %v694
    %v696 = vmul.f32 %v493, %v694
    %v697 = vmul.f32 %v497, %v694
    %v698 = vmul.f32 %v501, %v694
    %v699 = vadd.f32 %v687, %v695
    %v700 = vadd.f32 %v688, %v696
    %v701 = vadd.f32 %v689, %v697
    %v702 = vadd.f32 %v690, %v698
    %v703 = vlaneseq
    %v704 = vshrl.u32 %v703, 7
    %v705 = vsub.s32 2, %v704
    %v706 = vrot.slane %v677, %v705
    %v707 = vmul.f32 %v505, %v706
    %v708 = vmul.f32 %v509, %v706
    %v709 = vmul.f32 %v513, %v706
    %v710 = vmul.f32 %v517, %v706
    %v711 = vlaneseq
    %v712 = vshrl.u32 %v711, 7
    %v713 = vsub.s32 3, %v712
    %v714 = vrot.slane %v677, %v713
    %v715 = vmul.f32 %v521, %v714
    %v716 = vmul.f32 %v525, %v714
    %v717 = vmul.f32 %v529, %v714
    %v718 = vmul.f32 %v533, %v714
    %v719 = vadd.f32 %v707, %v715
    %v720 = vadd.f32 %v708, %v716
    %v721 = vadd.f32 %v709, %v717
    %v722 = vadd.f32 %v710, %v718
    %v723 = vadd.f32 %v699, %v719
    %v724 = vadd.f32 %v700, %v720
    %v725 = vadd.f32 %v701, %v721
    %v726 = vadd.f32 %v702, %v722
    %v727 = vlaneseq
    %v728 = vshrl.u32 %v727, 7
    %v729 = vsub.s32 4, %v728
    %v730 = vrot.slane %v677, %v729
    %v731 = vmul.f32 %v537, %v730
    %v732 = vmul.f32 %v541, %v730
    %v733 = vmul.f32 %v545, %v730
    %v734 = vmul.f32 %v549, %v730
    %v735 = vlaneseq
    %v736 = vshrl.u32 %v735, 7
    %v737 = vsub.s32 5, %v736
    %v738 = vrot.slane %v677, %v737
    %v739 = vmul.f32 %v553, %v738
    %v740 = vmul.f32 %v557, %v738
    %v741 = vmul.f32 %v561, %v738
    %v742 = vmul.f32 %v565, %v738
    %v743 = vadd.f32 %v731, %v739
    %v744 = vadd.f32 %v732, %v740
    %v745 = vadd.f32 %v733, %v741
    %v746 = vadd.f32 %v734, %v742
    %v747 = vadd.f32 %v723, %v743
    %v748 = vadd.f32 %v724, %v744
    %v749 = vadd.f32 %v725, %v745
    %v750 = vadd.f32 %v726, %v746
    %v751 = vadd.f32 %v679, %v747
    %v752 = vadd.f32 %v680, %v748
    %v753 = vadd.f32 %v681, %v749
    %v754 = vadd.f32 %v682, %v750
    %v755 = vtanh.pop %v751
    %v756 = vtanh.pop %v752
    %v757 = vtanh.pop %v753
    %v758 = vtanh.pop %v754
    %v759 = vmul.f32 %v755, 0.5
    %v760 = vadd.f32 %v759, 0.5
    %v761 = vmul.f32 %v756, 0.5
    %v762 = vadd.f32 %v761, 0.5
    %v763 = vmul.f32 %v757, 0.5
    %v764 = vadd.f32 %v763, 0.5
    %v765 = vmul.f32 %v762, %v675
    %v766 = vmul.f32 %v760, %v758
    %v767 = vadd.f32 %v765, %v766
    %v768 = vtanh.pop %v767
    %v769 = vmul.f32 %v764, %v768
    %770 = vst [vmem:[#allocation2 + $0x10] sm:$0xff] %v769
    %v771 = vld [vmem:[#allocation3 + $0x18] sm:$0xff]
    %v772 = vld [vmem:[#allocation3 + $0x58] sm:$0xff]
    %v773 = vld [vmem:[#allocation3 + $0x98] sm:$0xff]
    %v774 = vld [vmem:[#allocation3 + $0xd8] sm:$0xff]
    %v775 = vlaneseq
    %v776 = vshrl.u32 %v775, 7
    %v777 = vsub.s32 0, %v776
    %v778 = vrot.slane %v769, %v777
    %v779 = vmul.f32 %v470, %v778
    %v780 = vmul.f32 %v475, %v778
    %v781 = vmul.f32 %v480, %v778
    %v782 = vmul.f32 %v485, %v778
    %v783 = vlaneseq
    %v784 = vshrl.u32 %v783, 7
    %v785 = vsub.s32 1, %v784
    %v786 = vrot.slane %v769, %v785
    %v787 = vmul.f32 %v489, %v786
    %v788 = vmul.f32 %v493, %v786
    %v789 = vmul.f32 %v497, %v786
    %v790 = vmul.f32 %v501, %v786
    %v791 = vadd.f32 %v779, %v787
    %v792 = vadd.f32 %v780, %v788
    %v793 = vadd.f32 %v781, %v789
    %v794 = vadd.f32 %v782, %v790
    %v795 = vlaneseq
    %v796 = vshrl.u32 %v795, 7
    %v797 = vsub.s32 2, %v796
    %v798 = vrot.slane %v769, %v797
    %v799 = vmul.f32 %v505, %v798
    %v800 = vmul.f32 %v509, %v798
    %v801 = vmul.f32 %v513, %v798
    %v802 = vmul.f32 %v517, %v798
    %v803 = vlaneseq
    %v804 = vshrl.u32 %v803, 7
    %v805 = vsub.s32 3, %v804
    %v806 = vrot.slane %v769, %v805
    %v807 = vmul.f32 %v521, %v806
    %v808 = vmul.f32 %v525, %v806
    %v809 = vmul.f32 %v529, %v806
    %v810 = vmul.f32 %v533, %v806
    %v811 = vadd.f32 %v799, %v807
    %v812 = vadd.f32 %v800, %v808
    %v813 = vadd.f32 %v801, %v809
    %v814 = vadd.f32 %v802, %v810
    %v815 = vadd.f32 %v791, %v811
    %v816 = vadd.f32 %v792, %v812
    %v817 = vadd.f32 %v793, %v813
    %v818 = vadd.f32 %v794, %v814
    %v819 = vlaneseq
    %v820 = vshrl.u32 %v819, 7
    %v821 = vsub.s32 4, %v820
    %v822 = vrot.slane %v769, %v821
    %v823 = vmul.f32 %v537, %v822
    %v824 = vmul.f32 %v541, %v822
    %v825 = vmul.f32 %v545, %v822
    %v826 = vmul.f32 %v549, %v822
    %v827 = vlaneseq
    %v828 = vshrl.u32 %v827, 7
    %v829 = vsub.s32 5, %v828
    %v830 = vrot.slane %v769, %v829
    %v831 = vmul.f32 %v553, %v830
    %v832 = vmul.f32 %v557, %v830
    %v833 = vmul.f32 %v561, %v830
    %v834 = vmul.f32 %v565, %v830
    %v835 = vadd.f32 %v823, %v831
    %v836 = vadd.f32 %v824, %v832
    %v837 = vadd.f32 %v825, %v833
    %v838 = vadd.f32 %v826, %v834
    %v839 = vadd.f32 %v815, %v835
    %v840 = vadd.f32 %v816, %v836
    %v841 = vadd.f32 %v817, %v837
    %v842 = vadd.f32 %v818, %v838
    %v843 = vadd.f32 %v771, %v839
    %v844 = vadd.f32 %v772, %v840
    %v845 = vadd.f32 %v773, %v841
    %v846 = vadd.f32 %v774, %v842
    %v847 = vtanh.pop %v843
    %v848 = vtanh.pop %v844
    %v849 = vtanh.pop %v845
    %v850 = vtanh.pop %v846
    %v851 = vmul.f32 %v847, 0.5
    %v852 = vadd.f32 %v851, 0.5
    %v853 = vmul.f32 %v848, 0.5
    %v854 = vadd.f32 %v853, 0.5
    %v855 = vmul.f32 %v849, 0.5
    %v856 = vadd.f32 %v855, 0.5
    %v857 = vmul.f32 %v854, %v767
    %v858 = vmul.f32 %v852, %v850
    %v859 = vadd.f32 %v857, %v858
    %v860 = vtanh.pop %v859
    %v861 = vmul.f32 %v856, %v860
    %862 = vst [vmem:[#allocation2 + $0x18] sm:$0xff] %v861
    %v863 = vld [vmem:[#allocation3 + $0x20] sm:$0xff]
    %v864 = vld [vmem:[#allocation3 + $0x60] sm:$0xff]
    %v865 = vld [vmem:[#allocation3 + $0xa0] sm:$0xff]
    %v866 = vld [vmem:[#allocation3 + $0xe0] sm:$0xff]
    %v867 = vlaneseq
    %v868 = vshrl.u32 %v867, 7
    %v869 = vsub.s32 0, %v868
    %v870 = vrot.slane %v861, %v869
    %v871 = vmul.f32 %v470, %v870
    %v872 = vmul.f32 %v475, %v870
    %v873 = vmul.f32 %v480, %v870
    %v874 = vmul.f32 %v485, %v870
    %v875 = vlaneseq
    %v876 = vshrl.u32 %v875, 7
    %v877 = vsub.s32 1, %v876
    %v878 = vrot.slane %v861, %v877
    %v879 = vmul.f32 %v489, %v878
    %v880 = vmul.f32 %v493, %v878
    %v881 = vmul.f32 %v497, %v878
    %v882 = vmul.f32 %v501, %v878
    %v883 = vadd.f32 %v871, %v879
    %v884 = vadd.f32 %v872, %v880
    %v885 = vadd.f32 %v873, %v881
    %v886 = vadd.f32 %v874, %v882
    %v887 = vlaneseq
    %v888 = vshrl.u32 %v887, 7
    %v889 = vsub.s32 2, %v888
    %v890 = vrot.slane %v861, %v889
    %v891 = vmul.f32 %v505, %v890
    %v892 = vmul.f32 %v509, %v890
    %v893 = vmul.f32 %v513, %v890
    %v894 = vmul.f32 %v517, %v890
    %v895 = vlaneseq
    %v896 = vshrl.u32 %v895, 7
    %v897 = vsub.s32 3, %v896
    %v898 = vrot.slane %v861, %v897
    %v899 = vmul.f32 %v521, %v898
    %v900 = vmul.f32 %v525, %v898
    %v901 = vmul.f32 %v529, %v898
    %v902 = vmul.f32 %v533, %v898
    %v903 = vadd.f32 %v891, %v899
    %v904 = vadd.f32 %v892, %v900
    %v905 = vadd.f32 %v893, %v901
    %v906 = vadd.f32 %v894, %v902
    %v907 = vadd.f32 %v883, %v903
    %v908 = vadd.f32 %v884, %v904
    %v909 = vadd.f32 %v885, %v905
    %v910 = vadd.f32 %v886, %v906
    %v911 = vlaneseq
    %v912 = vshrl.u32 %v911, 7
    %v913 = vsub.s32 4, %v912
    %v914 = vrot.slane %v861, %v913
    %v915 = vmul.f32 %v537, %v914
    %v916 = vmul.f32 %v541, %v914
    %v917 = vmul.f32 %v545, %v914
    %v918 = vmul.f32 %v549, %v914
    %v919 = vlaneseq
    %v920 = vshrl.u32 %v919, 7
    %v921 = vsub.s32 5, %v920
    %v922 = vrot.slane %v861, %v921
    %v923 = vmul.f32 %v553, %v922
    %v924 = vmul.f32 %v557, %v922
    %v925 = vmul.f32 %v561, %v922
    %v926 = vmul.f32 %v565, %v922
    %v927 = vadd.f32 %v915, %v923
    %v928 = vadd.f32 %v916, %v924
    %v929 = vadd.f32 %v917, %v925
    %v930 = vadd.f32 %v918, %v926
    %v931 = vadd.f32 %v907, %v927
    %v932 = vadd.f32 %v908, %v928
    %v933 = vadd.f32 %v909, %v929
    %v934 = vadd.f32 %v910, %v930
    %v935 = vadd.f32 %v863, %v931
    %v936 = vadd.f32 %v864, %v932
    %v937 = vadd.f32 %v865, %v933
    %v938 = vadd.f32 %v866, %v934
    %v939 = vtanh.pop %v935
    %v940 = vtanh.pop %v936
    %v941 = vtanh.pop %v937
    %v942 = vtanh.pop %v938
    %v943 = vmul.f32 %v939, 0.5
    %v944 = vadd.f32 %v943, 0.5
    %v945 = vmul.f32 %v940, 0.5
    %v946 = vadd.f32 %v945, 0.5
    %v947 = vmul.f32 %v941, 0.5
    %v948 = vadd.f32 %v947, 0.5
    %v949 = vmul.f32 %v946, %v859
    %v950 = vmul.f32 %v944, %v942
    %v951 = vadd.f32 %v949, %v950
    %v952 = vtanh.pop %v951
    %v953 = vmul.f32 %v948, %v952
    %954 = vst [vmem:[#allocation2 + $0x20] sm:$0xff] %v953
    %v955 = vld [vmem:[#allocation3 + $0x28] sm:$0xff]
    %v956 = vld [vmem:[#allocation3 + $0x68] sm:$0xff]
    %v957 = vld [vmem:[#allocation3 + $0xa8] sm:$0xff]
    %v958 = vld [vmem:[#allocation3 + $0xe8] sm:$0xff]
    %v959 = vlaneseq
    %v960 = vshrl.u32 %v959, 7
    %v961 = vsub.s32 0, %v960
    %v962 = vrot.slane %v953, %v961
    %v963 = vmul.f32 %v470, %v962
    %v964 = vmul.f32 %v475, %v962
    %v965 = vmul.f32 %v480, %v962
    %v966 = vmul.f32 %v485, %v962
    %v967 = vlaneseq
    %v968 = vshrl.u32 %v967, 7
    %v969 = vsub.s32 1, %v968
    %v970 = vrot.slane %v953, %v969
    %v971 = vmul.f32 %v489, %v970
    %v972 = vmul.f32 %v493, %v970
    %v973 = vmul.f32 %v497, %v970
    %v974 = vmul.f32 %v501, %v970
    %v975 = vadd.f32 %v963, %v971
    %v976 = vadd.f32 %v964, %v972
    %v977 = vadd.f32 %v965, %v973
    %v978 = vadd.f32 %v966, %v974
    %v979 = vlaneseq
    %v980 = vshrl.u32 %v979, 7
    %v981 = vsub.s32 2, %v980
    %v982 = vrot.slane %v953, %v981
    %v983 = vmul.f32 %v505, %v982
    %v984 = vmul.f32 %v509, %v982
    %v985 = vmul.f32 %v513, %v982
    %v986 = vmul.f32 %v517, %v982
    %v987 = vlaneseq
    %v988 = vshrl.u32 %v987, 7
    %v989 = vsub.s32 3, %v988
    %v990 = vrot.slane %v953, %v989
    %v991 = vmul.f32 %v521, %v990
    %v992 = vmul.f32 %v525, %v990
    %v993 = vmul.f32 %v529, %v990
    %v994 = vmul.f32 %v533, %v990
    %v995 = vadd.f32 %v983, %v991
    %v996 = vadd.f32 %v984, %v992
    %v997 = vadd.f32 %v985, %v993
    %v998 = vadd.f32 %v986, %v994
    %v999 = vadd.f32 %v975, %v995
    %v1000 = vadd.f32 %v976, %v996
    %v1001 = vadd.f32 %v977, %v997
    %v1002 = vadd.f32 %v978, %v998
    %v1003 = vlaneseq
    %v1004 = vshrl.u32 %v1003, 7
    %v1005 = vsub.s32 4, %v1004
    %v1006 = vrot.slane %v953, %v1005
    %v1007 = vmul.f32 %v537, %v1006
    %v1008 = vmul.f32 %v541, %v1006
    %v1009 = vmul.f32 %v545, %v1006
    %v1010 = vmul.f32 %v549, %v1006
    %v1011 = vlaneseq
    %v1012 = vshrl.u32 %v1011, 7
    %v1013 = vsub.s32 5, %v1012
    %v1014 = vrot.slane %v953, %v1013
    %v1015 = vmul.f32 %v553, %v1014
    %v1016 = vmul.f32 %v557, %v1014
    %v1017 = vmul.f32 %v561, %v1014
    %v1018 = vmul.f32 %v565, %v1014
    %v1019 = vadd.f32 %v1007, %v1015
    %v1020 = vadd.f32 %v1008, %v1016
    %v1021 = vadd.f32 %v1009, %v1017
    %v1022 = vadd.f32 %v1010, %v1018
    %v1023 = vadd.f32 %v999, %v1019
    %v1024 = vadd.f32 %v1000, %v1020
    %v1025 = vadd.f32 %v1001, %v1021
    %v1026 = vadd.f32 %v1002, %v1022
    %v1027 = vadd.f32 %v955, %v1023
    %v1028 = vadd.f32 %v956, %v1024
    %v1029 = vadd.f32 %v957, %v1025
    %v1030 = vadd.f32 %v958, %v1026
    %v1031 = vtanh.pop %v1027
    %v1032 = vtanh.pop %v1028
    %v1033 = vtanh.pop %v1029
    %v1034 = vtanh.pop %v1030
    %v1035 = vmul.f32 %v1031, 0.5
    %v1036 = vadd.f32 %v1035, 0.5
    %v1037 = vmul.f32 %v1032, 0.5
    %v1038 = vadd.f32 %v1037, 0.5
    %v1039 = vmul.f32 %v1033, 0.5
    %v1040 = vadd.f32 %v1039, 0.5
    %v1041 = vmul.f32 %v1038, %v951
    %v1042 = vmul.f32 %v1036, %v1034
    %v1043 = vadd.f32 %v1041, %v1042
    %v1044 = vtanh.pop %v1043
    %v1045 = vmul.f32 %v1040, %v1044
    %1046 = vst [vmem:[#allocation2 + $0x28] sm:$0xff] %v1045
    %v1047 = vld [vmem:[#allocation3 + $0x30] sm:$0xff]
    %v1048 = vld [vmem:[#allocation3 + $0x70] sm:$0xff]
    %v1049 = vld [vmem:[#allocation3 + $0xb0] sm:$0xff]
    %v1050 = vld [vmem:[#allocation3 + $0xf0] sm:$0xff]
    %v1051 = vlaneseq
    %v1052 = vshrl.u32 %v1051, 7
    %v1053 = vsub.s32 0, %v1052
    %v1054 = vrot.slane %v1045, %v1053
    %v1055 = vmul.f32 %v470, %v1054
    %v1056 = vmul.f32 %v475, %v1054
    %v1057 = vmul.f32 %v480, %v1054
    %v1058 = vmul.f32 %v485, %v1054
    %v1059 = vlaneseq
    %v1060 = vshrl.u32 %v1059, 7
    %v1061 = vsub.s32 1, %v1060
    %v1062 = vrot.slane %v1045, %v1061
    %v1063 = vmul.f32 %v489, %v1062
    %v1064 = vmul.f32 %v493, %v1062
    %v1065 = vmul.f32 %v497, %v1062
    %v1066 = vmul.f32 %v501, %v1062
    %v1067 = vadd.f32 %v1055, %v1063
    %v1068 = vadd.f32 %v1056, %v1064
    %v1069 = vadd.f32 %v1057, %v1065
    %v1070 = vadd.f32 %v1058, %v1066
    %v1071 = vlaneseq
    %v1072 = vshrl.u32 %v1071, 7
    %v1073 = vsub.s32 2, %v1072
    %v1074 = vrot.slane %v1045, %v1073
    %v1075 = vmul.f32 %v505, %v1074
    %v1076 = vmul.f32 %v509, %v1074
    %v1077 = vmul.f32 %v513, %v1074
    %v1078 = vmul.f32 %v517, %v1074
    %v1079 = vlaneseq
    %v1080 = vshrl.u32 %v1079, 7
    %v1081 = vsub.s32 3, %v1080
    %v1082 = vrot.slane %v1045, %v1081
    %v1083 = vmul.f32 %v521, %v1082
    %v1084 = vmul.f32 %v525, %v1082
    %v1085 = vmul.f32 %v529, %v1082
    %v1086 = vmul.f32 %v533, %v1082
    %v1087 = vadd.f32 %v1075, %v1083
    %v1088 = vadd.f32 %v1076, %v1084
    %v1089 = vadd.f32 %v1077, %v1085
    %v1090 = vadd.f32 %v1078, %v1086
    %v1091 = vadd.f32 %v1067, %v1087
    %v1092 = vadd.f32 %v1068, %v1088
    %v1093 = vadd.f32 %v1069, %v1089
    %v1094 = vadd.f32 %v1070, %v1090
    %v1095 = vlaneseq
    %v1096 = vshrl.u32 %v1095, 7
    %v1097 = vsub.s32 4, %v1096
    %v1098 = vrot.slane %v1045, %v1097
    %v1099 = vmul.f32 %v537, %v1098
    %v1100 = vmul.f32 %v541, %v1098
    %v1101 = vmul.f32 %v545, %v1098
    %v1102 = vmul.f32 %v549, %v1098
    %v1103 = vlaneseq
    %v1104 = vshrl.u32 %v1103, 7
    %v1105 = vsub.s32 5, %v1104
    %v1106 = vrot.slane %v1045, %v1105
    %v1107 = vmul.f32 %v553, %v1106
    %v1108 = vmul.f32 %v557, %v1106
    %v1109 = vmul.f32 %v561, %v1106
    %v1110 = vmul.f32 %v565, %v1106
    %v1111 = vadd.f32 %v1099, %v1107
    %v1112 = vadd.f32 %v1100, %v1108
    %v1113 = vadd.f32 %v1101, %v1109
    %v1114 = vadd.f32 %v1102, %v1110
    %v1115 = vadd.f32 %v1091, %v1111
    %v1116 = vadd.f32 %v1092, %v1112
    %v1117 = vadd.f32 %v1093, %v1113
    %v1118 = vadd.f32 %v1094, %v1114
    %v1119 = vadd.f32 %v1047, %v1115
    %v1120 = vadd.f32 %v1048, %v1116
    %v1121 = vadd.f32 %v1049, %v1117
    %v1122 = vadd.f32 %v1050, %v1118
    %v1123 = vtanh.pop %v1119
    %v1124 = vtanh.pop %v1120
    %v1125 = vtanh.pop %v1121
    %v1126 = vtanh.pop %v1122
    %v1127 = vmul.f32 %v1123, 0.5
    %v1128 = vadd.f32 %v1127, 0.5
    %v1129 = vmul.f32 %v1124, 0.5
    %v1130 = vadd.f32 %v1129, 0.5
    %v1131 = vmul.f32 %v1125, 0.5
    %v1132 = vadd.f32 %v1131, 0.5
    %v1133 = vmul.f32 %v1130, %v1043
    %v1134 = vmul.f32 %v1128, %v1126
    %v1135 = vadd.f32 %v1133, %v1134
    %v1136 = vtanh.pop %v1135
    %v1137 = vmul.f32 %v1132, %v1136
    %1138 = vst [vmem:[#allocation2 + $0x30] sm:$0xff] %v1137
    %v1139 = vld [vmem:[#allocation3 + $0x38] sm:$0xff]
    %v1140 = vld [vmem:[#allocation3 + $0x78] sm:$0xff]
    %v1141 = vld [vmem:[#allocation3 + $0xb8] sm:$0xff]
    %v1142 = vld [vmem:[#allocation3 + $0xf8] sm:$0xff]
    %v1143 = vlaneseq
    %v1144 = vshrl.u32 %v1143, 7
    %v1145 = vsub.s32 0, %v1144
    %v1146 = vrot.slane %v1137, %v1145
    %v1147 = vmul.f32 %v470, %v1146
    %v1148 = vmul.f32 %v475, %v1146
    %v1149 = vmul.f32 %v480, %v1146
    %v1150 = vmul.f32 %v485, %v1146
    %v1151 = vlaneseq
    %v1152 = vshrl.u32 %v1151, 7
    %v1153 = vsub.s32 1, %v1152
    %v1154 = vrot.slane %v1137, %v1153
    %v1155 = vmul.f32 %v489, %v1154
    %v1156 = vmul.f32 %v493, %v1154
    %v1157 = vmul.f32 %v497, %v1154
    %v1158 = vmul.f32 %v501, %v1154
    %v1159 = vadd.f32 %v1147, %v1155
    %v1160 = vadd.f32 %v1148, %v1156
    %v1161 = vadd.f32 %v1149, %v1157
    %v1162 = vadd.f32 %v1150, %v1158
    %v1163 = vlaneseq
    %v1164 = vshrl.u32 %v1163, 7
    %v1165 = vsub.s32 2, %v1164
    %v1166 = vrot.slane %v1137, %v1165
    %v1167 = vmul.f32 %v505, %v1166
    %v1168 = vmul.f32 %v509, %v1166
    %v1169 = vmul.f32 %v513, %v1166
    %v1170 = vmul.f32 %v517, %v1166
    %v1171 = vlaneseq
    %v1172 = vshrl.u32 %v1171, 7
    %v1173 = vsub.s32 3, %v1172
    %v1174 = vrot.slane %v1137, %v1173
    %v1175 = vmul.f32 %v521, %v1174
    %v1176 = vmul.f32 %v525, %v1174
    %v1177 = vmul.f32 %v529, %v1174
    %v1178 = vmul.f32 %v533, %v1174
    %v1179 = vadd.f32 %v1167, %v1175
    %v1180 = vadd.f32 %v1168, %v1176
    %v1181 = vadd.f32 %v1169, %v1177
    %v1182 = vadd.f32 %v1170, %v1178
    %v1183 = vadd.f32 %v1159, %v1179
    %v1184 = vadd.f32 %v1160, %v1180
    %v1185 = vadd.f32 %v1161, %v1181
    %v1186 = vadd.f32 %v1162, %v1182
    %v1187 = vlaneseq
    %v1188 = vshrl.u32 %v1187, 7
    %v1189 = vsub.s32 4, %v1188
    %v1190 = vrot.slane %v1137, %v1189
    %v1191 = vmul.f32 %v537, %v1190
    %v1192 = vmul.f32 %v541, %v1190
    %v1193 = vmul.f32 %v545, %v1190
    %v1194 = vmul.f32 %v549, %v1190
    %v1195 = vlaneseq
    %v1196 = vshrl.u32 %v1195, 7
    %v1197 = vsub.s32 5, %v1196
    %v1198 = vrot.slane %v1137, %v1197
    %v1199 = vmul.f32 %v553, %v1198
    %v1200 = vmul.f32 %v557, %v1198
    %v1201 = vmul.f32 %v561, %v1198
    %v1202 = vmul.f32 %v565, %v1198
    %v1203 = vadd.f32 %v1191, %v1199
    %v1204 = vadd.f32 %v1192, %v1200
    %v1205 = vadd.f32 %v1193, %v1201
    %v1206 = vadd.f32 %v1194, %v1202
    %v1207 = vadd.f32 %v1183, %v1203
    %v1208 = vadd.f32 %v1184, %v1204
    %v1209 = vadd.f32 %v1185, %v1205
    %v1210 = vadd.f32 %v1186, %v1206
    %v1211 = vadd.f32 %v1139, %v1207
    %v1212 = vadd.f32 %v1140, %v1208
    %v1213 = vadd.f32 %v1141, %v1209
    %v1214 = vadd.f32 %v1142, %v1210
    %v1215 = vtanh.pop %v1211
    %v1216 = vtanh.pop %v1212
    %v1217 = vtanh.pop %v1213
    %v1218 = vtanh.pop %v1214
    %v1219 = vmul.f32 %v1215, 0.5
    %v1220 = vadd.f32 %v1219, 0.5
    %v1221 = vmul.f32 %v1216, 0.5
    %v1222 = vadd.f32 %v1221, 0.5
    %v1223 = vmul.f32 %v1217, 0.5
    %v1224 = vadd.f32 %v1223, 0.5
    %v1225 = vmul.f32 %v1222, %v1135
    %v1226 = vmul.f32 %v1220, %v1218
    %v1227 = vadd.f32 %v1225, %v1226
    %v1228 = vtanh.pop %v1227
    %v1229 = vmul.f32 %v1224, %v1228
    %1230 = vst [vmem:[#allocation2 + $0x38] sm:$0xff] %v1229
    %s1231 = scalar_lea.vmem %s1, 32
    %v1232 = vld [vmem:[%s1231] sm:$0xff]
    %v1233 = vld [vmem:[%s1231 + $0x8] sm:$0xff]
    %v1234 = vld [vmem:[%s1231 + $0x10] sm:$0xff]
    %v1235 = vld [vmem:[%s1231 + $0x18] sm:$0xff]
    %v1236 = vld [vmem:[#allocation2] sm:$0xff]
    %v1237 = vld [vmem:[#allocation2 + $0x8] sm:$0xff]
    %v1238 = vld [vmem:[#allocation2 + $0x10] sm:$0xff]
    %v1239 = vld [vmem:[#allocation2 + $0x18] sm:$0xff]
    %v1240 = vld [vmem:[#allocation2 + $0x20] sm:$0xff]
    %v1241 = vld [vmem:[#allocation2 + $0x28] sm:$0xff]
    %v1242 = vld [vmem:[#allocation2 + $0x30] sm:$0xff]
    %v1243 = vld [vmem:[#allocation2 + $0x38] sm:$0xff]
    %s1244 = scalar_lea.vmem %s3, 32
    %v1245 = vld [vmem:[%s1244] sm:$0xff]
    %v1246 = vld [vmem:[%s1244 + $0x8] sm:$0xff]
    %v1247 = vld [vmem:[%s1244 + $0x10] sm:$0xff]
    %v1248 = vld [vmem:[%s1244 + $0x18] sm:$0xff]
    %1250 = vset.pattern.permute.xlu0 0
    %1251 = vperm.xlu0 %1250, %v1245
    %v1252 = vpop.permute.xlu0 %1251
    %1255 = vset.pattern.permute.xlu0 0
    %1256 = vperm.xlu0 %1255, %v1246
    %v1257 = vpop.permute.xlu0 %1256
    %1260 = vset.pattern.permute.xlu0 0
    %1261 = vperm.xlu0 %1260, %v1247
    %v1262 = vpop.permute.xlu0 %1261
    %1265 = vset.pattern.permute.xlu0 0
    %1266 = vperm.xlu0 %1265, %v1248
    %v1267 = vpop.permute.xlu0 %1266
    %v1270 = vsel %vm62, %v1232, 0
    %v1273 = vsel %vm62, %v1233, 0
    %v1276 = vsel %vm62, %v1234, 0
    %v1279 = vsel %vm62, %v1235, 0
    %1281 = vmatprep.subr.mxu0 %v1237
    %1282 = vmatpush1.msra.mxu0 %v1236
    %1283 = vmatprep.subr.mxu0 0.0
    %1284 = vmatpush1.msra.mxu0 0.0
    %1285 = vmatprep.subr.mxu0 0.0
    %1286 = vmatpush1.msra.mxu0 0.0
    %1287 = vmatprep.subr.mxu0 0.0
    %1288 = vmatpush1.msra.mxu0 0.0
    %1289 = vmatprep.subr.mxu0 0.0
    %1290 = vmatpush1.msra.mxu0 0.0
    %1291 = vmatprep.subr.mxu0 0.0
    %1292 = vmatpush1.msra.mxu0 0.0
    %1293 = vmatprep.subr.mxu0 0.0
    %1294 = vmatpush1.msra.mxu0 0.0
    %1295 = vmatprep.subr.mxu0 0.0
    %1296 = vmatpush1.msra.mxu0 0.0
    %1297 = vmatprep.subr.mxu0 0.0
    %1298 = vmatpush1.msra.mxu0 0.0
    %1299 = vmatprep.subr.mxu0 0.0
    %1300 = vmatpush1.msra.mxu0 0.0
    %1301 = vmatprep.subr.mxu0 0.0
    %1302 = vmatpush1.msra.mxu0 0.0
    %1303 = vmatprep.subr.mxu0 0.0
    %1304 = vmatpush1.msra.mxu0 0.0
    %1305 = vmatprep.subr.mxu0 0.0
    %1306 = vmatpush1.msra.mxu0 0.0
    %1307 = vmatprep.subr.mxu0 0.0
    %1308 = vmatpush1.msra.mxu0 0.0
    %1309 = vmatprep.subr.mxu0 0.0
    %1310 = vmatpush1.msra.mxu0 0.0
    %1311 = vmatprep.subr.mxu0 0.0
    %1312 = vmatpush1.msra.mxu0 0.0
    %1313 = vmatprep.subr.mxu0 0.0
    %1314 = vmatpush1.msra.mxu0 0.0
    %1315 = vmatprep.subr.mxu0 0.0
    %1316 = vmatpush1.msra.mxu0 0.0
    %1317 = vmatprep.subr.mxu0 0.0
    %1318 = vmatpush1.msra.mxu0 0.0
    %1319 = vmatprep.subr.mxu0 0.0
    %1320 = vmatpush1.msra.mxu0 0.0
    %1321 = vmatprep.subr.mxu0 0.0
    %1322 = vmatpush1.msra.mxu0 0.0
    %1323 = vmatprep.subr.mxu0 0.0
    %1324 = vmatpush1.msra.mxu0 0.0
    %1325 = vmatprep.subr.mxu0 0.0
    %1326 = vmatpush1.msra.mxu0 0.0
    %1327 = vmatprep.subr.mxu0 0.0
    %1328 = vmatpush1.msra.mxu0 0.0
    %1329 = vmatprep.subr.mxu0 0.0
    %1330 = vmatpush1.msra.mxu0 0.0
    %1331 = vmatprep.subr.mxu0 0.0
    %1332 = vmatpush1.msra.mxu0 0.0
    %1333 = vmatprep.subr.mxu0 0.0
    %1334 = vmatpush1.msra.mxu0 0.0
    %1335 = vmatprep.subr.mxu0 0.0
    %1336 = vmatpush1.msra.mxu0 0.0
    %1337 = vmatprep.subr.mxu0 0.0
    %1338 = vmatpush1.msra.mxu0 0.0
    %1339 = vmatprep.subr.mxu0 0.0
    %1340 = vmatpush1.msra.mxu0 0.0
    %1341 = vmatprep.subr.mxu0 0.0
    %1342 = vmatpush1.msra.mxu0 0.0
    %1343 = vmatprep.subr.mxu0 0.0
    %1344 = vmatpush1.msra.mxu0 0.0
    %1345 = vmatprep.mubr.f32.mxu0 0.0
    %1346 = vmatmul.mubr.f32.gmra.mrb[0].mxu0 %v1270
    %v1347 = vpop.f32.mrb[0].mxu0
    %v1348 = vadd.f32 %v1252, %v1347
    %v1349 = vpop.f32.mrb[0].mxu0
    %v1350 = vadd.f32 %v1252, %v1349
    %1351 = vmatprep.mubr.f32.mxu0 0.0
    %1352 = vmatmul.mubr.f32.gmra.mrb[0].mxu0 %v1273
    %v1353 = vpop.f32.mrb[0].mxu0
    %v1354 = vadd.f32 %v1257, %v1353
    %v1355 = vpop.f32.mrb[0].mxu0
    %v1356 = vadd.f32 %v1257, %v1355
    %1357 = vmatprep.mubr.f32.mxu0 0.0
    %1358 = vmatmul.mubr.f32.gmra.mrb[0].mxu0 %v1276
    %v1359 = vpop.f32.mrb[0].mxu0
    %v1360 = vadd.f32 %v1262, %v1359
    %v1361 = vpop.f32.mrb[0].mxu0
    %v1362 = vadd.f32 %v1262, %v1361
    %1363 = vmatprep.mubr.f32.mxu0 0.0
    %1364 = vmatmul.mubr.f32.gmra.mrb[0].mxu0 %v1279
    %v1365 = vpop.f32.mrb[0].mxu0
    %v1366 = vadd.f32 %v1267, %v1365
    %v1367 = vpop.f32.mrb[0].mxu0
    %v1368 = vadd.f32 %v1267, %v1367
    %1369 = vdwg.mxu0
    %1370 = vmatprep.subr.mxu0 %v1239
    %1371 = vmatpush1.msra.mxu0 %v1238
    %1372 = vmatprep.subr.mxu0 0.0
    %1373 = vmatpush1.msra.mxu0 0.0
    %1374 = vmatprep.subr.mxu0 0.0
    %1375 = vmatpush1.msra.mxu0 0.0
    %1376 = vmatprep.subr.mxu0 0.0
    %1377 = vmatpush1.msra.mxu0 0.0
    %1378 = vmatprep.subr.mxu0 0.0
    %1379 = vmatpush1.msra.mxu0 0.0
    %1380 = vmatprep.subr.mxu0 0.0
    %1381 = vmatpush1.msra.mxu0 0.0
    %1382 = vmatprep.subr.mxu0 0.0
    %1383 = vmatpush1.msra.mxu0 0.0
    %1384 = vmatprep.subr.mxu0 0.0
    %1385 = vmatpush1.msra.mxu0 0.0
    %1386 = vmatprep.subr.mxu0 0.0
    %1387 = vmatpush1.msra.mxu0 0.0
    %1388 = vmatprep.subr.mxu0 0.0
    %1389 = vmatpush1.msra.mxu0 0.0
    %1390 = vmatprep.subr.mxu0 0.0
    %1391 = vmatpush1.msra.mxu0 0.0
    %1392 = vmatprep.subr.mxu0 0.0
    %1393 = vmatpush1.msra.mxu0 0.0
    %1394 = vmatprep.subr.mxu0 0.0
    %1395 = vmatpush1.msra.mxu0 0.0
    %1396 = vmatprep.subr.mxu0 0.0
    %1397 = vmatpush1.msra.mxu0 0.0
    %1398 = vmatprep.subr.mxu0 0.0
    %1399 = vmatpush1.msra.mxu0 0.0
    %1400 = vmatprep.subr.mxu0 0.0
    %1401 = vmatpush1.msra.mxu0 0.0
    %1402 = vmatprep.subr.mxu0 0.0
    %1403 = vmatpush1.msra.mxu0 0.0
    %1404 = vmatprep.subr.mxu0 0.0
    %1405 = vmatpush1.msra.mxu0 0.0
    %1406 = vmatprep.subr.mxu0 0.0
    %1407 = vmatpush1.msra.mxu0 0.0
    %1408 = vmatprep.subr.mxu0 0.0
    %1409 = vmatpush1.msra.mxu0 0.0
    %1410 = vmatprep.subr.mxu0 0.0
    %1411 = vmatpush1.msra.mxu0 0.0
    %1412 = vmatprep.subr.mxu0 0.0
    %1413 = vmatpush1.msra.mxu0 0.0
    %1414 = vmatprep.subr.mxu0 0.0
    %1415 = vmatpush1.msra.mxu0 0.0
    %1416 = vmatprep.subr.mxu0 0.0
    %1417 = vmatpush1.msra.mxu0 0.0
    %1418 = vmatprep.subr.mxu0 0.0
    %1419 = vmatpush1.msra.mxu0 0.0
    %1420 = vmatprep.subr.mxu0 0.0
    %1421 = vmatpush1.msra.mxu0 0.0
    %1422 = vmatprep.subr.mxu0 0.0
    %1423 = vmatpush1.msra.mxu0 0.0
    %1424 = vmatprep.subr.mxu0 0.0
    %1425 = vmatpush1.msra.mxu0 0.0
    %1426 = vmatprep.subr.mxu0 0.0
    %1427 = vmatpush1.msra.mxu0 0.0
    %1428 = vmatprep.subr.mxu0 0.0
    %1429 = vmatpush1.msra.mxu0 0.0
    %1430 = vmatprep.subr.mxu0 0.0
    %1431 = vmatpush1.msra.mxu0 0.0
    %1432 = vmatprep.subr.mxu0 0.0
    %1433 = vmatpush1.msra.mxu0 0.0
    %1434 = vmatprep.mubr.f32.mxu0 0.0
    %1435 = vmatmul.mubr.f32.gmra.mrb[0].mxu0 %v1270
    %v1436 = vpop.f32.mrb[0].mxu0
    %v1437 = vadd.f32 %v1252, %v1436
    %v1438 = vpop.f32.mrb[0].mxu0
    %v1439 = vadd.f32 %v1252, %v1438
    %1440 = vmatprep.mubr.f32.mxu0 0.0
    %1441 = vmatmul.mubr.f32.gmra.mrb[0].mxu0 %v1273
    %v1442 = vpop.f32.mrb[0].mxu0
    %v1443 = vadd.f32 %v1257, %v1442
    %v1444 = vpop.f32.mrb[0].mxu0
    %v1445 = vadd.f32 %v1257, %v1444
    %1446 = vmatprep.mubr.f32.mxu0 0.0
    %1447 = vmatmul.mubr.f32.gmra.mrb[0].mxu0 %v1276
    %v1448 = vpop.f32.mrb[0].mxu0
    %v1449 = vadd.f32 %v1262, %v1448
    %v1450 = vpop.f32.mrb[0].mxu0
    %v1451 = vadd.f32 %v1262, %v1450
    %1452 = vmatprep.mubr.f32.mxu0 0.0
    %1453 = vmatmul.mubr.f32.gmra.mrb[0].mxu0 %v1279
    %v1454 = vpop.f32.mrb[0].mxu0
    %v1455 = vadd.f32 %v1267, %v1454
    %v1456 = vpop.f32.mrb[0].mxu0
    %v1457 = vadd.f32 %v1267, %v1456
    %1458 = vdwg.mxu0
    %1459 = vmatprep.subr.mxu0 %v1241
    %1460 = vmatpush1.msra.mxu0 %v1240
    %1461 = vmatprep.subr.mxu0 0.0
    %1462 = vmatpush1.msra.mxu0 0.0
    %1463 = vmatprep.subr.mxu0 0.0
    %1464 = vmatpush1.msra.mxu0 0.0
    %1465 = vmatprep.subr.mxu0 0.0
    %1466 = vmatpush1.msra.mxu0 0.0
    %1467 = vmatprep.subr.mxu0 0.0
    %1468 = vmatpush1.msra.mxu0 0.0
    %1469 = vmatprep.subr.mxu0 0.0
    %1470 = vmatpush1.msra.mxu0 0.0
    %1471 = vmatprep.subr.mxu0 0.0
    %1472 = vmatpush1.msra.mxu0 0.0
    %1473 = vmatprep.subr.mxu0 0.0
    %1474 = vmatpush1.msra.mxu0 0.0
    %1475 = vmatprep.subr.mxu0 0.0
    %1476 = vmatpush1.msra.mxu0 0.0
    %1477 = vmatprep.subr.mxu0 0.0
    %1478 = vmatpush1.msra.mxu0 0.0
    %1479 = vmatprep.subr.mxu0 0.0
    %1480 = vmatpush1.msra.mxu0 0.0
    %1481 = vmatprep.subr.mxu0 0.0
    %1482 = vmatpush1.msra.mxu0 0.0
    %1483 = vmatprep.subr.mxu0 0.0
    %1484 = vmatpush1.msra.mxu0 0.0
    %1485 = vmatprep.subr.mxu0 0.0
    %1486 = vmatpush1.msra.mxu0 0.0
    %1487 = vmatprep.subr.mxu0 0.0
    %1488 = vmatpush1.msra.mxu0 0.0
    %1489 = vmatprep.subr.mxu0 0.0
    %1490 = vmatpush1.msra.mxu0 0.0
    %1491 = vmatprep.subr.mxu0 0.0
    %1492 = vmatpush1.msra.mxu0 0.0
    %1493 = vmatprep.subr.mxu0 0.0
    %1494 = vmatpush1.msra.mxu0 0.0
    %1495 = vmatprep.subr.mxu0 0.0
    %1496 = vmatpush1.msra.mxu0 0.0
    %1497 = vmatprep.subr.mxu0 0.0
    %1498 = vmatpush1.msra.mxu0 0.0
    %1499 = vmatprep.subr.mxu0 0.0
    %1500 = vmatpush1.msra.mxu0 0.0
    %1501 = vmatprep.subr.mxu0 0.0
    %1502 = vmatpush1.msra.mxu0 0.0
    %1503 = vmatprep.subr.mxu0 0.0
    %1504 = vmatpush1.msra.mxu0 0.0
    %1505 = vmatprep.subr.mxu0 0.0
    %1506 = vmatpush1.msra.mxu0 0.0
    %1507 = vmatprep.subr.mxu0 0.0
    %1508 = vmatpush1.msra.mxu0 0.0
    %1509 = vmatprep.subr.mxu0 0.0
    %1510 = vmatpush1.msra.mxu0 0.0
    %1511 = vmatprep.subr.mxu0 0.0
    %1512 = vmatpush1.msra.mxu0 0.0
    %1513 = vmatprep.subr.mxu0 0.0
    %1514 = vmatpush1.msra.mxu0 0.0
    %1515 = vmatprep.subr.mxu0 0.0
    %1516 = vmatpush1.msra.mxu0 0.0
    %1517 = vmatprep.subr.mxu0 0.0
    %1518 = vmatpush1.msra.mxu0 0.0
    %1519 = vmatprep.subr.mxu0 0.0
    %1520 = vmatpush1.msra.mxu0 0.0
    %1521 = vmatprep.subr.mxu0 0.0
    %1522 = vmatpush1.msra.mxu0 0.0
    %1523 = vmatprep.mubr.f32.mxu0 0.0
    %1524 = vmatmul.mubr.f32.gmra.mrb[0].mxu0 %v1270
    %v1525 = vpop.f32.mrb[0].mxu0
    %v1526 = vadd.f32 %v1252, %v1525
    %v1527 = vpop.f32.mrb[0].mxu0
    %v1528 = vadd.f32 %v1252, %v1527
    %1529 = vmatprep.mubr.f32.mxu0 0.0
    %1530 = vmatmul.mubr.f32.gmra.mrb[0].mxu0 %v1273
    %v1531 = vpop.f32.mrb[0].mxu0
    %v1532 = vadd.f32 %v1257, %v1531
    %v1533 = vpop.f32.mrb[0].mxu0
    %v1534 = vadd.f32 %v1257, %v1533
    %1535 = vmatprep.mubr.f32.mxu0 0.0
    %1536 = vmatmul.mubr.f32.gmra.mrb[0].mxu0 %v1276
    %v1537 = vpop.f32.mrb[0].mxu0
    %v1538 = vadd.f32 %v1262, %v1537
    %v1539 = vpop.f32.mrb[0].mxu0
    %v1540 = vadd.f32 %v1262, %v1539
    %1541 = vmatprep.mubr.f32.mxu0 0.0
    %1542 = vmatmul.mubr.f32.gmra.mrb[0].mxu0 %v1279
    %v1543 = vpop.f32.mrb[0].mxu0
    %v1544 = vadd.f32 %v1267, %v1543
    %v1545 = vpop.f32.mrb[0].mxu0
    %v1546 = vadd.f32 %v1267, %v1545
    %1547 = vdwg.mxu0
    %1548 = vmatprep.subr.mxu0 %v1243
    %1549 = vmatpush1.msra.mxu0 %v1242
    %1550 = vmatprep.subr.mxu0 0.0
    %1551 = vmatpush1.msra.mxu0 0.0
    %1552 = vmatprep.subr.mxu0 0.0
    %1553 = vmatpush1.msra.mxu0 0.0
    %1554 = vmatprep.subr.mxu0 0.0
    %1555 = vmatpush1.msra.mxu0 0.0
    %1556 = vmatprep.subr.mxu0 0.0
    %1557 = vmatpush1.msra.mxu0 0.0
    %1558 = vmatprep.subr.mxu0 0.0
    %1559 = vmatpush1.msra.mxu0 0.0
    %1560 = vmatprep.subr.mxu0 0.0
    %1561 = vmatpush1.msra.mxu0 0.0
    %1562 = vmatprep.subr.mxu0 0.0
    %1563 = vmatpush1.msra.mxu0 0.0
    %1564 = vmatprep.subr.mxu0 0.0
    %1565 = vmatpush1.msra.mxu0 0.0
    %1566 = vmatprep.subr.mxu0 0.0
    %1567 = vmatpush1.msra.mxu0 0.0
    %1568 = vmatprep.subr.mxu0 0.0
    %1569 = vmatpush1.msra.mxu0 0.0
    %1570 = vmatprep.subr.mxu0 0.0
    %1571 = vmatpush1.msra.mxu0 0.0
    %1572 = vmatprep.subr.mxu0 0.0
    %1573 = vmatpush1.msra.mxu0 0.0
    %1574 = vmatprep.subr.mxu0 0.0
    %1575 = vmatpush1.msra.mxu0 0.0
    %1576 = vmatprep.subr.mxu0 0.0
    %1577 = vmatpush1.msra.mxu0 0.0
    %1578 = vmatprep.subr.mxu0 0.0
    %1579 = vmatpush1.msra.mxu0 0.0
    %1580 = vmatprep.subr.mxu0 0.0
    %1581 = vmatpush1.msra.mxu0 0.0
    %1582 = vmatprep.subr.mxu0 0.0
    %1583 = vmatpush1.msra.mxu0 0.0
    %1584 = vmatprep.subr.mxu0 0.0
    %1585 = vmatpush1.msra.mxu0 0.0
    %1586 = vmatprep.subr.mxu0 0.0
    %1587 = vmatpush1.msra.mxu0 0.0
    %1588 = vmatprep.subr.mxu0 0.0
    %1589 = vmatpush1.msra.mxu0 0.0
    %1590 = vmatprep.subr.mxu0 0.0
    %1591 = vmatpush1.msra.mxu0 0.0
    %1592 = vmatprep.subr.mxu0 0.0
    %1593 = vmatpush1.msra.mxu0 0.0
    %1594 = vmatprep.subr.mxu0 0.0
    %1595 = vmatpush1.msra.mxu0 0.0
    %1596 = vmatprep.subr.mxu0 0.0
    %1597 = vmatpush1.msra.mxu0 0.0
    %1598 = vmatprep.subr.mxu0 0.0
    %1599 = vmatpush1.msra.mxu0 0.0
    %1600 = vmatprep.subr.mxu0 0.0
    %1601 = vmatpush1.msra.mxu0 0.0
    %1602 = vmatprep.subr.mxu0 0.0
    %1603 = vmatpush1.msra.mxu0 0.0
    %1604 = vmatprep.subr.mxu0 0.0
    %1605 = vmatpush1.msra.mxu0 0.0
    %1606 = vmatprep.subr.mxu0 0.0
    %1607 = vmatpush1.msra.mxu0 0.0
    %1608 = vmatprep.subr.mxu0 0.0
    %1609 = vmatpush1.msra.mxu0 0.0
    %1610 = vmatprep.subr.mxu0 0.0
    %1611 = vmatpush1.msra.mxu0 0.0
    %1612 = vmatprep.mubr.f32.mxu0 0.0
    %1613 = vmatmul.mubr.f32.gmra.mrb[0].mxu0 %v1270
    %v1614 = vpop.f32.mrb[0].mxu0
    %v1615 = vadd.f32 %v1252, %v1614
    %v1616 = vpop.f32.mrb[0].mxu0
    %v1617 = vadd.f32 %v1252, %v1616
    %1618 = vmatprep.mubr.f32.mxu0 0.0
    %1619 = vmatmul.mubr.f32.gmra.mrb[0].mxu0 %v1273
    %v1620 = vpop.f32.mrb[0].mxu0
    %v1621 = vadd.f32 %v1257, %v1620
    %v1622 = vpop.f32.mrb[0].mxu0
    %v1623 = vadd.f32 %v1257, %v1622
    %1624 = vmatprep.mubr.f32.mxu0 0.0
    %1625 = vmatmul.mubr.f32.gmra.mrb[0].mxu0 %v1276
    %v1626 = vpop.f32.mrb[0].mxu0
    %v1627 = vadd.f32 %v1262, %v1626
    %v1628 = vpop.f32.mrb[0].mxu0
    %v1629 = vadd.f32 %v1262, %v1628
    %1630 = vmatprep.mubr.f32.mxu0 0.0
    %1631 = vmatmul.mubr.f32.gmra.mrb[0].mxu0 %v1279
    %v1632 = vpop.f32.mrb[0].mxu0
    %v1633 = vadd.f32 %v1267, %v1632
    %v1634 = vpop.f32.mrb[0].mxu0
    %v1635 = vadd.f32 %v1267, %v1634
    %1636 = vdwg.mxu0
    %1637 = vst [vmem:[#allocation3] sm:$0xff] %v1348
    %1638 = vst [vmem:[#allocation3 + $0x8] sm:$0xff] %v1350
    %1639 = vst [vmem:[#allocation3 + $0x10] sm:$0xff] %v1437
    %1640 = vst [vmem:[#allocation3 + $0x18] sm:$0xff] %v1439
    %1641 = vst [vmem:[#allocation3 + $0x20] sm:$0xff] %v1526
    %1642 = vst [vmem:[#allocation3 + $0x28] sm:$0xff] %v1528
    %1643 = vst [vmem:[#allocation3 + $0x30] sm:$0xff] %v1615
    %1644 = vst [vmem:[#allocation3 + $0x38] sm:$0xff] %v1617
    %1645 = vst [vmem:[#allocation3 + $0x40] sm:$0xff] %v1354
    %1646 = vst [vmem:[#allocation3 + $0x48] sm:$0xff] %v1356
    %1647 = vst [vmem:[#allocation3 + $0x50] sm:$0xff] %v1443
    %1648 = vst [vmem:[#allocation3 + $0x58] sm:$0xff] %v1445
    %1649 = vst [vmem:[#allocation3 + $0x60] sm:$0xff] %v1532
    %1650 = vst [vmem:[#allocation3 + $0x68] sm:$0xff] %v1534
    %1651 = vst [vmem:[#allocation3 + $0x70] sm:$0xff] %v1621
    %1652 = vst [vmem:[#allocation3 + $0x78] sm:$0xff] %v1623
    %1653 = vst [vmem:[#allocation3 + $0x80] sm:$0xff] %v1360
    %1654 = vst [vmem:[#allocation3 + $0x88] sm:$0xff] %v1362
    %1655 = vst [vmem:[#allocation3 + $0x90] sm:$0xff] %v1449
    %1656 = vst [vmem:[#allocation3 + $0x98] sm:$0xff] %v1451
    %1657 = vst [vmem:[#allocation3 + $0xa0] sm:$0xff] %v1538
    %1658 = vst [vmem:[#allocation3 + $0xa8] sm:$0xff] %v1540
    %1659 = vst [vmem:[#allocation3 + $0xb0] sm:$0xff] %v1627
    %1660 = vst [vmem:[#allocation3 + $0xb8] sm:$0xff] %v1629
    %1661 = vst [vmem:[#allocation3 + $0xc0] sm:$0xff] %v1366
    %1662 = vst [vmem:[#allocation3 + $0xc8] sm:$0xff] %v1368
    %1663 = vst [vmem:[#allocation3 + $0xd0] sm:$0xff] %v1455
    %1664 = vst [vmem:[#allocation3 + $0xd8] sm:$0xff] %v1457
    %1665 = vst [vmem:[#allocation3 + $0xe0] sm:$0xff] %v1544
    %1666 = vst [vmem:[#allocation3 + $0xe8] sm:$0xff] %v1546
    %1667 = vst [vmem:[#allocation3 + $0xf0] sm:$0xff] %v1633
    %1668 = vst [vmem:[#allocation3 + $0xf8] sm:$0xff] %v1635
    %s1669 = scalar_lea.vmem %s2, 32
    %v1670 = vld [vmem:[%s1669] sm:$0xff]
    %v1671 = vld [vmem:[%s1669 + $0x8] sm:$0xff]
    %v1672 = vld [vmem:[%s1669 + $0x10] sm:$0xff]
    %v1673 = vld [vmem:[%s1669 + $0x18] sm:$0xff]
    %1675 = vset.pattern.permute.xlu0 0
    %1676 = vperm.xlu0 %1675, %v1670
    %v1677 = vpop.permute.xlu0 %1676
    %1680 = vset.pattern.permute.xlu0 0
    %1681 = vperm.xlu0 %1680, %v1671
    %v1682 = vpop.permute.xlu0 %1681
    %1685 = vset.pattern.permute.xlu0 0
    %1686 = vperm.xlu0 %1685, %v1672
    %v1687 = vpop.permute.xlu0 %1686
    %1690 = vset.pattern.permute.xlu0 0
    %1691 = vperm.xlu0 %1690, %v1673
    %v1692 = vpop.permute.xlu0 %1691
    %1694 = vset.pattern.permute.xlu0 1
    %1695 = vperm.xlu0 %1694, %v1670
    %v1696 = vpop.permute.xlu0 %1695
    %1698 = vset.pattern.permute.xlu0 1
    %1699 = vperm.xlu0 %1698, %v1671
    %v1700 = vpop.permute.xlu0 %1699
    %1702 = vset.pattern.permute.xlu0 1
    %1703 = vperm.xlu0 %1702, %v1672
    %v1704 = vpop.permute.xlu0 %1703
    %1706 = vset.pattern.permute.xlu0 1
    %1707 = vperm.xlu0 %1706, %v1673
    %v1708 = vpop.permute.xlu0 %1707
    %1710 = vset.pattern.permute.xlu0 2
    %1711 = vperm.xlu0 %1710, %v1670
    %v1712 = vpop.permute.xlu0 %1711
    %1714 = vset.pattern.permute.xlu0 2
    %1715 = vperm.xlu0 %1714, %v1671
    %v1716 = vpop.permute.xlu0 %1715
    %1718 = vset.pattern.permute.xlu0 2
    %1719 = vperm.xlu0 %1718, %v1672
    %v1720 = vpop.permute.xlu0 %1719
    %1722 = vset.pattern.permute.xlu0 2
    %1723 = vperm.xlu0 %1722, %v1673
    %v1724 = vpop.permute.xlu0 %1723
    %1726 = vset.pattern.permute.xlu0 3
    %1727 = vperm.xlu0 %1726, %v1670
    %v1728 = vpop.permute.xlu0 %1727
    %1730 = vset.pattern.permute.xlu0 3
    %1731 = vperm.xlu0 %1730, %v1671
    %v1732 = vpop.permute.xlu0 %1731
    %1734 = vset.pattern.permute.xlu0 3
    %1735 = vperm.xlu0 %1734, %v1672
    %v1736 = vpop.permute.xlu0 %1735
    %1738 = vset.pattern.permute.xlu0 3
    %1739 = vperm.xlu0 %1738, %v1673
    %v1740 = vpop.permute.xlu0 %1739
    %1742 = vset.pattern.permute.xlu0 4
    %1743 = vperm.xlu0 %1742, %v1670
    %v1744 = vpop.permute.xlu0 %1743
    %1746 = vset.pattern.permute.xlu0 4
    %1747 = vperm.xlu0 %1746, %v1671
    %v1748 = vpop.permute.xlu0 %1747
    %1750 = vset.pattern.permute.xlu0 4
    %1751 = vperm.xlu0 %1750, %v1672
    %v1752 = vpop.permute.xlu0 %1751
    %1754 = vset.pattern.permute.xlu0 4
    %1755 = vperm.xlu0 %1754, %v1673
    %v1756 = vpop.permute.xlu0 %1755
    %1758 = vset.pattern.permute.xlu0 5
    %1759 = vperm.xlu0 %1758, %v1670
    %v1760 = vpop.permute.xlu0 %1759
    %1762 = vset.pattern.permute.xlu0 5
    %1763 = vperm.xlu0 %1762, %v1671
    %v1764 = vpop.permute.xlu0 %1763
    %1766 = vset.pattern.permute.xlu0 5
    %1767 = vperm.xlu0 %1766, %v1672
    %v1768 = vpop.permute.xlu0 %1767
    %1770 = vset.pattern.permute.xlu0 5
    %1771 = vperm.xlu0 %1770, %v1673
    %v1772 = vpop.permute.xlu0 %1771
    %v1774 = vld [vmem:[#allocation3] sm:$0xff]
    %v1775 = vld [vmem:[#allocation3 + $0x40] sm:$0xff]
    %v1776 = vld [vmem:[#allocation3 + $0x80] sm:$0xff]
    %v1777 = vld [vmem:[#allocation3 + $0xc0] sm:$0xff]
    %v1778 = vtanh.pop %v1774
    %v1779 = vtanh.pop %v1775
    %v1780 = vtanh.pop %v1776
    %v1781 = vtanh.pop %v1777
    %v1782 = vmul.f32 %v1778, 0.5
    %v1783 = vadd.f32 %v1782, 0.5
    %v1784 = vmul.f32 %v1779, 0.5
    %v1785 = vadd.f32 %v1784, 0.5
    %v1786 = vmul.f32 %v1780, 0.5
    %v1787 = vadd.f32 %v1786, 0.5
    %v1788 = vmul.f32 %v1785, 0.0
    %v1789 = vmul.f32 %v1783, %v1781
    %v1790 = vadd.f32 %v1788, %v1789
    %v1791 = vtanh.pop %v1790
    %v1792 = vmul.f32 %v1787, %v1791
    %1793 = vst [vmem:[#allocation2] sm:$0xff] %v1792
    %v1794 = vld [vmem:[#allocation3 + $0x8] sm:$0xff]
    %v1795 = vld [vmem:[#allocation3 + $0x48] sm:$0xff]
    %v1796 = vld [vmem:[#allocation3 + $0x88] sm:$0xff]
    %v1797 = vld [vmem:[#allocation3 + $0xc8] sm:$0xff]
    %v1798 = vlaneseq
    %v1799 = vshrl.u32 %v1798, 7
    %v1800 = vsub.s32 0, %v1799
    %v1801 = vrot.slane %v1792, %v1800
    %v1802 = vmul.f32 %v1677, %v1801
    %v1803 = vmul.f32 %v1682, %v1801
    %v1804 = vmul.f32 %v1687, %v1801
    %v1805 = vmul.f32 %v1692, %v1801
    %v1806 = vlaneseq
    %v1807 = vshrl.u32 %v1806, 7
    %v1808 = vsub.s32 1, %v1807
    %v1809 = vrot.slane %v1792, %v1808
    %v1810 = vmul.f32 %v1696, %v1809
    %v1811 = vmul.f32 %v1700, %v1809
    %v1812 = vmul.f32 %v1704, %v1809
    %v1813 = vmul.f32 %v1708, %v1809
    %v1814 = vadd.f32 %v1802, %v1810
    %v1815 = vadd.f32 %v1803, %v1811
    %v1816 = vadd.f32 %v1804, %v1812
    %v1817 = vadd.f32 %v1805, %v1813
    %v1818 = vlaneseq
    %v1819 = vshrl.u32 %v1818, 7
    %v1820 = vsub.s32 2, %v1819
    %v1821 = vrot.slane %v1792, %v1820
    %v1822 = vmul.f32 %v1712, %v1821
    %v1823 = vmul.f32 %v1716, %v1821
    %v1824 = vmul.f32 %v1720, %v1821
    %v1825 = vmul.f32 %v1724, %v1821
    %v1826 = vlaneseq
    %v1827 = vshrl.u32 %v1826, 7
    %v1828 = vsub.s32 3, %v1827
    %v1829 = vrot.slane %v1792, %v1828
    %v1830 = vmul.f32 %v1728, %v1829
    %v1831 = vmul.f32 %v1732, %v1829
    %v1832 = vmul.f32 %v1736, %v1829
    %v1833 = vmul.f32 %v1740, %v1829
    %v1834 = vadd.f32 %v1822, %v1830
    %v1835 = vadd.f32 %v1823, %v1831
    %v1836 = vadd.f32 %v1824, %v1832
    %v1837 = vadd.f32 %v1825, %v1833
    %v1838 = vadd.f32 %v1814, %v1834
    %v1839 = vadd.f32 %v1815, %v1835
    %v1840 = vadd.f32 %v1816, %v1836
    %v1841 = vadd.f32 %v1817, %v1837
    %v1842 = vlaneseq
    %v1843 = vshrl.u32 %v1842, 7
    %v1844 = vsub.s32 4, %v1843
    %v1845 = vrot.slane %v1792, %v1844
    %v1846 = vmul.f32 %v1744, %v1845
    %v1847 = vmul.f32 %v1748, %v1845
    %v1848 = vmul.f32 %v1752, %v1845
    %v1849 = vmul.f32 %v1756, %v1845
    %v1850 = vlaneseq
    %v1851 = vshrl.u32 %v1850, 7
    %v1852 = vsub.s32 5, %v1851
    %v1853 = vrot.slane %v1792, %v1852
    %v1854 = vmul.f32 %v1760, %v1853
    %v1855 = vmul.f32 %v1764, %v1853
    %v1856 = vmul.f32 %v1768, %v1853
    %v1857 = vmul.f32 %v1772, %v1853
    %v1858 = vadd.f32 %v1846, %v1854
    %v1859 = vadd.f32 %v1847, %v1855
    %v1860 = vadd.f32 %v1848, %v1856
    %v1861 = vadd.f32 %v1849, %v1857
    %v1862 = vadd.f32 %v1838, %v1858
    %v1863 = vadd.f32 %v1839, %v1859
    %v1864 = vadd.f32 %v1840, %v1860
    %v1865 = vadd.f32 %v1841, %v1861
    %v1866 = vadd.f32 %v1794, %v1862
    %v1867 = vadd.f32 %v1795, %v1863
    %v1868 = vadd.f32 %v1796, %v1864
    %v1869 = vadd.f32 %v1797, %v1865
    %v1870 = vtanh.pop %v1866
    %v1871 = vtanh.pop %v1867
    %v1872 = vtanh.pop %v1868
    %v1873 = vtanh.pop %v1869
    %v1874 = vmul.f32 %v1870, 0.5
    %v1875 = vadd.f32 %v1874, 0.5
    %v1876 = vmul.f32 %v1871, 0.5
    %v1877 = vadd.f32 %v1876, 0.5
    %v1878 = vmul.f32 %v1872, 0.5
    %v1879 = vadd.f32 %v1878, 0.5
    %v1880 = vmul.f32 %v1877, %v1790
    %v1881 = vmul.f32 %v1875, %v1873
    %v1882 = vadd.f32 %v1880, %v1881
    %v1883 = vtanh.pop %v1882
    %v1884 = vmul.f32 %v1879, %v1883
    %1885 = vst [vmem:[#allocation2 + $0x8] sm:$0xff] %v1884
    %v1886 = vld [vmem:[#allocation3 + $0x10] sm:$0xff]
    %v1887 = vld [vmem:[#allocation3 + $0x50] sm:$0xff]
    %v1888 = vld [vmem:[#allocation3 + $0x90] sm:$0xff]
    %v1889 = vld [vmem:[#allocation3 + $0xd0] sm:$0xff]
    %v1890 = vlaneseq
    %v1891 = vshrl.u32 %v1890, 7
    %v1892 = vsub.s32 0, %v1891
    %v1893 = vrot.slane %v1884, %v1892
    %v1894 = vmul.f32 %v1677, %v1893
    %v1895 = vmul.f32 %v1682, %v1893
    %v1896 = vmul.f32 %v1687, %v1893
    %v1897 = vmul.f32 %v1692, %v1893
    %v1898 = vlaneseq
    %v1899 = vshrl.u32 %v1898, 7
    %v1900 = vsub.s32 1, %v1899
    %v1901 = vrot.slane %v1884, %v1900
    %v1902 = vmul.f32 %v1696, %v1901
    %v1903 = vmul.f32 %v1700, %v1901
    %v1904 = vmul.f32 %v1704, %v1901
    %v1905 = vmul.f32 %v1708, %v1901
    %v1906 = vadd.f32 %v1894, %v1902
    %v1907 = vadd.f32 %v1895, %v1903
    %v1908 = vadd.f32 %v1896, %v1904
    %v1909 = vadd.f32 %v1897, %v1905
    %v1910 = vlaneseq
    %v1911 = vshrl.u32 %v1910, 7
    %v1912 = vsub.s32 2, %v1911
    %v1913 = vrot.slane %v1884, %v1912
    %v1914 = vmul.f32 %v1712, %v1913
    %v1915 = vmul.f32 %v1716, %v1913
    %v1916 = vmul.f32 %v1720, %v1913
    %v1917 = vmul.f32 %v1724, %v1913
    %v1918 = vlaneseq
    %v1919 = vshrl.u32 %v1918, 7
    %v1920 = vsub.s32 3, %v1919
    %v1921 = vrot.slane %v1884, %v1920
    %v1922 = vmul.f32 %v1728, %v1921
    %v1923 = vmul.f32 %v1732, %v1921
    %v1924 = vmul.f32 %v1736, %v1921
    %v1925 = vmul.f32 %v1740, %v1921
    %v1926 = vadd.f32 %v1914, %v1922
    %v1927 = vadd.f32 %v1915, %v1923
    %v1928 = vadd.f32 %v1916, %v1924
    %v1929 = vadd.f32 %v1917, %v1925
    %v1930 = vadd.f32 %v1906, %v1926
    %v1931 = vadd.f32 %v1907, %v1927
    %v1932 = vadd.f32 %v1908, %v1928
    %v1933 = vadd.f32 %v1909, %v1929
    %v1934 = vlaneseq
    %v1935 = vshrl.u32 %v1934, 7
    %v1936 = vsub.s32 4, %v1935
    %v1937 = vrot.slane %v1884, %v1936
    %v1938 = vmul.f32 %v1744, %v1937
    %v1939 = vmul.f32 %v1748, %v1937
    %v1940 = vmul.f32 %v1752, %v1937
    %v1941 = vmul.f32 %v1756, %v1937
    %v1942 = vlaneseq
    %v1943 = vshrl.u32 %v1942, 7
    %v1944 = vsub.s32 5, %v1943
    %v1945 = vrot.slane %v1884, %v1944
    %v1946 = vmul.f32 %v1760, %v1945
    %v1947 = vmul.f32 %v1764, %v1945
    %v1948 = vmul.f32 %v1768, %v1945
    %v1949 = vmul.f32 %v1772, %v1945
    %v1950 = vadd.f32 %v1938, %v1946
    %v1951 = vadd.f32 %v1939, %v1947
    %v1952 = vadd.f32 %v1940, %v1948
    %v1953 = vadd.f32 %v1941, %v1949
    %v1954 = vadd.f32 %v1930, %v1950
    %v1955 = vadd.f32 %v1931, %v1951
    %v1956 = vadd.f32 %v1932, %v1952
    %v1957 = vadd.f32 %v1933, %v1953
    %v1958 = vadd.f32 %v1886, %v1954
    %v1959 = vadd.f32 %v1887, %v1955
    %v1960 = vadd.f32 %v1888, %v1956
    %v1961 = vadd.f32 %v1889, %v1957
    %v1962 = vtanh.pop %v1958
    %v1963 = vtanh.pop %v1959
    %v1964 = vtanh.pop %v1960
    %v1965 = vtanh.pop %v1961
    %v1966 = vmul.f32 %v1962, 0.5
    %v1967 = vadd.f32 %v1966, 0.5
    %v1968 = vmul.f32 %v1963, 0.5
    %v1969 = vadd.f32 %v1968, 0.5
    %v1970 = vmul.f32 %v1964, 0.5
    %v1971 = vadd.f32 %v1970, 0.5
    %v1972 = vmul.f32 %v1969, %v1882
    %v1973 = vmul.f32 %v1967, %v1965
    %v1974 = vadd.f32 %v1972, %v1973
    %v1975 = vtanh.pop %v1974
    %v1976 = vmul.f32 %v1971, %v1975
    %1977 = vst [vmem:[#allocation2 + $0x10] sm:$0xff] %v1976
    %v1978 = vld [vmem:[#allocation3 + $0x18] sm:$0xff]
    %v1979 = vld [vmem:[#allocation3 + $0x58] sm:$0xff]
    %v1980 = vld [vmem:[#allocation3 + $0x98] sm:$0xff]
    %v1981 = vld [vmem:[#allocation3 + $0xd8] sm:$0xff]
    %v1982 = vlaneseq
    %v1983 = vshrl.u32 %v1982, 7
    %v1984 = vsub.s32 0, %v1983
    %v1985 = vrot.slane %v1976, %v1984
    %v1986 = vmul.f32 %v1677, %v1985
    %v1987 = vmul.f32 %v1682, %v1985
    %v1988 = vmul.f32 %v1687, %v1985
    %v1989 = vmul.f32 %v1692, %v1985
    %v1990 = vlaneseq
    %v1991 = vshrl.u32 %v1990, 7
    %v1992 = vsub.s32 1, %v1991
    %v1993 = vrot.slane %v1976, %v1992
    %v1994 = vmul.f32 %v1696, %v1993
    %v1995 = vmul.f32 %v1700, %v1993
    %v1996 = vmul.f32 %v1704, %v1993
    %v1997 = vmul.f32 %v1708, %v1993
    %v1998 = vadd.f32 %v1986, %v1994
    %v1999 = vadd.f32 %v1987, %v1995
    %v2000 = vadd.f32 %v1988, %v1996
    %v2001 = vadd.f32 %v1989, %v1997
    %v2002 = vlaneseq
    %v2003 = vshrl.u32 %v2002, 7
    %v2004 = vsub.s32 2, %v2003
    %v2005 = vrot.slane %v1976, %v2004
    %v2006 = vmul.f32 %v1712, %v2005
    %v2007 = vmul.f32 %v1716, %v2005
    %v2008 = vmul.f32 %v1720, %v2005
    %v2009 = vmul.f32 %v1724, %v2005
    %v2010 = vlaneseq
    %v2011 = vshrl.u32 %v2010, 7
    %v2012 = vsub.s32 3, %v2011
    %v2013 = vrot.slane %v1976, %v2012
    %v2014 = vmul.f32 %v1728, %v2013
    %v2015 = vmul.f32 %v1732, %v2013
    %v2016 = vmul.f32 %v1736, %v2013
    %v2017 = vmul.f32 %v1740, %v2013
    %v2018 = vadd.f32 %v2006, %v2014
    %v2019 = vadd.f32 %v2007, %v2015
    %v2020 = vadd.f32 %v2008, %v2016
    %v2021 = vadd.f32 %v2009, %v2017
    %v2022 = vadd.f32 %v1998, %v2018
    %v2023 = vadd.f32 %v1999, %v2019
    %v2024 = vadd.f32 %v2000, %v2020
    %v2025 = vadd.f32 %v2001, %v2021
    %v2026 = vlaneseq
    %v2027 = vshrl.u32 %v2026, 7
    %v2028 = vsub.s32 4, %v2027
    %v2029 = vrot.slane %v1976, %v2028
    %v2030 = vmul.f32 %v1744, %v2029
    %v2031 = vmul.f32 %v1748, %v2029
    %v2032 = vmul.f32 %v1752, %v2029
    %v2033 = vmul.f32 %v1756, %v2029
    %v2034 = vlaneseq
    %v2035 = vshrl.u32 %v2034, 7
    %v2036 = vsub.s32 5, %v2035
    %v2037 = vrot.slane %v1976, %v2036
    %v2038 = vmul.f32 %v1760, %v2037
    %v2039 = vmul.f32 %v1764, %v2037
    %v2040 = vmul.f32 %v1768, %v2037
    %v2041 = vmul.f32 %v1772, %v2037
    %v2042 = vadd.f32 %v2030, %v2038
    %v2043 = vadd.f32 %v2031, %v2039
    %v2044 = vadd.f32 %v2032, %v2040
    %v2045 = vadd.f32 %v2033, %v2041
    %v2046 = vadd.f32 %v2022, %v2042
    %v2047 = vadd.f32 %v2023, %v2043
    %v2048 = vadd.f32 %v2024, %v2044
    %v2049 = vadd.f32 %v2025, %v2045
    %v2050 = vadd.f32 %v1978, %v2046
    %v2051 = vadd.f32 %v1979, %v2047
    %v2052 = vadd.f32 %v1980, %v2048
    %v2053 = vadd.f32 %v1981, %v2049
    %v2054 = vtanh.pop %v2050
    %v2055 = vtanh.pop %v2051
    %v2056 = vtanh.pop %v2052
    %v2057 = vtanh.pop %v2053
    %v2058 = vmul.f32 %v2054, 0.5
    %v2059 = vadd.f32 %v2058, 0.5
    %v2060 = vmul.f32 %v2055, 0.5
    %v2061 = vadd.f32 %v2060, 0.5
    %v2062 = vmul.f32 %v2056, 0.5
    %v2063 = vadd.f32 %v2062, 0.5
    %v2064 = vmul.f32 %v2061, %v1974
    %v2065 = vmul.f32 %v2059, %v2057
    %v2066 = vadd.f32 %v2064, %v2065
    %v2067 = vtanh.pop %v2066
    %v2068 = vmul.f32 %v2063, %v2067
    %2069 = vst [vmem:[#allocation2 + $0x18] sm:$0xff] %v2068
    %v2070 = vld [vmem:[#allocation3 + $0x20] sm:$0xff]
    %v2071 = vld [vmem:[#allocation3 + $0x60] sm:$0xff]
    %v2072 = vld [vmem:[#allocation3 + $0xa0] sm:$0xff]
    %v2073 = vld [vmem:[#allocation3 + $0xe0] sm:$0xff]
    %v2074 = vlaneseq
    %v2075 = vshrl.u32 %v2074, 7
    %v2076 = vsub.s32 0, %v2075
    %v2077 = vrot.slane %v2068, %v2076
    %v2078 = vmul.f32 %v1677, %v2077
    %v2079 = vmul.f32 %v1682, %v2077
    %v2080 = vmul.f32 %v1687, %v2077
    %v2081 = vmul.f32 %v1692, %v2077
    %v2082 = vlaneseq
    %v2083 = vshrl.u32 %v2082, 7
    %v2084 = vsub.s32 1, %v2083
    %v2085 = vrot.slane %v2068, %v2084
    %v2086 = vmul.f32 %v1696, %v2085
    %v2087 = vmul.f32 %v1700, %v2085
    %v2088 = vmul.f32 %v1704, %v2085
    %v2089 = vmul.f32 %v1708, %v2085
    %v2090 = vadd.f32 %v2078, %v2086
    %v2091 = vadd.f32 %v2079, %v2087
    %v2092 = vadd.f32 %v2080, %v2088
    %v2093 = vadd.f32 %v2081, %v2089
    %v2094 = vlaneseq
    %v2095 = vshrl.u32 %v2094, 7
    %v2096 = vsub.s32 2, %v2095
    %v2097 = vrot.slane %v2068, %v2096
    %v2098 = vmul.f32 %v1712, %v2097
    %v2099 = vmul.f32 %v1716, %v2097
    %v2100 = vmul.f32 %v1720, %v2097
    %v2101 = vmul.f32 %v1724, %v2097
    %v2102 = vlaneseq
    %v2103 = vshrl.u32 %v2102, 7
    %v2104 = vsub.s32 3, %v2103
    %v2105 = vrot.slane %v2068, %v2104
    %v2106 = vmul.f32 %v1728, %v2105
    %v2107 = vmul.f32 %v1732, %v2105
    %v2108 = vmul.f32 %v1736, %v2105
    %v2109 = vmul.f32 %v1740, %v2105
    %v2110 = vadd.f32 %v2098, %v2106
    %v2111 = vadd.f32 %v2099, %v2107
    %v2112 = vadd.f32 %v2100, %v2108
    %v2113 = vadd.f32 %v2101, %v2109
    %v2114 = vadd.f32 %v2090, %v2110
    %v2115 = vadd.f32 %v2091, %v2111
    %v2116 = vadd.f32 %v2092, %v2112
    %v2117 = vadd.f32 %v2093, %v2113
    %v2118 = vlaneseq
    %v2119 = vshrl.u32 %v2118, 7
    %v2120 = vsub.s32 4, %v2119
    %v2121 = vrot.slane %v2068, %v2120
    %v2122 = vmul.f32 %v1744, %v2121
    %v2123 = vmul.f32 %v1748, %v2121
    %v2124 = vmul.f32 %v1752, %v2121
    %v2125 = vmul.f32 %v1756, %v2121
    %v2126 = vlaneseq
    %v2127 = vshrl.u32 %v2126, 7
    %v2128 = vsub.s32 5, %v2127
    %v2129 = vrot.slane %v2068, %v2128
    %v2130 = vmul.f32 %v1760, %v2129
    %v2131 = vmul.f32 %v1764, %v2129
    %v2132 = vmul.f32 %v1768, %v2129
    %v2133 = vmul.f32 %v1772, %v2129
    %v2134 = vadd.f32 %v2122, %v2130
    %v2135 = vadd.f32 %v2123, %v2131
    %v2136 = vadd.f32 %v2124, %v2132
    %v2137 = vadd.f32 %v2125, %v2133
    %v2138 = vadd.f32 %v2114, %v2134
    %v2139 = vadd.f32 %v2115, %v2135
    %v2140 = vadd.f32 %v2116, %v2136
    %v2141 = vadd.f32 %v2117, %v2137
    %v2142 = vadd.f32 %v2070, %v2138
    %v2143 = vadd.f32 %v2071, %v2139
    %v2144 = vadd.f32 %v2072, %v2140
    %v2145 = vadd.f32 %v2073, %v2141
    %v2146 = vtanh.pop %v2142
    %v2147 = vtanh.pop %v2143
    %v2148 = vtanh.pop %v2144
    %v2149 = vtanh.pop %v2145
    %v2150 = vmul.f32 %v2146, 0.5
    %v2151 = vadd.f32 %v2150, 0.5
    %v2152 = vmul.f32 %v2147, 0.5
    %v2153 = vadd.f32 %v2152, 0.5
    %v2154 = vmul.f32 %v2148, 0.5
    %v2155 = vadd.f32 %v2154, 0.5
    %v2156 = vmul.f32 %v2153, %v2066
    %v2157 = vmul.f32 %v2151, %v2149
    %v2158 = vadd.f32 %v2156, %v2157
    %v2159 = vtanh.pop %v2158
    %v2160 = vmul.f32 %v2155, %v2159
    %2161 = vst [vmem:[#allocation2 + $0x20] sm:$0xff] %v2160
    %v2162 = vld [vmem:[#allocation3 + $0x28] sm:$0xff]
    %v2163 = vld [vmem:[#allocation3 + $0x68] sm:$0xff]
    %v2164 = vld [vmem:[#allocation3 + $0xa8] sm:$0xff]
    %v2165 = vld [vmem:[#allocation3 + $0xe8] sm:$0xff]
    %v2166 = vlaneseq
    %v2167 = vshrl.u32 %v2166, 7
    %v2168 = vsub.s32 0, %v2167
    %v2169 = vrot.slane %v2160, %v2168
    %v2170 = vmul.f32 %v1677, %v2169
    %v2171 = vmul.f32 %v1682, %v2169
    %v2172 = vmul.f32 %v1687, %v2169
    %v2173 = vmul.f32 %v1692, %v2169
    %v2174 = vlaneseq
    %v2175 = vshrl.u32 %v2174, 7
    %v2176 = vsub.s32 1, %v2175
    %v2177 = vrot.slane %v2160, %v2176
    %v2178 = vmul.f32 %v1696, %v2177
    %v2179 = vmul.f32 %v1700, %v2177
    %v2180 = vmul.f32 %v1704, %v2177
    %v2181 = vmul.f32 %v1708, %v2177
    %v2182 = vadd.f32 %v2170, %v2178
    %v2183 = vadd.f32 %v2171, %v2179
    %v2184 = vadd.f32 %v2172, %v2180
    %v2185 = vadd.f32 %v2173, %v2181
    %v2186 = vlaneseq
    %v2187 = vshrl.u32 %v2186, 7
    %v2188 = vsub.s32 2, %v2187
    %v2189 = vrot.slane %v2160, %v2188
    %v2190 = vmul.f32 %v1712, %v2189
    %v2191 = vmul.f32 %v1716, %v2189
    %v2192 = vmul.f32 %v1720, %v2189
    %v2193 = vmul.f32 %v1724, %v2189
    %v2194 = vlaneseq
    %v2195 = vshrl.u32 %v2194, 7
    %v2196 = vsub.s32 3, %v2195
    %v2197 = vrot.slane %v2160, %v2196
    %v2198 = vmul.f32 %v1728, %v2197
    %v2199 = vmul.f32 %v1732, %v2197
    %v2200 = vmul.f32 %v1736, %v2197
    %v2201 = vmul.f32 %v1740, %v2197
    %v2202 = vadd.f32 %v2190, %v2198
    %v2203 = vadd.f32 %v2191, %v2199
    %v2204 = vadd.f32 %v2192, %v2200
    %v2205 = vadd.f32 %v2193, %v2201
    %v2206 = vadd.f32 %v2182, %v2202
    %v2207 = vadd.f32 %v2183, %v2203
    %v2208 = vadd.f32 %v2184, %v2204
    %v2209 = vadd.f32 %v2185, %v2205
    %v2210 = vlaneseq
    %v2211 = vshrl.u32 %v2210, 7
    %v2212 = vsub.s32 4, %v2211
    %v2213 = vrot.slane %v2160, %v2212
    %v2214 = vmul.f32 %v1744, %v2213
    %v2215 = vmul.f32 %v1748, %v2213
    %v2216 = vmul.f32 %v1752, %v2213
    %v2217 = vmul.f32 %v1756, %v2213
    %v2218 = vlaneseq
    %v2219 = vshrl.u32 %v2218, 7
    %v2220 = vsub.s32 5, %v2219
    %v2221 = vrot.slane %v2160, %v2220
    %v2222 = vmul.f32 %v1760, %v2221
    %v2223 = vmul.f32 %v1764, %v2221
    %v2224 = vmul.f32 %v1768, %v2221
    %v2225 = vmul.f32 %v1772, %v2221
    %v2226 = vadd.f32 %v2214, %v2222
    %v2227 = vadd.f32 %v2215, %v2223
    %v2228 = vadd.f32 %v2216, %v2224
    %v2229 = vadd.f32 %v2217, %v2225
    %v2230 = vadd.f32 %v2206, %v2226
    %v2231 = vadd.f32 %v2207, %v2227
    %v2232 = vadd.f32 %v2208, %v2228
    %v2233 = vadd.f32 %v2209, %v2229
    %v2234 = vadd.f32 %v2162, %v2230
    %v2235 = vadd.f32 %v2163, %v2231
    %v2236 = vadd.f32 %v2164, %v2232
    %v2237 = vadd.f32 %v2165, %v2233
    %v2238 = vtanh.pop %v2234
    %v2239 = vtanh.pop %v2235
    %v2240 = vtanh.pop %v2236
    %v2241 = vtanh.pop %v2237
    %v2242 = vmul.f32 %v2238, 0.5
    %v2243 = vadd.f32 %v2242, 0.5
    %v2244 = vmul.f32 %v2239, 0.5
    %v2245 = vadd.f32 %v2244, 0.5
    %v2246 = vmul.f32 %v2240, 0.5
    %v2247 = vadd.f32 %v2246, 0.5
    %v2248 = vmul.f32 %v2245, %v2158
    %v2249 = vmul.f32 %v2243, %v2241
    %v2250 = vadd.f32 %v2248, %v2249
    %v2251 = vtanh.pop %v2250
    %v2252 = vmul.f32 %v2247, %v2251
    %2253 = vst [vmem:[#allocation2 + $0x28] sm:$0xff] %v2252
    %v2254 = vld [vmem:[#allocation3 + $0x30] sm:$0xff]
    %v2255 = vld [vmem:[#allocation3 + $0x70] sm:$0xff]
    %v2256 = vld [vmem:[#allocation3 + $0xb0] sm:$0xff]
    %v2257 = vld [vmem:[#allocation3 + $0xf0] sm:$0xff]
    %v2258 = vlaneseq
    %v2259 = vshrl.u32 %v2258, 7
    %v2260 = vsub.s32 0, %v2259
    %v2261 = vrot.slane %v2252, %v2260
    %v2262 = vmul.f32 %v1677, %v2261
    %v2263 = vmul.f32 %v1682, %v2261
    %v2264 = vmul.f32 %v1687, %v2261
    %v2265 = vmul.f32 %v1692, %v2261
    %v2266 = vlaneseq
    %v2267 = vshrl.u32 %v2266, 7
    %v2268 = vsub.s32 1, %v2267
    %v2269 = vrot.slane %v2252, %v2268
    %v2270 = vmul.f32 %v1696, %v2269
    %v2271 = vmul.f32 %v1700, %v2269
    %v2272 = vmul.f32 %v1704, %v2269
    %v2273 = vmul.f32 %v1708, %v2269
    %v2274 = vadd.f32 %v2262, %v2270
    %v2275 = vadd.f32 %v2263, %v2271
    %v2276 = vadd.f32 %v2264, %v2272
    %v2277 = vadd.f32 %v2265, %v2273
    %v2278 = vlaneseq
    %v2279 = vshrl.u32 %v2278, 7
    %v2280 = vsub.s32 2, %v2279
    %v2281 = vrot.slane %v2252, %v2280
    %v2282 = vmul.f32 %v1712, %v2281
    %v2283 = vmul.f32 %v1716, %v2281
    %v2284 = vmul.f32 %v1720, %v2281
    %v2285 = vmul.f32 %v1724, %v2281
    %v2286 = vlaneseq
    %v2287 = vshrl.u32 %v2286, 7
    %v2288 = vsub.s32 3, %v2287
    %v2289 = vrot.slane %v2252, %v2288
    %v2290 = vmul.f32 %v1728, %v2289
    %v2291 = vmul.f32 %v1732, %v2289
    %v2292 = vmul.f32 %v1736, %v2289
    %v2293 = vmul.f32 %v1740, %v2289
    %v2294 = vadd.f32 %v2282, %v2290
    %v2295 = vadd.f32 %v2283, %v2291
    %v2296 = vadd.f32 %v2284, %v2292
    %v2297 = vadd.f32 %v2285, %v2293
    %v2298 = vadd.f32 %v2274, %v2294
    %v2299 = vadd.f32 %v2275, %v2295
    %v2300 = vadd.f32 %v2276, %v2296
    %v2301 = vadd.f32 %v2277, %v2297
    %v2302 = vlaneseq
    %v2303 = vshrl.u32 %v2302, 7
    %v2304 = vsub.s32 4, %v2303
    %v2305 = vrot.slane %v2252, %v2304
    %v2306 = vmul.f32 %v1744, %v2305
    %v2307 = vmul.f32 %v1748, %v2305
    %v2308 = vmul.f32 %v1752, %v2305
    %v2309 = vmul.f32 %v1756, %v2305
    %v2310 = vlaneseq
    %v2311 = vshrl.u32 %v2310, 7
    %v2312 = vsub.s32 5, %v2311
    %v2313 = vrot.slane %v2252, %v2312
    %v2314 = vmul.f32 %v1760, %v2313
    %v2315 = vmul.f32 %v1764, %v2313
    %v2316 = vmul.f32 %v1768, %v2313
    %v2317 = vmul.f32 %v1772, %v2313
    %v2318 = vadd.f32 %v2306, %v2314
    %v2319 = vadd.f32 %v2307, %v2315
    %v2320 = vadd.f32 %v2308, %v2316
    %v2321 = vadd.f32 %v2309, %v2317
    %v2322 = vadd.f32 %v2298, %v2318
    %v2323 = vadd.f32 %v2299, %v2319
    %v2324 = vadd.f32 %v2300, %v2320
    %v2325 = vadd.f32 %v2301, %v2321
    %v2326 = vadd.f32 %v2254, %v2322
    %v2327 = vadd.f32 %v2255, %v2323
    %v2328 = vadd.f32 %v2256, %v2324
    %v2329 = vadd.f32 %v2257, %v2325
    %v2330 = vtanh.pop %v2326
    %v2331 = vtanh.pop %v2327
    %v2332 = vtanh.pop %v2328
    %v2333 = vtanh.pop %v2329
    %v2334 = vmul.f32 %v2330, 0.5
    %v2335 = vadd.f32 %v2334, 0.5
    %v2336 = vmul.f32 %v2331, 0.5
    %v2337 = vadd.f32 %v2336, 0.5
    %v2338 = vmul.f32 %v2332, 0.5
    %v2339 = vadd.f32 %v2338, 0.5
    %v2340 = vmul.f32 %v2337, %v2250
    %v2341 = vmul.f32 %v2335, %v2333
    %v2342 = vadd.f32 %v2340, %v2341
    %v2343 = vtanh.pop %v2342
    %v2344 = vmul.f32 %v2339, %v2343
    %2345 = vst [vmem:[#allocation2 + $0x30] sm:$0xff] %v2344
    %v2346 = vld [vmem:[#allocation3 + $0x38] sm:$0xff]
    %v2347 = vld [vmem:[#allocation3 + $0x78] sm:$0xff]
    %v2348 = vld [vmem:[#allocation3 + $0xb8] sm:$0xff]
    %v2349 = vld [vmem:[#allocation3 + $0xf8] sm:$0xff]
    %v2350 = vlaneseq
    %v2351 = vshrl.u32 %v2350, 7
    %v2352 = vsub.s32 0, %v2351
    %v2353 = vrot.slane %v2344, %v2352
    %v2354 = vmul.f32 %v1677, %v2353
    %v2355 = vmul.f32 %v1682, %v2353
    %v2356 = vmul.f32 %v1687, %v2353
    %v2357 = vmul.f32 %v1692, %v2353
    %v2358 = vlaneseq
    %v2359 = vshrl.u32 %v2358, 7
    %v2360 = vsub.s32 1, %v2359
    %v2361 = vrot.slane %v2344, %v2360
    %v2362 = vmul.f32 %v1696, %v2361
    %v2363 = vmul.f32 %v1700, %v2361
    %v2364 = vmul.f32 %v1704, %v2361
    %v2365 = vmul.f32 %v1708, %v2361
    %v2366 = vadd.f32 %v2354, %v2362
    %v2367 = vadd.f32 %v2355, %v2363
    %v2368 = vadd.f32 %v2356, %v2364
    %v2369 = vadd.f32 %v2357, %v2365
    %v2370 = vlaneseq
    %v2371 = vshrl.u32 %v2370, 7
    %v2372 = vsub.s32 2, %v2371
    %v2373 = vrot.slane %v2344, %v2372
    %v2374 = vmul.f32 %v1712, %v2373
    %v2375 = vmul.f32 %v1716, %v2373
    %v2376 = vmul.f32 %v1720, %v2373
    %v2377 = vmul.f32 %v1724, %v2373
    %v2378 = vlaneseq
    %v2379 = vshrl.u32 %v2378, 7
    %v2380 = vsub.s32 3, %v2379
    %v2381 = vrot.slane %v2344, %v2380
    %v2382 = vmul.f32 %v1728, %v2381
    %v2383 = vmul.f32 %v1732, %v2381
    %v2384 = vmul.f32 %v1736, %v2381
    %v2385 = vmul.f32 %v1740, %v2381
    %v2386 = vadd.f32 %v2374, %v2382
    %v2387 = vadd.f32 %v2375, %v2383
    %v2388 = vadd.f32 %v2376, %v2384
    %v2389 = vadd.f32 %v2377, %v2385
    %v2390 = vadd.f32 %v2366, %v2386
    %v2391 = vadd.f32 %v2367, %v2387
    %v2392 = vadd.f32 %v2368, %v2388
    %v2393 = vadd.f32 %v2369, %v2389
    %v2394 = vlaneseq
    %v2395 = vshrl.u32 %v2394, 7
    %v2396 = vsub.s32 4, %v2395
    %v2397 = vrot.slane %v2344, %v2396
    %v2398 = vmul.f32 %v1744, %v2397
    %v2399 = vmul.f32 %v1748, %v2397
    %v2400 = vmul.f32 %v1752, %v2397
    %v2401 = vmul.f32 %v1756, %v2397
    %v2402 = vlaneseq
    %v2403 = vshrl.u32 %v2402, 7
    %v2404 = vsub.s32 5, %v2403
    %v2405 = vrot.slane %v2344, %v2404
    %v2406 = vmul.f32 %v1760, %v2405
    %v2407 = vmul.f32 %v1764, %v2405
    %v2408 = vmul.f32 %v1768, %v2405
    %v2409 = vmul.f32 %v1772, %v2405
    %v2410 = vadd.f32 %v2398, %v2406
    %v2411 = vadd.f32 %v2399, %v2407
    %v2412 = vadd.f32 %v2400, %v2408
    %v2413 = vadd.f32 %v2401, %v2409
    %v2414 = vadd.f32 %v2390, %v2410
    %v2415 = vadd.f32 %v2391, %v2411
    %v2416 = vadd.f32 %v2392, %v2412
    %v2417 = vadd.f32 %v2393, %v2413
    %v2418 = vadd.f32 %v2346, %v2414
    %v2419 = vadd.f32 %v2347, %v2415
    %v2420 = vadd.f32 %v2348, %v2416
    %v2421 = vadd.f32 %v2349, %v2417
    %v2422 = vtanh.pop %v2418
    %v2423 = vtanh.pop %v2419
    %v2424 = vtanh.pop %v2420
    %v2425 = vtanh.pop %v2421
    %v2426 = vmul.f32 %v2422, 0.5
    %v2427 = vadd.f32 %v2426, 0.5
    %v2428 = vmul.f32 %v2423, 0.5
    %v2429 = vadd.f32 %v2428, 0.5
    %v2430 = vmul.f32 %v2424, 0.5
    %v2431 = vadd.f32 %v2430, 0.5
    %v2432 = vmul.f32 %v2429, %v2342
    %v2433 = vmul.f32 %v2427, %v2425
    %v2434 = vadd.f32 %v2432, %v2433
    %v2435 = vtanh.pop %v2434
    %v2436 = vmul.f32 %v2431, %v2435
    %2437 = vst [vmem:[#allocation2 + $0x38] sm:$0xff] %v2436
    %s2438 = scalar_lea.vmem %s1, 64
    %v2439 = vld [vmem:[%s2438] sm:$0xff]
    %v2440 = vld [vmem:[%s2438 + $0x8] sm:$0xff]
    %v2441 = vld [vmem:[%s2438 + $0x10] sm:$0xff]
    %v2442 = vld [vmem:[%s2438 + $0x18] sm:$0xff]
    %v2443 = vld [vmem:[#allocation2] sm:$0xff]
    %v2444 = vld [vmem:[#allocation2 + $0x8] sm:$0xff]
    %v2445 = vld [vmem:[#allocation2 + $0x10] sm:$0xff]
    %v2446 = vld [vmem:[#allocation2 + $0x18] sm:$0xff]
    %v2447 = vld [vmem:[#allocation2 + $0x20] sm:$0xff]
    %v2448 = vld [vmem:[#allocation2 + $0x28] sm:$0xff]
    %v2449 = vld [vmem:[#allocation2 + $0x30] sm:$0xff]
    %v2450 = vld [vmem:[#allocation2 + $0x38] sm:$0xff]
    %s2451 = scalar_lea.vmem %s3, 64
    %v2452 = vld [vmem:[%s2451] sm:$0xff]
    %v2453 = vld [vmem:[%s2451 + $0x8] sm:$0xff]
    %v2454 = vld [vmem:[%s2451 + $0x10] sm:$0xff]
    %v2455 = vld [vmem:[%s2451 + $0x18] sm:$0xff]
    %2457 = vset.pattern.permute.xlu0 0
    %2458 = vperm.xlu0 %2457, %v2452
    %v2459 = vpop.permute.xlu0 %2458
    %2462 = vset.pattern.permute.xlu0 0
    %2463 = vperm.xlu0 %2462, %v2453
    %v2464 = vpop.permute.xlu0 %2463
    %2467 = vset.pattern.permute.xlu0 0
    %2468 = vperm.xlu0 %2467, %v2454
    %v2469 = vpop.permute.xlu0 %2468
    %2472 = vset.pattern.permute.xlu0 0
    %2473 = vperm.xlu0 %2472, %v2455
    %v2474 = vpop.permute.xlu0 %2473
    %v2477 = vsel %vm62, %v2439, 0
    %v2480 = vsel %vm62, %v2440, 0
    %v2483 = vsel %vm62, %v2441, 0
    %v2486 = vsel %vm62, %v2442, 0
    %2488 = vmatprep.subr.mxu0 %v2444
    %2489 = vmatpush1.msra.mxu0 %v2443
    %2490 = vmatprep.subr.mxu0 0.0
    %2491 = vmatpush1.msra.mxu0 0.0
    %2492 = vmatprep.subr.mxu0 0.0
    %2493 = vmatpush1.msra.mxu0 0.0
    %2494 = vmatprep.subr.mxu0 0.0
    %2495 = vmatpush1.msra.mxu0 0.0
    %2496 = vmatprep.subr.mxu0 0.0
    %2497 = vmatpush1.msra.mxu0 0.0
    %2498 = vmatprep.subr.mxu0 0.0
    %2499 = vmatpush1.msra.mxu0 0.0
    %2500 = vmatprep.subr.mxu0 0.0
    %2501 = vmatpush1.msra.mxu0 0.0
    %2502 = vmatprep.subr.mxu0 0.0
    %2503 = vmatpush1.msra.mxu0 0.0
    %2504 = vmatprep.subr.mxu0 0.0
    %2505 = vmatpush1.msra.mxu0 0.0
    %2506 = vmatprep.subr.mxu0 0.0
    %2507 = vmatpush1.msra.mxu0 0.0
    %2508 = vmatprep.subr.mxu0 0.0
    %2509 = vmatpush1.msra.mxu0 0.0
    %2510 = vmatprep.subr.mxu0 0.0
    %2511 = vmatpush1.msra.mxu0 0.0
    %2512 = vmatprep.subr.mxu0 0.0
    %2513 = vmatpush1.msra.mxu0 0.0
    %2514 = vmatprep.subr.mxu0 0.0
    %2515 = vmatpush1.msra.mxu0 0.0
    %2516 = vmatprep.subr.mxu0 0.0
    %2517 = vmatpush1.msra.mxu0 0.0
    %2518 = vmatprep.subr.mxu0 0.0
    %2519 = vmatpush1.msra.mxu0 0.0
    %2520 = vmatprep.subr.mxu0 0.0
    %2521 = vmatpush1.msra.mxu0 0.0
    %2522 = vmatprep.subr.mxu0 0.0
    %2523 = vmatpush1.msra.mxu0 0.0
    %2524 = vmatprep.subr.mxu0 0.0
    %2525 = vmatpush1.msra.mxu0 0.0
    %2526 = vmatprep.subr.mxu0 0.0
    %2527 = vmatpush1.msra.mxu0 0.0
    %2528 = vmatprep.subr.mxu0 0.0
    %2529 = vmatpush1.msra.mxu0 0.0
    %2530 = vmatprep.subr.mxu0 0.0
    %2531 = vmatpush1.msra.mxu0 0.0
    %2532 = vmatprep.subr.mxu0 0.0
    %2533 = vmatpush1.msra.mxu0 0.0
    %2534 = vmatprep.subr.mxu0 0.0
    %2535 = vmatpush1.msra.mxu0 0.0
    %2536 = vmatprep.subr.mxu0 0.0
    %2537 = vmatpush1.msra.mxu0 0.0
    %2538 = vmatprep.subr.mxu0 0.0
    %2539 = vmatpush1.msra.mxu0 0.0
    %2540 = vmatprep.subr.mxu0 0.0
    %2541 = vmatpush1.msra.mxu0 0.0
    %2542 = vmatprep.subr.mxu0 0.0
    %2543 = vmatpush1.msra.mxu0 0.0
    %2544 = vmatprep.subr.mxu0 0.0
    %2545 = vmatpush1.msra.mxu0 0.0
    %2546 = vmatprep.subr.mxu0 0.0
    %2547 = vmatpush1.msra.mxu0 0.0
    %2548 = vmatprep.subr.mxu0 0.0
    %2549 = vmatpush1.msra.mxu0 0.0
    %2550 = vmatprep.subr.mxu0 0.0
    %2551 = vmatpush1.msra.mxu0 0.0
    %2552 = vmatprep.mubr.f32.mxu0 0.0
    %2553 = vmatmul.mubr.f32.gmra.mrb[0].mxu0 %v2477
    %v2554 = vpop.f32.mrb[0].mxu0
    %v2555 = vadd.f32 %v2459, %v2554
    %v2556 = vpop.f32.mrb[0].mxu0
    %v2557 = vadd.f32 %v2459, %v2556
    %2558 = vmatprep.mubr.f32.mxu0 0.0
    %2559 = vmatmul.mubr.f32.gmra.mrb[0].mxu0 %v2480
    %v2560 = vpop.f32.mrb[0].mxu0
    %v2561 = vadd.f32 %v2464, %v2560
    %v2562 = vpop.f32.mrb[0].mxu0
    %v2563 = vadd.f32 %v2464, %v2562
    %2564 = vmatprep.mubr.f32.mxu0 0.0
    %2565 = vmatmul.mubr.f32.gmra.mrb[0].mxu0 %v2483
    %v2566 = vpop.f32.mrb[0].mxu0
    %v2567 = vadd.f32 %v2469, %v2566
    %v2568 = vpop.f32.mrb[0].mxu0
    %v2569 = vadd.f32 %v2469, %v2568
    %2570 = vmatprep.mubr.f32.mxu0 0.0
    %2571 = vmatmul.mubr.f32.gmra.mrb[0].mxu0 %v2486
    %v2572 = vpop.f32.mrb[0].mxu0
    %v2573 = vadd.f32 %v2474, %v2572
    %v2574 = vpop.f32.mrb[0].mxu0
    %v2575 = vadd.f32 %v2474, %v2574
    %2576 = vdwg.mxu0
    %2577 = vmatprep.subr.mxu0 %v2446
    %2578 = vmatpush1.msra.mxu0 %v2445
    %2579 = vmatprep.subr.mxu0 0.0
    %2580 = vmatpush1.msra.mxu0 0.0
    %2581 = vmatprep.subr.mxu0 0.0
    %2582 = vmatpush1.msra.mxu0 0.0
    %2583 = vmatprep.subr.mxu0 0.0
    %2584 = vmatpush1.msra.mxu0 0.0
    %2585 = vmatprep.subr.mxu0 0.0
    %2586 = vmatpush1.msra.mxu0 0.0
    %2587 = vmatprep.subr.mxu0 0.0
    %2588 = vmatpush1.msra.mxu0 0.0
    %2589 = vmatprep.subr.mxu0 0.0
    %2590 = vmatpush1.msra.mxu0 0.0
    %2591 = vmatprep.subr.mxu0 0.0
    %2592 = vmatpush1.msra.mxu0 0.0
    %2593 = vmatprep.subr.mxu0 0.0
    %2594 = vmatpush1.msra.mxu0 0.0
    %2595 = vmatprep.subr.mxu0 0.0
    %2596 = vmatpush1.msra.mxu0 0.0
    %2597 = vmatprep.subr.mxu0 0.0
    %2598 = vmatpush1.msra.mxu0 0.0
    %2599 = vmatprep.subr.mxu0 0.0
    %2600 = vmatpush1.msra.mxu0 0.0
    %2601 = vmatprep.subr.mxu0 0.0
    %2602 = vmatpush1.msra.mxu0 0.0
    %2603 = vmatprep.subr.mxu0 0.0
    %2604 = vmatpush1.msra.mxu0 0.0
    %2605 = vmatprep.subr.mxu0 0.0
    %2606 = vmatpush1.msra.mxu0 0.0
    %2607 = vmatprep.subr.mxu0 0.0
    %2608 = vmatpush1.msra.mxu0 0.0
    %2609 = vmatprep.subr.mxu0 0.0
    %2610 = vmatpush1.msra.mxu0 0.0
    %2611 = vmatprep.subr.mxu0 0.0
    %2612 = vmatpush1.msra.mxu0 0.0
    %2613 = vmatprep.subr.mxu0 0.0
    %2614 = vmatpush1.msra.mxu0 0.0
    %2615 = vmatprep.subr.mxu0 0.0
    %2616 = vmatpush1.msra.mxu0 0.0
    %2617 = vmatprep.subr.mxu0 0.0
    %2618 = vmatpush1.msra.mxu0 0.0
    %2619 = vmatprep.subr.mxu0 0.0
    %2620 = vmatpush1.msra.mxu0 0.0
    %2621 = vmatprep.subr.mxu0 0.0
    %2622 = vmatpush1.msra.mxu0 0.0
    %2623 = vmatprep.subr.mxu0 0.0
    %2624 = vmatpush1.msra.mxu0 0.0
    %2625 = vmatprep.subr.mxu0 0.0
    %2626 = vmatpush1.msra.mxu0 0.0
    %2627 = vmatprep.subr.mxu0 0.0
    %2628 = vmatpush1.msra.mxu0 0.0
    %2629 = vmatprep.subr.mxu0 0.0
    %2630 = vmatpush1.msra.mxu0 0.0
    %2631 = vmatprep.subr.mxu0 0.0
    %2632 = vmatpush1.msra.mxu0 0.0
    %2633 = vmatprep.subr.mxu0 0.0
    %2634 = vmatpush1.msra.mxu0 0.0
    %2635 = vmatprep.subr.mxu0 0.0
    %2636 = vmatpush1.msra.mxu0 0.0
    %2637 = vmatprep.subr.mxu0 0.0
    %2638 = vmatpush1.msra.mxu0 0.0
    %2639 = vmatprep.subr.mxu0 0.0
    %2640 = vmatpush1.msra.mxu0 0.0
    %2641 = vmatprep.mubr.f32.mxu0 0.0
    %2642 = vmatmul.mubr.f32.gmra.mrb[0].mxu0 %v2477
    %v2643 = vpop.f32.mrb[0].mxu0
    %v2644 = vadd.f32 %v2459, %v2643
    %v2645 = vpop.f32.mrb[0].mxu0
    %v2646 = vadd.f32 %v2459, %v2645
    %2647 = vmatprep.mubr.f32.mxu0 0.0
    %2648 = vmatmul.mubr.f32.gmra.mrb[0].mxu0 %v2480
    %v2649 = vpop.f32.mrb[0].mxu0
    %v2650 = vadd.f32 %v2464, %v2649
    %v2651 = vpop.f32.mrb[0].mxu0
    %v2652 = vadd.f32 %v2464, %v2651
    %2653 = vmatprep.mubr.f32.mxu0 0.0
    %2654 = vmatmul.mubr.f32.gmra.mrb[0].mxu0 %v2483
    %v2655 = vpop.f32.mrb[0].mxu0
    %v2656 = vadd.f32 %v2469, %v2655
    %v2657 = vpop.f32.mrb[0].mxu0
    %v2658 = vadd.f32 %v2469, %v2657
    %2659 = vmatprep.mubr.f32.mxu0 0.0
    %2660 = vmatmul.mubr.f32.gmra.mrb[0].mxu0 %v2486
    %v2661 = vpop.f32.mrb[0].mxu0
    %v2662 = vadd.f32 %v2474, %v2661
    %v2663 = vpop.f32.mrb[0].mxu0
    %v2664 = vadd.f32 %v2474, %v2663
    %2665 = vdwg.mxu0
    %2666 = vmatprep.subr.mxu0 %v2448
    %2667 = vmatpush1.msra.mxu0 %v2447
    %2668 = vmatprep.subr.mxu0 0.0
    %2669 = vmatpush1.msra.mxu0 0.0
    %2670 = vmatprep.subr.mxu0 0.0
    %2671 = vmatpush1.msra.mxu0 0.0
    %2672 = vmatprep.subr.mxu0 0.0
    %2673 = vmatpush1.msra.mxu0 0.0
    %2674 = vmatprep.subr.mxu0 0.0
    %2675 = vmatpush1.msra.mxu0 0.0
    %2676 = vmatprep.subr.mxu0 0.0
    %2677 = vmatpush1.msra.mxu0 0.0
    %2678 = vmatprep.subr.mxu0 0.0
    %2679 = vmatpush1.msra.mxu0 0.0
    %2680 = vmatprep.subr.mxu0 0.0
    %2681 = vmatpush1.msra.mxu0 0.0
    %2682 = vmatprep.subr.mxu0 0.0
    %2683 = vmatpush1.msra.mxu0 0.0
    %2684 = vmatprep.subr.mxu0 0.0
    %2685 = vmatpush1.msra.mxu0 0.0
    %2686 = vmatprep.subr.mxu0 0.0
    %2687 = vmatpush1.msra.mxu0 0.0
    %2688 = vmatprep.subr.mxu0 0.0
    %2689 = vmatpush1.msra.mxu0 0.0
    %2690 = vmatprep.subr.mxu0 0.0
    %2691 = vmatpush1.msra.mxu0 0.0
    %2692 = vmatprep.subr.mxu0 0.0
    %2693 = vmatpush1.msra.mxu0 0.0
    %2694 = vmatprep.subr.mxu0 0.0
    %2695 = vmatpush1.msra.mxu0 0.0
    %2696 = vmatprep.subr.mxu0 0.0
    %2697 = vmatpush1.msra.mxu0 0.0
    %2698 = vmatprep.subr.mxu0 0.0
    %2699 = vmatpush1.msra.mxu0 0.0
    %2700 = vmatprep.subr.mxu0 0.0
    %2701 = vmatpush1.msra.mxu0 0.0
    %2702 = vmatprep.subr.mxu0 0.0
    %2703 = vmatpush1.msra.mxu0 0.0
    %2704 = vmatprep.subr.mxu0 0.0
    %2705 = vmatpush1.msra.mxu0 0.0
    %2706 = vmatprep.subr.mxu0 0.0
    %2707 = vmatpush1.msra.mxu0 0.0
    %2708 = vmatprep.subr.mxu0 0.0
    %2709 = vmatpush1.msra.mxu0 0.0
    %2710 = vmatprep.subr.mxu0 0.0
    %2711 = vmatpush1.msra.mxu0 0.0
    %2712 = vmatprep.subr.mxu0 0.0
    %2713 = vmatpush1.msra.mxu0 0.0
    %2714 = vmatprep.subr.mxu0 0.0
    %2715 = vmatpush1.msra.mxu0 0.0
    %2716 = vmatprep.subr.mxu0 0.0
    %2717 = vmatpush1.msra.mxu0 0.0
    %2718 = vmatprep.subr.mxu0 0.0
    %2719 = vmatpush1.msra.mxu0 0.0
    %2720 = vmatprep.subr.mxu0 0.0
    %2721 = vmatpush1.msra.mxu0 0.0
    %2722 = vmatprep.subr.mxu0 0.0
    %2723 = vmatpush1.msra.mxu0 0.0
    %2724 = vmatprep.subr.mxu0 0.0
    %2725 = vmatpush1.msra.mxu0 0.0
    %2726 = vmatprep.subr.mxu0 0.0
    %2727 = vmatpush1.msra.mxu0 0.0
    %2728 = vmatprep.subr.mxu0 0.0
    %2729 = vmatpush1.msra.mxu0 0.0
    %2730 = vmatprep.mubr.f32.mxu0 0.0
    %2731 = vmatmul.mubr.f32.gmra.mrb[0].mxu0 %v2477
    %v2732 = vpop.f32.mrb[0].mxu0
    %v2733 = vadd.f32 %v2459, %v2732
    %v2734 = vpop.f32.mrb[0].mxu0
    %v2735 = vadd.f32 %v2459, %v2734
    %2736 = vmatprep.mubr.f32.mxu0 0.0
    %2737 = vmatmul.mubr.f32.gmra.mrb[0].mxu0 %v2480
    %v2738 = vpop.f32.mrb[0].mxu0
    %v2739 = vadd.f32 %v2464, %v2738
    %v2740 = vpop.f32.mrb[0].mxu0
    %v2741 = vadd.f32 %v2464, %v2740
    %2742 = vmatprep.mubr.f32.mxu0 0.0
    %2743 = vmatmul.mubr.f32.gmra.mrb[0].mxu0 %v2483
    %v2744 = vpop.f32.mrb[0].mxu0
    %v2745 = vadd.f32 %v2469, %v2744
    %v2746 = vpop.f32.mrb[0].mxu0
    %v2747 = vadd.f32 %v2469, %v2746
    %2748 = vmatprep.mubr.f32.mxu0 0.0
    %2749 = vmatmul.mubr.f32.gmra.mrb[0].mxu0 %v2486
    %v2750 = vpop.f32.mrb[0].mxu0
    %v2751 = vadd.f32 %v2474, %v2750
    %v2752 = vpop.f32.mrb[0].mxu0
    %v2753 = vadd.f32 %v2474, %v2752
    %2754 = vdwg.mxu0
    %2755 = vmatprep.subr.mxu0 %v2450
    %2756 = vmatpush1.msra.mxu0 %v2449
    %2757 = vmatprep.subr.mxu0 0.0
    %2758 = vmatpush1.msra.mxu0 0.0
    %2759 = vmatprep.subr.mxu0 0.0
    %2760 = vmatpush1.msra.mxu0 0.0
    %2761 = vmatprep.subr.mxu0 0.0
    %2762 = vmatpush1.msra.mxu0 0.0
    %2763 = vmatprep.subr.mxu0 0.0
    %2764 = vmatpush1.msra.mxu0 0.0
    %2765 = vmatprep.subr.mxu0 0.0
    %2766 = vmatpush1.msra.mxu0 0.0
    %2767 = vmatprep.subr.mxu0 0.0
    %2768 = vmatpush1.msra.mxu0 0.0
    %2769 = vmatprep.subr.mxu0 0.0
    %2770 = vmatpush1.msra.mxu0 0.0
    %2771 = vmatprep.subr.mxu0 0.0
    %2772 = vmatpush1.msra.mxu0 0.0
    %2773 = vmatprep.subr.mxu0 0.0
    %2774 = vmatpush1.msra.mxu0 0.0
    %2775 = vmatprep.subr.mxu0 0.0
    %2776 = vmatpush1.msra.mxu0 0.0
    %2777 = vmatprep.subr.mxu0 0.0
    %2778 = vmatpush1.msra.mxu0 0.0
    %2779 = vmatprep.subr.mxu0 0.0
    %2780 = vmatpush1.msra.mxu0 0.0
    %2781 = vmatprep.subr.mxu0 0.0
    %2782 = vmatpush1.msra.mxu0 0.0
    %2783 = vmatprep.subr.mxu0 0.0
    %2784 = vmatpush1.msra.mxu0 0.0
    %2785 = vmatprep.subr.mxu0 0.0
    %2786 = vmatpush1.msra.mxu0 0.0
    %2787 = vmatprep.subr.mxu0 0.0
    %2788 = vmatpush1.msra.mxu0 0.0
    %2789 = vmatprep.subr.mxu0 0.0
    %2790 = vmatpush1.msra.mxu0 0.0
    %2791 = vmatprep.subr.mxu0 0.0
    %2792 = vmatpush1.msra.mxu0 0.0
    %2793 = vmatprep.subr.mxu0 0.0
    %2794 = vmatpush1.msra.mxu0 0.0
    %2795 = vmatprep.subr.mxu0 0.0
    %2796 = vmatpush1.msra.mxu0 0.0
    %2797 = vmatprep.subr.mxu0 0.0
    %2798 = vmatpush1.msra.mxu0 0.0
    %2799 = vmatprep.subr.mxu0 0.0
    %2800 = vmatpush1.msra.mxu0 0.0
    %2801 = vmatprep.subr.mxu0 0.0
    %2802 = vmatpush1.msra.mxu0 0.0
    %2803 = vmatprep.subr.mxu0 0.0
    %2804 = vmatpush1.msra.mxu0 0.0
    %2805 = vmatprep.subr.mxu0 0.0
    %2806 = vmatpush1.msra.mxu0 0.0
    %2807 = vmatprep.subr.mxu0 0.0
    %2808 = vmatpush1.msra.mxu0 0.0
    %2809 = vmatprep.subr.mxu0 0.0
    %2810 = vmatpush1.msra.mxu0 0.0
    %2811 = vmatprep.subr.mxu0 0.0
    %2812 = vmatpush1.msra.mxu0 0.0
    %2813 = vmatprep.subr.mxu0 0.0
    %2814 = vmatpush1.msra.mxu0 0.0
    %2815 = vmatprep.subr.mxu0 0.0
    %2816 = vmatpush1.msra.mxu0 0.0
    %2817 = vmatprep.subr.mxu0 0.0
    %2818 = vmatpush1.msra.mxu0 0.0
    %2819 = vmatprep.mubr.f32.mxu0 0.0
    %2820 = vmatmul.mubr.f32.gmra.mrb[0].mxu0 %v2477
    %v2821 = vpop.f32.mrb[0].mxu0
    %v2822 = vadd.f32 %v2459, %v2821
    %v2823 = vpop.f32.mrb[0].mxu0
    %v2824 = vadd.f32 %v2459, %v2823
    %2825 = vmatprep.mubr.f32.mxu0 0.0
    %2826 = vmatmul.mubr.f32.gmra.mrb[0].mxu0 %v2480
    %v2827 = vpop.f32.mrb[0].mxu0
    %v2828 = vadd.f32 %v2464, %v2827
    %v2829 = vpop.f32.mrb[0].mxu0
    %v2830 = vadd.f32 %v2464, %v2829
    %2831 = vmatprep.mubr.f32.mxu0 0.0
    %2832 = vmatmul.mubr.f32.gmra.mrb[0].mxu0 %v2483
    %v2833 = vpop.f32.mrb[0].mxu0
    %v2834 = vadd.f32 %v2469, %v2833
    %v2835 = vpop.f32.mrb[0].mxu0
    %v2836 = vadd.f32 %v2469, %v2835
    %2837 = vmatprep.mubr.f32.mxu0 0.0
    %2838 = vmatmul.mubr.f32.gmra.mrb[0].mxu0 %v2486
    %v2839 = vpop.f32.mrb[0].mxu0
    %v2840 = vadd.f32 %v2474, %v2839
    %v2841 = vpop.f32.mrb[0].mxu0
    %v2842 = vadd.f32 %v2474, %v2841
    %2843 = vdwg.mxu0
    %2844 = vst [vmem:[#allocation3] sm:$0xff] %v2555
    %2845 = vst [vmem:[#allocation3 + $0x8] sm:$0xff] %v2557
    %2846 = vst [vmem:[#allocation3 + $0x10] sm:$0xff] %v2644
    %2847 = vst [vmem:[#allocation3 + $0x18] sm:$0xff] %v2646
    %2848 = vst [vmem:[#allocation3 + $0x20] sm:$0xff] %v2733
    %2849 = vst [vmem:[#allocation3 + $0x28] sm:$0xff] %v2735
    %2850 = vst [vmem:[#allocation3 + $0x30] sm:$0xff] %v2822
    %2851 = vst [vmem:[#allocation3 + $0x38] sm:$0xff] %v2824
    %2852 = vst [vmem:[#allocation3 + $0x40] sm:$0xff] %v2561
    %2853 = vst [vmem:[#allocation3 + $0x48] sm:$0xff] %v2563
    %2854 = vst [vmem:[#allocation3 + $0x50] sm:$0xff] %v2650
    %2855 = vst [vmem:[#allocation3 + $0x58] sm:$0xff] %v2652
    %2856 = vst [vmem:[#allocation3 + $0x60] sm:$0xff] %v2739
    %2857 = vst [vmem:[#allocation3 + $0x68] sm:$0xff] %v2741
    %2858 = vst [vmem:[#allocation3 + $0x70] sm:$0xff] %v2828
    %2859 = vst [vmem:[#allocation3 + $0x78] sm:$0xff] %v2830
    %2860 = vst [vmem:[#allocation3 + $0x80] sm:$0xff] %v2567
    %2861 = vst [vmem:[#allocation3 + $0x88] sm:$0xff] %v2569
    %2862 = vst [vmem:[#allocation3 + $0x90] sm:$0xff] %v2656
    %2863 = vst [vmem:[#allocation3 + $0x98] sm:$0xff] %v2658
    %2864 = vst [vmem:[#allocation3 + $0xa0] sm:$0xff] %v2745
    %2865 = vst [vmem:[#allocation3 + $0xa8] sm:$0xff] %v2747
    %2866 = vst [vmem:[#allocation3 + $0xb0] sm:$0xff] %v2834
    %2867 = vst [vmem:[#allocation3 + $0xb8] sm:$0xff] %v2836
    %2868 = vst [vmem:[#allocation3 + $0xc0] sm:$0xff] %v2573
    %2869 = vst [vmem:[#allocation3 + $0xc8] sm:$0xff] %v2575
    %2870 = vst [vmem:[#allocation3 + $0xd0] sm:$0xff] %v2662
    %2871 = vst [vmem:[#allocation3 + $0xd8] sm:$0xff] %v2664
    %2872 = vst [vmem:[#allocation3 + $0xe0] sm:$0xff] %v2751
    %2873 = vst [vmem:[#allocation3 + $0xe8] sm:$0xff] %v2753
    %2874 = vst [vmem:[#allocation3 + $0xf0] sm:$0xff] %v2840
    %2875 = vst [vmem:[#allocation3 + $0xf8] sm:$0xff] %v2842
    %s2876 = scalar_lea.vmem %s2, 64
    %v2877 = vld [vmem:[%s2876] sm:$0xff]
    %v2878 = vld [vmem:[%s2876 + $0x8] sm:$0xff]
    %v2879 = vld [vmem:[%s2876 + $0x10] sm:$0xff]
    %v2880 = vld [vmem:[%s2876 + $0x18] sm:$0xff]
    %2882 = vset.pattern.permute.xlu0 0
    %2883 = vperm.xlu0 %2882, %v2877
    %v2884 = vpop.permute.xlu0 %2883
    %2887 = vset.pattern.permute.xlu0 0
    %2888 = vperm.xlu0 %2887, %v2878
    %v2889 = vpop.permute.xlu0 %2888
    %2892 = vset.pattern.permute.xlu0 0
    %2893 = vperm.xlu0 %2892, %v2879
    %v2894 = vpop.permute.xlu0 %2893
    %2897 = vset.pattern.permute.xlu0 0
    %2898 = vperm.xlu0 %2897, %v2880
    %v2899 = vpop.permute.xlu0 %2898
    %2901 = vset.pattern.permute.xlu0 1
    %2902 = vperm.xlu0 %2901, %v2877
    %v2903 = vpop.permute.xlu0 %2902
    %2905 = vset.pattern.permute.xlu0 1
    %2906 = vperm.xlu0 %2905, %v2878
    %v2907 = vpop.permute.xlu0 %2906
    %2909 = vset.pattern.permute.xlu0 1
    %2910 = vperm.xlu0 %2909, %v2879
    %v2911 = vpop.permute.xlu0 %2910
    %2913 = vset.pattern.permute.xlu0 1
    %2914 = vperm.xlu0 %2913, %v2880
    %v2915 = vpop.permute.xlu0 %2914
    %2917 = vset.pattern.permute.xlu0 2
    %2918 = vperm.xlu0 %2917, %v2877
    %v2919 = vpop.permute.xlu0 %2918
    %2921 = vset.pattern.permute.xlu0 2
    %2922 = vperm.xlu0 %2921, %v2878
    %v2923 = vpop.permute.xlu0 %2922
    %2925 = vset.pattern.permute.xlu0 2
    %2926 = vperm.xlu0 %2925, %v2879
    %v2927 = vpop.permute.xlu0 %2926
    %2929 = vset.pattern.permute.xlu0 2
    %2930 = vperm.xlu0 %2929, %v2880
    %v2931 = vpop.permute.xlu0 %2930
    %2933 = vset.pattern.permute.xlu0 3
    %2934 = vperm.xlu0 %2933, %v2877
    %v2935 = vpop.permute.xlu0 %2934
    %2937 = vset.pattern.permute.xlu0 3
    %2938 = vperm.xlu0 %2937, %v2878
    %v2939 = vpop.permute.xlu0 %2938
    %2941 = vset.pattern.permute.xlu0 3
    %2942 = vperm.xlu0 %2941, %v2879
    %v2943 = vpop.permute.xlu0 %2942
    %2945 = vset.pattern.permute.xlu0 3
    %2946 = vperm.xlu0 %2945, %v2880
    %v2947 = vpop.permute.xlu0 %2946
    %2949 = vset.pattern.permute.xlu0 4
    %2950 = vperm.xlu0 %2949, %v2877
    %v2951 = vpop.permute.xlu0 %2950
    %2953 = vset.pattern.permute.xlu0 4
    %2954 = vperm.xlu0 %2953, %v2878
    %v2955 = vpop.permute.xlu0 %2954
    %2957 = vset.pattern.permute.xlu0 4
    %2958 = vperm.xlu0 %2957, %v2879
    %v2959 = vpop.permute.xlu0 %2958
    %2961 = vset.pattern.permute.xlu0 4
    %2962 = vperm.xlu0 %2961, %v2880
    %v2963 = vpop.permute.xlu0 %2962
    %2965 = vset.pattern.permute.xlu0 5
    %2966 = vperm.xlu0 %2965, %v2877
    %v2967 = vpop.permute.xlu0 %2966
    %2969 = vset.pattern.permute.xlu0 5
    %2970 = vperm.xlu0 %2969, %v2878
    %v2971 = vpop.permute.xlu0 %2970
    %2973 = vset.pattern.permute.xlu0 5
    %2974 = vperm.xlu0 %2973, %v2879
    %v2975 = vpop.permute.xlu0 %2974
    %2977 = vset.pattern.permute.xlu0 5
    %2978 = vperm.xlu0 %2977, %v2880
    %v2979 = vpop.permute.xlu0 %2978
    %v2981 = vld [vmem:[#allocation3] sm:$0xff]
    %v2982 = vld [vmem:[#allocation3 + $0x40] sm:$0xff]
    %v2983 = vld [vmem:[#allocation3 + $0x80] sm:$0xff]
    %v2984 = vld [vmem:[#allocation3 + $0xc0] sm:$0xff]
    %v2985 = vtanh.pop %v2981
    %v2986 = vtanh.pop %v2982
    %v2987 = vtanh.pop %v2983
    %v2988 = vtanh.pop %v2984
    %v2989 = vmul.f32 %v2985, 0.5
    %v2990 = vadd.f32 %v2989, 0.5
    %v2991 = vmul.f32 %v2986, 0.5
    %v2992 = vadd.f32 %v2991, 0.5
    %v2993 = vmul.f32 %v2987, 0.5
    %v2994 = vadd.f32 %v2993, 0.5
    %v2995 = vmul.f32 %v2992, 0.0
    %v2996 = vmul.f32 %v2990, %v2988
    %v2997 = vadd.f32 %v2995, %v2996
    %v2998 = vtanh.pop %v2997
    %v2999 = vmul.f32 %v2994, %v2998
    %v3000 = vld [vmem:[#allocation3 + $0x8] sm:$0xff]
    %v3001 = vld [vmem:[#allocation3 + $0x48] sm:$0xff]
    %v3002 = vld [vmem:[#allocation3 + $0x88] sm:$0xff]
    %v3003 = vld [vmem:[#allocation3 + $0xc8] sm:$0xff]
    %v3004 = vlaneseq
    %v3005 = vshrl.u32 %v3004, 7
    %v3006 = vsub.s32 0, %v3005
    %v3007 = vrot.slane %v2999, %v3006
    %v3008 = vmul.f32 %v2884, %v3007
    %v3009 = vmul.f32 %v2889, %v3007
    %v3010 = vmul.f32 %v2894, %v3007
    %v3011 = vmul.f32 %v2899, %v3007
    %v3012 = vlaneseq
    %v3013 = vshrl.u32 %v3012, 7
    %v3014 = vsub.s32 1, %v3013
    %v3015 = vrot.slane %v2999, %v3014
    %v3016 = vmul.f32 %v2903, %v3015
    %v3017 = vmul.f32 %v2907, %v3015
    %v3018 = vmul.f32 %v2911, %v3015
    %v3019 = vmul.f32 %v2915, %v3015
    %v3020 = vadd.f32 %v3008, %v3016
    %v3021 = vadd.f32 %v3009, %v3017
    %v3022 = vadd.f32 %v3010, %v3018
    %v3023 = vadd.f32 %v3011, %v3019
    %v3024 = vlaneseq
    %v3025 = vshrl.u32 %v3024, 7
    %v3026 = vsub.s32 2, %v3025
    %v3027 = vrot.slane %v2999, %v3026
    %v3028 = vmul.f32 %v2919, %v3027
    %v3029 = vmul.f32 %v2923, %v3027
    %v3030 = vmul.f32 %v2927, %v3027
    %v3031 = vmul.f32 %v2931, %v3027
    %v3032 = vlaneseq
    %v3033 = vshrl.u32 %v3032, 7
    %v3034 = vsub.s32 3, %v3033
    %v3035 = vrot.slane %v2999, %v3034
    %v3036 = vmul.f32 %v2935, %v3035
    %v3037 = vmul.f32 %v2939, %v3035
    %v3038 = vmul.f32 %v2943, %v3035
    %v3039 = vmul.f32 %v2947, %v3035
    %v3040 = vadd.f32 %v3028, %v3036
    %v3041 = vadd.f32 %v3029, %v3037
    %v3042 = vadd.f32 %v3030, %v3038
    %v3043 = vadd.f32 %v3031, %v3039
    %v3044 = vadd.f32 %v3020, %v3040
    %v3045 = vadd.f32 %v3021, %v3041
    %v3046 = vadd.f32 %v3022, %v3042
    %v3047 = vadd.f32 %v3023, %v3043
    %v3048 = vlaneseq
    %v3049 = vshrl.u32 %v3048, 7
    %v3050 = vsub.s32 4, %v3049
    %v3051 = vrot.slane %v2999, %v3050
    %v3052 = vmul.f32 %v2951, %v3051
    %v3053 = vmul.f32 %v2955, %v3051
    %v3054 = vmul.f32 %v2959, %v3051
    %v3055 = vmul.f32 %v2963, %v3051
    %v3056 = vlaneseq
    %v3057 = vshrl.u32 %v3056, 7
    %v3058 = vsub.s32 5, %v3057
    %v3059 = vrot.slane %v2999, %v3058
    %v3060 = vmul.f32 %v2967, %v3059
    %v3061 = vmul.f32 %v2971, %v3059
    %v3062 = vmul.f32 %v2975, %v3059
    %v3063 = vmul.f32 %v2979, %v3059
    %v3064 = vadd.f32 %v3052, %v3060
    %v3065 = vadd.f32 %v3053, %v3061
    %v3066 = vadd.f32 %v3054, %v3062
    %v3067 = vadd.f32 %v3055, %v3063
    %v3068 = vadd.f32 %v3044, %v3064
    %v3069 = vadd.f32 %v3045, %v3065
    %v3070 = vadd.f32 %v3046, %v3066
    %v3071 = vadd.f32 %v3047, %v3067
    %v3072 = vadd.f32 %v3000, %v3068
    %v3073 = vadd.f32 %v3001, %v3069
    %v3074 = vadd.f32 %v3002, %v3070
    %v3075 = vadd.f32 %v3003, %v3071
    %v3076 = vtanh.pop %v3072
    %v3077 = vtanh.pop %v3073
    %v3078 = vtanh.pop %v3074
    %v3079 = vtanh.pop %v3075
    %v3080 = vmul.f32 %v3076, 0.5
    %v3081 = vadd.f32 %v3080, 0.5
    %v3082 = vmul.f32 %v3077, 0.5
    %v3083 = vadd.f32 %v3082, 0.5
    %v3084 = vmul.f32 %v3078, 0.5
    %v3085 = vadd.f32 %v3084, 0.5
    %v3086 = vmul.f32 %v3083, %v2997
    %v3087 = vmul.f32 %v3081, %v3079
    %v3088 = vadd.f32 %v3086, %v3087
    %v3089 = vtanh.pop %v3088
    %v3090 = vmul.f32 %v3085, %v3089
    %v3091 = vld [vmem:[#allocation3 + $0x10] sm:$0xff]
    %v3092 = vld [vmem:[#allocation3 + $0x50] sm:$0xff]
    %v3093 = vld [vmem:[#allocation3 + $0x90] sm:$0xff]
    %v3094 = vld [vmem:[#allocation3 + $0xd0] sm:$0xff]
    %v3095 = vlaneseq
    %v3096 = vshrl.u32 %v3095, 7
    %v3097 = vsub.s32 0, %v3096
    %v3098 = vrot.slane %v3090, %v3097
    %v3099 = vmul.f32 %v2884, %v3098
    %v3100 = vmul.f32 %v2889, %v3098
    %v3101 = vmul.f32 %v2894, %v3098
    %v3102 = vmul.f32 %v2899, %v3098
    %v3103 = vlaneseq
    %v3104 = vshrl.u32 %v3103, 7
    %v3105 = vsub.s32 1, %v3104
    %v3106 = vrot.slane %v3090, %v3105
    %v3107 = vmul.f32 %v2903, %v3106
    %v3108 = vmul.f32 %v2907, %v3106
    %v3109 = vmul.f32 %v2911, %v3106
    %v3110 = vmul.f32 %v2915, %v3106
    %v3111 = vadd.f32 %v3099, %v3107
    %v3112 = vadd.f32 %v3100, %v3108
    %v3113 = vadd.f32 %v3101, %v3109
    %v3114 = vadd.f32 %v3102, %v3110
    %v3115 = vlaneseq
    %v3116 = vshrl.u32 %v3115, 7
    %v3117 = vsub.s32 2, %v3116
    %v3118 = vrot.slane %v3090, %v3117
    %v3119 = vmul.f32 %v2919, %v3118
    %v3120 = vmul.f32 %v2923, %v3118
    %v3121 = vmul.f32 %v2927, %v3118
    %v3122 = vmul.f32 %v2931, %v3118
    %v3123 = vlaneseq
    %v3124 = vshrl.u32 %v3123, 7
    %v3125 = vsub.s32 3, %v3124
    %v3126 = vrot.slane %v3090, %v3125
    %v3127 = vmul.f32 %v2935, %v3126
    %v3128 = vmul.f32 %v2939, %v3126
    %v3129 = vmul.f32 %v2943, %v3126
    %v3130 = vmul.f32 %v2947, %v3126
    %v3131 = vadd.f32 %v3119, %v3127
    %v3132 = vadd.f32 %v3120, %v3128
    %v3133 = vadd.f32 %v3121, %v3129
    %v3134 = vadd.f32 %v3122, %v3130
    %v3135 = vadd.f32 %v3111, %v3131
    %v3136 = vadd.f32 %v3112, %v3132
    %v3137 = vadd.f32 %v3113, %v3133
    %v3138 = vadd.f32 %v3114, %v3134
    %v3139 = vlaneseq
    %v3140 = vshrl.u32 %v3139, 7
    %v3141 = vsub.s32 4, %v3140
    %v3142 = vrot.slane %v3090, %v3141
    %v3143 = vmul.f32 %v2951, %v3142
    %v3144 = vmul.f32 %v2955, %v3142
    %v3145 = vmul.f32 %v2959, %v3142
    %v3146 = vmul.f32 %v2963, %v3142
    %v3147 = vlaneseq
    %v3148 = vshrl.u32 %v3147, 7
    %v3149 = vsub.s32 5, %v3148
    %v3150 = vrot.slane %v3090, %v3149
    %v3151 = vmul.f32 %v2967, %v3150
    %v3152 = vmul.f32 %v2971, %v3150
    %v3153 = vmul.f32 %v2975, %v3150
    %v3154 = vmul.f32 %v2979, %v3150
    %v3155 = vadd.f32 %v3143, %v3151
    %v3156 = vadd.f32 %v3144, %v3152
    %v3157 = vadd.f32 %v3145, %v3153
    %v3158 = vadd.f32 %v3146, %v3154
    %v3159 = vadd.f32 %v3135, %v3155
    %v3160 = vadd.f32 %v3136, %v3156
    %v3161 = vadd.f32 %v3137, %v3157
    %v3162 = vadd.f32 %v3138, %v3158
    %v3163 = vadd.f32 %v3091, %v3159
    %v3164 = vadd.f32 %v3092, %v3160
    %v3165 = vadd.f32 %v3093, %v3161
    %v3166 = vadd.f32 %v3094, %v3162
    %v3167 = vtanh.pop %v3163
    %v3168 = vtanh.pop %v3164
    %v3169 = vtanh.pop %v3165
    %v3170 = vtanh.pop %v3166
    %v3171 = vmul.f32 %v3167, 0.5
    %v3172 = vadd.f32 %v3171, 0.5
    %v3173 = vmul.f32 %v3168, 0.5
    %v3174 = vadd.f32 %v3173, 0.5
    %v3175 = vmul.f32 %v3169, 0.5
    %v3176 = vadd.f32 %v3175, 0.5
    %v3177 = vmul.f32 %v3174, %v3088
    %v3178 = vmul.f32 %v3172, %v3170
    %v3179 = vadd.f32 %v3177, %v3178
    %v3180 = vtanh.pop %v3179
    %v3181 = vmul.f32 %v3176, %v3180
    %v3182 = vld [vmem:[#allocation3 + $0x18] sm:$0xff]
    %v3183 = vld [vmem:[#allocation3 + $0x58] sm:$0xff]
    %v3184 = vld [vmem:[#allocation3 + $0x98] sm:$0xff]
    %v3185 = vld [vmem:[#allocation3 + $0xd8] sm:$0xff]
    %v3186 = vlaneseq
    %v3187 = vshrl.u32 %v3186, 7
    %v3188 = vsub.s32 0, %v3187
    %v3189 = vrot.slane %v3181, %v3188
    %v3190 = vmul.f32 %v2884, %v3189
    %v3191 = vmul.f32 %v2889, %v3189
    %v3192 = vmul.f32 %v2894, %v3189
    %v3193 = vmul.f32 %v2899, %v3189
    %v3194 = vlaneseq
    %v3195 = vshrl.u32 %v3194, 7
    %v3196 = vsub.s32 1, %v3195
    %v3197 = vrot.slane %v3181, %v3196
    %v3198 = vmul.f32 %v2903, %v3197
    %v3199 = vmul.f32 %v2907, %v3197
    %v3200 = vmul.f32 %v2911, %v3197
    %v3201 = vmul.f32 %v2915, %v3197
    %v3202 = vadd.f32 %v3190, %v3198
    %v3203 = vadd.f32 %v3191, %v3199
    %v3204 = vadd.f32 %v3192, %v3200
    %v3205 = vadd.f32 %v3193, %v3201
    %v3206 = vlaneseq
    %v3207 = vshrl.u32 %v3206, 7
    %v3208 = vsub.s32 2, %v3207
    %v3209 = vrot.slane %v3181, %v3208
    %v3210 = vmul.f32 %v2919, %v3209
    %v3211 = vmul.f32 %v2923, %v3209
    %v3212 = vmul.f32 %v2927, %v3209
    %v3213 = vmul.f32 %v2931, %v3209
    %v3214 = vlaneseq
    %v3215 = vshrl.u32 %v3214, 7
    %v3216 = vsub.s32 3, %v3215
    %v3217 = vrot.slane %v3181, %v3216
    %v3218 = vmul.f32 %v2935, %v3217
    %v3219 = vmul.f32 %v2939, %v3217
    %v3220 = vmul.f32 %v2943, %v3217
    %v3221 = vmul.f32 %v2947, %v3217
    %v3222 = vadd.f32 %v3210, %v3218
    %v3223 = vadd.f32 %v3211, %v3219
    %v3224 = vadd.f32 %v3212, %v3220
    %v3225 = vadd.f32 %v3213, %v3221
    %v3226 = vadd.f32 %v3202, %v3222
    %v3227 = vadd.f32 %v3203, %v3223
    %v3228 = vadd.f32 %v3204, %v3224
    %v3229 = vadd.f32 %v3205, %v3225
    %v3230 = vlaneseq
    %v3231 = vshrl.u32 %v3230, 7
    %v3232 = vsub.s32 4, %v3231
    %v3233 = vrot.slane %v3181, %v3232
    %v3234 = vmul.f32 %v2951, %v3233
    %v3235 = vmul.f32 %v2955, %v3233
    %v3236 = vmul.f32 %v2959, %v3233
    %v3237 = vmul.f32 %v2963, %v3233
    %v3238 = vlaneseq
    %v3239 = vshrl.u32 %v3238, 7
    %v3240 = vsub.s32 5, %v3239
    %v3241 = vrot.slane %v3181, %v3240
    %v3242 = vmul.f32 %v2967, %v3241
    %v3243 = vmul.f32 %v2971, %v3241
    %v3244 = vmul.f32 %v2975, %v3241
    %v3245 = vmul.f32 %v2979, %v3241
    %v3246 = vadd.f32 %v3234, %v3242
    %v3247 = vadd.f32 %v3235, %v3243
    %v3248 = vadd.f32 %v3236, %v3244
    %v3249 = vadd.f32 %v3237, %v3245
    %v3250 = vadd.f32 %v3226, %v3246
    %v3251 = vadd.f32 %v3227, %v3247
    %v3252 = vadd.f32 %v3228, %v3248
    %v3253 = vadd.f32 %v3229, %v3249
    %v3254 = vadd.f32 %v3182, %v3250
    %v3255 = vadd.f32 %v3183, %v3251
    %v3256 = vadd.f32 %v3184, %v3252
    %v3257 = vadd.f32 %v3185, %v3253
    %v3258 = vtanh.pop %v3254
    %v3259 = vtanh.pop %v3255
    %v3260 = vtanh.pop %v3256
    %v3261 = vtanh.pop %v3257
    %v3262 = vmul.f32 %v3258, 0.5
    %v3263 = vadd.f32 %v3262, 0.5
    %v3264 = vmul.f32 %v3259, 0.5
    %v3265 = vadd.f32 %v3264, 0.5
    %v3266 = vmul.f32 %v3260, 0.5
    %v3267 = vadd.f32 %v3266, 0.5
    %v3268 = vmul.f32 %v3265, %v3179
    %v3269 = vmul.f32 %v3263, %v3261
    %v3270 = vadd.f32 %v3268, %v3269
    %v3271 = vtanh.pop %v3270
    %v3272 = vmul.f32 %v3267, %v3271
    %v3273 = vld [vmem:[#allocation3 + $0x20] sm:$0xff]
    %v3274 = vld [vmem:[#allocation3 + $0x60] sm:$0xff]
    %v3275 = vld [vmem:[#allocation3 + $0xa0] sm:$0xff]
    %v3276 = vld [vmem:[#allocation3 + $0xe0] sm:$0xff]
    %v3277 = vlaneseq
    %v3278 = vshrl.u32 %v3277, 7
    %v3279 = vsub.s32 0, %v3278
    %v3280 = vrot.slane %v3272, %v3279
    %v3281 = vmul.f32 %v2884, %v3280
    %v3282 = vmul.f32 %v2889, %v3280
    %v3283 = vmul.f32 %v2894, %v3280
    %v3284 = vmul.f32 %v2899, %v3280
    %v3285 = vlaneseq
    %v3286 = vshrl.u32 %v3285, 7
    %v3287 = vsub.s32 1, %v3286
    %v3288 = vrot.slane %v3272, %v3287
    %v3289 = vmul.f32 %v2903, %v3288
    %v3290 = vmul.f32 %v2907, %v3288
    %v3291 = vmul.f32 %v2911, %v3288
    %v3292 = vmul.f32 %v2915, %v3288
    %v3293 = vadd.f32 %v3281, %v3289
    %v3294 = vadd.f32 %v3282, %v3290
    %v3295 = vadd.f32 %v3283, %v3291
    %v3296 = vadd.f32 %v3284, %v3292
    %v3297 = vlaneseq
    %v3298 = vshrl.u32 %v3297, 7
    %v3299 = vsub.s32 2, %v3298
    %v3300 = vrot.slane %v3272, %v3299
    %v3301 = vmul.f32 %v2919, %v3300
    %v3302 = vmul.f32 %v2923, %v3300
    %v3303 = vmul.f32 %v2927, %v3300
    %v3304 = vmul.f32 %v2931, %v3300
    %v3305 = vlaneseq
    %v3306 = vshrl.u32 %v3305, 7
    %v3307 = vsub.s32 3, %v3306
    %v3308 = vrot.slane %v3272, %v3307
    %v3309 = vmul.f32 %v2935, %v3308
    %v3310 = vmul.f32 %v2939, %v3308
    %v3311 = vmul.f32 %v2943, %v3308
    %v3312 = vmul.f32 %v2947, %v3308
    %v3313 = vadd.f32 %v3301, %v3309
    %v3314 = vadd.f32 %v3302, %v3310
    %v3315 = vadd.f32 %v3303, %v3311
    %v3316 = vadd.f32 %v3304, %v3312
    %v3317 = vadd.f32 %v3293, %v3313
    %v3318 = vadd.f32 %v3294, %v3314
    %v3319 = vadd.f32 %v3295, %v3315
    %v3320 = vadd.f32 %v3296, %v3316
    %v3321 = vlaneseq
    %v3322 = vshrl.u32 %v3321, 7
    %v3323 = vsub.s32 4, %v3322
    %v3324 = vrot.slane %v3272, %v3323
    %v3325 = vmul.f32 %v2951, %v3324
    %v3326 = vmul.f32 %v2955, %v3324
    %v3327 = vmul.f32 %v2959, %v3324
    %v3328 = vmul.f32 %v2963, %v3324
    %v3329 = vlaneseq
    %v3330 = vshrl.u32 %v3329, 7
    %v3331 = vsub.s32 5, %v3330
    %v3332 = vrot.slane %v3272, %v3331
    %v3333 = vmul.f32 %v2967, %v3332
    %v3334 = vmul.f32 %v2971, %v3332
    %v3335 = vmul.f32 %v2975, %v3332
    %v3336 = vmul.f32 %v2979, %v3332
    %v3337 = vadd.f32 %v3325, %v3333
    %v3338 = vadd.f32 %v3326, %v3334
    %v3339 = vadd.f32 %v3327, %v3335
    %v3340 = vadd.f32 %v3328, %v3336
    %v3341 = vadd.f32 %v3317, %v3337
    %v3342 = vadd.f32 %v3318, %v3338
    %v3343 = vadd.f32 %v3319, %v3339
    %v3344 = vadd.f32 %v3320, %v3340
    %v3345 = vadd.f32 %v3273, %v3341
    %v3346 = vadd.f32 %v3274, %v3342
    %v3347 = vadd.f32 %v3275, %v3343
    %v3348 = vadd.f32 %v3276, %v3344
    %v3349 = vtanh.pop %v3345
    %v3350 = vtanh.pop %v3346
    %v3351 = vtanh.pop %v3347
    %v3352 = vtanh.pop %v3348
    %v3353 = vmul.f32 %v3349, 0.5
    %v3354 = vadd.f32 %v3353, 0.5
    %v3355 = vmul.f32 %v3350, 0.5
    %v3356 = vadd.f32 %v3355, 0.5
    %v3357 = vmul.f32 %v3351, 0.5
    %v3358 = vadd.f32 %v3357, 0.5
    %v3359 = vmul.f32 %v3356, %v3270
    %v3360 = vmul.f32 %v3354, %v3352
    %v3361 = vadd.f32 %v3359, %v3360
    %v3362 = vtanh.pop %v3361
    %v3363 = vmul.f32 %v3358, %v3362
    %v3364 = vld [vmem:[#allocation3 + $0x28] sm:$0xff]
    %v3365 = vld [vmem:[#allocation3 + $0x68] sm:$0xff]
    %v3366 = vld [vmem:[#allocation3 + $0xa8] sm:$0xff]
    %v3367 = vld [vmem:[#allocation3 + $0xe8] sm:$0xff]
    %v3368 = vlaneseq
    %v3369 = vshrl.u32 %v3368, 7
    %v3370 = vsub.s32 0, %v3369
    %v3371 = vrot.slane %v3363, %v3370
    %v3372 = vmul.f32 %v2884, %v3371
    %v3373 = vmul.f32 %v2889, %v3371
    %v3374 = vmul.f32 %v2894, %v3371
    %v3375 = vmul.f32 %v2899, %v3371
    %v3376 = vlaneseq
    %v3377 = vshrl.u32 %v3376, 7
    %v3378 = vsub.s32 1, %v3377
    %v3379 = vrot.slane %v3363, %v3378
    %v3380 = vmul.f32 %v2903, %v3379
    %v3381 = vmul.f32 %v2907, %v3379
    %v3382 = vmul.f32 %v2911, %v3379
    %v3383 = vmul.f32 %v2915, %v3379
    %v3384 = vadd.f32 %v3372, %v3380
    %v3385 = vadd.f32 %v3373, %v3381
    %v3386 = vadd.f32 %v3374, %v3382
    %v3387 = vadd.f32 %v3375, %v3383
    %v3388 = vlaneseq
    %v3389 = vshrl.u32 %v3388, 7
    %v3390 = vsub.s32 2, %v3389
    %v3391 = vrot.slane %v3363, %v3390
    %v3392 = vmul.f32 %v2919, %v3391
    %v3393 = vmul.f32 %v2923, %v3391
    %v3394 = vmul.f32 %v2927, %v3391
    %v3395 = vmul.f32 %v2931, %v3391
    %v3396 = vlaneseq
    %v3397 = vshrl.u32 %v3396, 7
    %v3398 = vsub.s32 3, %v3397
    %v3399 = vrot.slane %v3363, %v3398
    %v3400 = vmul.f32 %v2935, %v3399
    %v3401 = vmul.f32 %v2939, %v3399
    %v3402 = vmul.f32 %v2943, %v3399
    %v3403 = vmul.f32 %v2947, %v3399
    %v3404 = vadd.f32 %v3392, %v3400
    %v3405 = vadd.f32 %v3393, %v3401
    %v3406 = vadd.f32 %v3394, %v3402
    %v3407 = vadd.f32 %v3395, %v3403
    %v3408 = vadd.f32 %v3384, %v3404
    %v3409 = vadd.f32 %v3385, %v3405
    %v3410 = vadd.f32 %v3386, %v3406
    %v3411 = vadd.f32 %v3387, %v3407
    %v3412 = vlaneseq
    %v3413 = vshrl.u32 %v3412, 7
    %v3414 = vsub.s32 4, %v3413
    %v3415 = vrot.slane %v3363, %v3414
    %v3416 = vmul.f32 %v2951, %v3415
    %v3417 = vmul.f32 %v2955, %v3415
    %v3418 = vmul.f32 %v2959, %v3415
    %v3419 = vmul.f32 %v2963, %v3415
    %v3420 = vlaneseq
    %v3421 = vshrl.u32 %v3420, 7
    %v3422 = vsub.s32 5, %v3421
    %v3423 = vrot.slane %v3363, %v3422
    %v3424 = vmul.f32 %v2967, %v3423
    %v3425 = vmul.f32 %v2971, %v3423
    %v3426 = vmul.f32 %v2975, %v3423
    %v3427 = vmul.f32 %v2979, %v3423
    %v3428 = vadd.f32 %v3416, %v3424
    %v3429 = vadd.f32 %v3417, %v3425
    %v3430 = vadd.f32 %v3418, %v3426
    %v3431 = vadd.f32 %v3419, %v3427
    %v3432 = vadd.f32 %v3408, %v3428
    %v3433 = vadd.f32 %v3409, %v3429
    %v3434 = vadd.f32 %v3410, %v3430
    %v3435 = vadd.f32 %v3411, %v3431
    %v3436 = vadd.f32 %v3364, %v3432
    %v3437 = vadd.f32 %v3365, %v3433
    %v3438 = vadd.f32 %v3366, %v3434
    %v3439 = vadd.f32 %v3367, %v3435
    %v3440 = vtanh.pop %v3436
    %v3441 = vtanh.pop %v3437
    %v3442 = vtanh.pop %v3438
    %v3443 = vtanh.pop %v3439
    %v3444 = vmul.f32 %v3440, 0.5
    %v3445 = vadd.f32 %v3444, 0.5
    %v3446 = vmul.f32 %v3441, 0.5
    %v3447 = vadd.f32 %v3446, 0.5
    %v3448 = vmul.f32 %v3442, 0.5
    %v3449 = vadd.f32 %v3448, 0.5
    %v3450 = vmul.f32 %v3447, %v3361
    %v3451 = vmul.f32 %v3445, %v3443
    %v3452 = vadd.f32 %v3450, %v3451
    %v3453 = vtanh.pop %v3452
    %v3454 = vmul.f32 %v3449, %v3453
    %v3455 = vld [vmem:[#allocation3 + $0x30] sm:$0xff]
    %v3456 = vld [vmem:[#allocation3 + $0x70] sm:$0xff]
    %v3457 = vld [vmem:[#allocation3 + $0xb0] sm:$0xff]
    %v3458 = vld [vmem:[#allocation3 + $0xf0] sm:$0xff]
    %v3459 = vlaneseq
    %v3460 = vshrl.u32 %v3459, 7
    %v3461 = vsub.s32 0, %v3460
    %v3462 = vrot.slane %v3454, %v3461
    %v3463 = vmul.f32 %v2884, %v3462
    %v3464 = vmul.f32 %v2889, %v3462
    %v3465 = vmul.f32 %v2894, %v3462
    %v3466 = vmul.f32 %v2899, %v3462
    %v3467 = vlaneseq
    %v3468 = vshrl.u32 %v3467, 7
    %v3469 = vsub.s32 1, %v3468
    %v3470 = vrot.slane %v3454, %v3469
    %v3471 = vmul.f32 %v2903, %v3470
    %v3472 = vmul.f32 %v2907, %v3470
    %v3473 = vmul.f32 %v2911, %v3470
    %v3474 = vmul.f32 %v2915, %v3470
    %v3475 = vadd.f32 %v3463, %v3471
    %v3476 = vadd.f32 %v3464, %v3472
    %v3477 = vadd.f32 %v3465, %v3473
    %v3478 = vadd.f32 %v3466, %v3474
    %v3479 = vlaneseq
    %v3480 = vshrl.u32 %v3479, 7
    %v3481 = vsub.s32 2, %v3480
    %v3482 = vrot.slane %v3454, %v3481
    %v3483 = vmul.f32 %v2919, %v3482
    %v3484 = vmul.f32 %v2923, %v3482
    %v3485 = vmul.f32 %v2927, %v3482
    %v3486 = vmul.f32 %v2931, %v3482
    %v3487 = vlaneseq
    %v3488 = vshrl.u32 %v3487, 7
    %v3489 = vsub.s32 3, %v3488
    %v3490 = vrot.slane %v3454, %v3489
    %v3491 = vmul.f32 %v2935, %v3490
    %v3492 = vmul.f32 %v2939, %v3490
    %v3493 = vmul.f32 %v2943, %v3490
    %v3494 = vmul.f32 %v2947, %v3490
    %v3495 = vadd.f32 %v3483, %v3491
    %v3496 = vadd.f32 %v3484, %v3492
    %v3497 = vadd.f32 %v3485, %v3493
    %v3498 = vadd.f32 %v3486, %v3494
    %v3499 = vadd.f32 %v3475, %v3495
    %v3500 = vadd.f32 %v3476, %v3496
    %v3501 = vadd.f32 %v3477, %v3497
    %v3502 = vadd.f32 %v3478, %v3498
    %v3503 = vlaneseq
    %v3504 = vshrl.u32 %v3503, 7
    %v3505 = vsub.s32 4, %v3504
    %v3506 = vrot.slane %v3454, %v3505
    %v3507 = vmul.f32 %v2951, %v3506
    %v3508 = vmul.f32 %v2955, %v3506
    %v3509 = vmul.f32 %v2959, %v3506
    %v3510 = vmul.f32 %v2963, %v3506
    %v3511 = vlaneseq
    %v3512 = vshrl.u32 %v3511, 7
    %v3513 = vsub.s32 5, %v3512
    %v3514 = vrot.slane %v3454, %v3513
    %v3515 = vmul.f32 %v2967, %v3514
    %v3516 = vmul.f32 %v2971, %v3514
    %v3517 = vmul.f32 %v2975, %v3514
    %v3518 = vmul.f32 %v2979, %v3514
    %v3519 = vadd.f32 %v3507, %v3515
    %v3520 = vadd.f32 %v3508, %v3516
    %v3521 = vadd.f32 %v3509, %v3517
    %v3522 = vadd.f32 %v3510, %v3518
    %v3523 = vadd.f32 %v3499, %v3519
    %v3524 = vadd.f32 %v3500, %v3520
    %v3525 = vadd.f32 %v3501, %v3521
    %v3526 = vadd.f32 %v3502, %v3522
    %v3527 = vadd.f32 %v3455, %v3523
    %v3528 = vadd.f32 %v3456, %v3524
    %v3529 = vadd.f32 %v3457, %v3525
    %v3530 = vadd.f32 %v3458, %v3526
    %v3531 = vtanh.pop %v3527
    %v3532 = vtanh.pop %v3528
    %v3533 = vtanh.pop %v3529
    %v3534 = vtanh.pop %v3530
    %v3535 = vmul.f32 %v3531, 0.5
    %v3536 = vadd.f32 %v3535, 0.5
    %v3537 = vmul.f32 %v3532, 0.5
    %v3538 = vadd.f32 %v3537, 0.5
    %v3539 = vmul.f32 %v3533, 0.5
    %v3540 = vadd.f32 %v3539, 0.5
    %v3541 = vmul.f32 %v3538, %v3452
    %v3542 = vmul.f32 %v3536, %v3534
    %v3543 = vadd.f32 %v3541, %v3542
    %v3544 = vtanh.pop %v3543
    %v3545 = vmul.f32 %v3540, %v3544
    %v3546 = vld [vmem:[#allocation3 + $0x38] sm:$0xff]
    %v3547 = vld [vmem:[#allocation3 + $0x78] sm:$0xff]
    %v3548 = vld [vmem:[#allocation3 + $0xb8] sm:$0xff]
    %v3549 = vld [vmem:[#allocation3 + $0xf8] sm:$0xff]
    %v3550 = vlaneseq
    %v3551 = vshrl.u32 %v3550, 7
    %v3552 = vsub.s32 0, %v3551
    %v3553 = vrot.slane %v3545, %v3552
    %v3554 = vmul.f32 %v2884, %v3553
    %v3555 = vmul.f32 %v2889, %v3553
    %v3556 = vmul.f32 %v2894, %v3553
    %v3557 = vmul.f32 %v2899, %v3553
    %v3558 = vlaneseq
    %v3559 = vshrl.u32 %v3558, 7
    %v3560 = vsub.s32 1, %v3559
    %v3561 = vrot.slane %v3545, %v3560
    %v3562 = vmul.f32 %v2903, %v3561
    %v3563 = vmul.f32 %v2907, %v3561
    %v3564 = vmul.f32 %v2911, %v3561
    %v3565 = vmul.f32 %v2915, %v3561
    %v3566 = vadd.f32 %v3554, %v3562
    %v3567 = vadd.f32 %v3555, %v3563
    %v3568 = vadd.f32 %v3556, %v3564
    %v3569 = vadd.f32 %v3557, %v3565
    %v3570 = vlaneseq
    %v3571 = vshrl.u32 %v3570, 7
    %v3572 = vsub.s32 2, %v3571
    %v3573 = vrot.slane %v3545, %v3572
    %v3574 = vmul.f32 %v2919, %v3573
    %v3575 = vmul.f32 %v2923, %v3573
    %v3576 = vmul.f32 %v2927, %v3573
    %v3577 = vmul.f32 %v2931, %v3573
    %v3578 = vlaneseq
    %v3579 = vshrl.u32 %v3578, 7
    %v3580 = vsub.s32 3, %v3579
    %v3581 = vrot.slane %v3545, %v3580
    %v3582 = vmul.f32 %v2935, %v3581
    %v3583 = vmul.f32 %v2939, %v3581
    %v3584 = vmul.f32 %v2943, %v3581
    %v3585 = vmul.f32 %v2947, %v3581
    %v3586 = vadd.f32 %v3574, %v3582
    %v3587 = vadd.f32 %v3575, %v3583
    %v3588 = vadd.f32 %v3576, %v3584
    %v3589 = vadd.f32 %v3577, %v3585
    %v3590 = vadd.f32 %v3566, %v3586
    %v3591 = vadd.f32 %v3567, %v3587
    %v3592 = vadd.f32 %v3568, %v3588
    %v3593 = vadd.f32 %v3569, %v3589
    %v3594 = vlaneseq
    %v3595 = vshrl.u32 %v3594, 7
    %v3596 = vsub.s32 4, %v3595
    %v3597 = vrot.slane %v3545, %v3596
    %v3598 = vmul.f32 %v2951, %v3597
    %v3599 = vmul.f32 %v2955, %v3597
    %v3600 = vmul.f32 %v2959, %v3597
    %v3601 = vmul.f32 %v2963, %v3597
    %v3602 = vlaneseq
    %v3603 = vshrl.u32 %v3602, 7
    %v3604 = vsub.s32 5, %v3603
    %v3605 = vrot.slane %v3545, %v3604
    %v3606 = vmul.f32 %v2967, %v3605
    %v3607 = vmul.f32 %v2971, %v3605
    %v3608 = vmul.f32 %v2975, %v3605
    %v3609 = vmul.f32 %v2979, %v3605
    %v3610 = vadd.f32 %v3598, %v3606
    %v3611 = vadd.f32 %v3599, %v3607
    %v3612 = vadd.f32 %v3600, %v3608
    %v3613 = vadd.f32 %v3601, %v3609
    %v3614 = vadd.f32 %v3590, %v3610
    %v3615 = vadd.f32 %v3591, %v3611
    %v3616 = vadd.f32 %v3592, %v3612
    %v3617 = vadd.f32 %v3593, %v3613
    %v3618 = vadd.f32 %v3546, %v3614
    %v3619 = vadd.f32 %v3547, %v3615
    %v3620 = vadd.f32 %v3548, %v3616
    %v3621 = vadd.f32 %v3549, %v3617
    %v3622 = vtanh.pop %v3618
    %v3623 = vtanh.pop %v3619
    %v3624 = vtanh.pop %v3620
    %v3625 = vtanh.pop %v3621
    %v3626 = vmul.f32 %v3622, 0.5
    %v3627 = vadd.f32 %v3626, 0.5
    %v3628 = vmul.f32 %v3623, 0.5
    %v3629 = vadd.f32 %v3628, 0.5
    %v3630 = vmul.f32 %v3624, 0.5
    %v3631 = vadd.f32 %v3630, 0.5
    %v3632 = vmul.f32 %v3629, %v3543
    %v3633 = vmul.f32 %v3627, %v3625
    %v3634 = vadd.f32 %v3632, %v3633
    %v3635 = vtanh.pop %v3634
    %v3636 = vmul.f32 %v3631, %v3635
    %v3637 = vld [vmem:[%s4] sm:$0xff]
    %v3638 = vld [vmem:[#allocation4] sm:$0x1]
    %v3640 = vlaneseq
    %v3641 = vshrl.u32 %v3640, 7
    %v3642 = vsub.s32 0, %v3641
    %v3643 = vrot.slane %v3638, %v3642
    %3644 = vset.pattern.permute.xlu0 0
    %3645 = vperm.xlu0 %3644, %v3643
    %v3646 = vpop.permute.xlu0 %3645
    %v3649 = vsel %vm62, %v3637, 0
    %3651 = vmatprep.subr.mxu0 0.0
    %3652 = vmatpush1.msra.mxu0 %v3636
    %3653 = vmatprep.subr.mxu0 0.0
    %3654 = vmatpush1.msra.mxu0 0.0
    %3655 = vmatprep.subr.mxu0 0.0
    %3656 = vmatpush1.msra.mxu0 0.0
    %3657 = vmatprep.subr.mxu0 0.0
    %3658 = vmatpush1.msra.mxu0 0.0
    %3659 = vmatprep.subr.mxu0 0.0
    %3660 = vmatpush1.msra.mxu0 0.0
    %3661 = vmatprep.subr.mxu0 0.0
    %3662 = vmatpush1.msra.mxu0 0.0
    %3663 = vmatprep.subr.mxu0 0.0
    %3664 = vmatpush1.msra.mxu0 0.0
    %3665 = vmatprep.subr.mxu0 0.0
    %3666 = vmatpush1.msra.mxu0 0.0
    %3667 = vmatprep.subr.mxu0 0.0
    %3668 = vmatpush1.msra.mxu0 0.0
    %3669 = vmatprep.subr.mxu0 0.0
    %3670 = vmatpush1.msra.mxu0 0.0
    %3671 = vmatprep.subr.mxu0 0.0
    %3672 = vmatpush1.msra.mxu0 0.0
    %3673 = vmatprep.subr.mxu0 0.0
    %3674 = vmatpush1.msra.mxu0 0.0
    %3675 = vmatprep.subr.mxu0 0.0
    %3676 = vmatpush1.msra.mxu0 0.0
    %3677 = vmatprep.subr.mxu0 0.0
    %3678 = vmatpush1.msra.mxu0 0.0
    %3679 = vmatprep.subr.mxu0 0.0
    %3680 = vmatpush1.msra.mxu0 0.0
    %3681 = vmatprep.subr.mxu0 0.0
    %3682 = vmatpush1.msra.mxu0 0.0
    %3683 = vmatprep.subr.mxu0 0.0
    %3684 = vmatpush1.msra.mxu0 0.0
    %3685 = vmatprep.subr.mxu0 0.0
    %3686 = vmatpush1.msra.mxu0 0.0
    %3687 = vmatprep.subr.mxu0 0.0
    %3688 = vmatpush1.msra.mxu0 0.0
    %3689 = vmatprep.subr.mxu0 0.0
    %3690 = vmatpush1.msra.mxu0 0.0
    %3691 = vmatprep.subr.mxu0 0.0
    %3692 = vmatpush1.msra.mxu0 0.0
    %3693 = vmatprep.subr.mxu0 0.0
    %3694 = vmatpush1.msra.mxu0 0.0
    %3695 = vmatprep.subr.mxu0 0.0
    %3696 = vmatpush1.msra.mxu0 0.0
    %3697 = vmatprep.subr.mxu0 0.0
    %3698 = vmatpush1.msra.mxu0 0.0
    %3699 = vmatprep.subr.mxu0 0.0
    %3700 = vmatpush1.msra.mxu0 0.0
    %3701 = vmatprep.subr.mxu0 0.0
    %3702 = vmatpush1.msra.mxu0 0.0
    %3703 = vmatprep.subr.mxu0 0.0
    %3704 = vmatpush1.msra.mxu0 0.0
    %3705 = vmatprep.subr.mxu0 0.0
    %3706 = vmatpush1.msra.mxu0 0.0
    %3707 = vmatprep.subr.mxu0 0.0
    %3708 = vmatpush1.msra.mxu0 0.0
    %3709 = vmatprep.subr.mxu0 0.0
    %3710 = vmatpush1.msra.mxu0 0.0
    %3711 = vmatprep.subr.mxu0 0.0
    %3712 = vmatpush1.msra.mxu0 0.0
    %3713 = vmatprep.subr.mxu0 0.0
    %3714 = vmatpush1.msra.mxu0 0.0
    %3715 = vmatprep.mubr.f32.mxu0 0.0
    %3716 = vmatmul.mubr.f32.gmra.mrb[0].mxu0 %v3649
    %v3717 = vpop.f32.mrb[0].mxu0
    %v3718 = vadd.f32 %v3646, %v3717
    %v3719 = vpop.f32.mrb[0].mxu0
    %3720 = vdwg.mxu0
    %3721 = vst [vmem:[#allocation5] sm:$0xff] %v3718
    // Predicated region
    $region26: #{tpu_custom_call.1} parent=1 // pred_check
      _
    $region27: #{tpu_custom_call.1} parent=1 // pred_check_branch
      %3723 = sbr.rel (0) target = $region29
    $region28: #{tpu_custom_call.1} parent=1 // pred_region
      %s3725 = ssub.s32 128, 128
      %3726 = vsyncadd [#allocation6], %s3725
      %s3728 = sshll.u32 [#allocation5], 4
      %s3729 = int_to_ptr.vmem [resolvable:$true] %s3728
      %3731 = dma.vmem_to_hbm [thread:$0]  %s3729, 128, %s6, [#allocation6]
    $region29: #{tpu_custom_call.1} parent=1 // pred_fallthru
      _
    // Predicated region
    $region30: #{tpu_custom_call.1} parent=1 // pred_check
      _
    $region31: #{tpu_custom_call.1} parent=1 // pred_check_branch
      %3733 = sbr.rel (0) target = $region33
    $region32: #{tpu_custom_call.1} parent=1 // pred_region
      %3734 = dma.done [#allocation6], 128
    $region33: #{tpu_custom_call.1} parent=1 // pred_fallthru
      _
    %3735 = vsyncpa [#allocation6], 1

</llo_original>
